<compile_context>
chip_gen: v7x
topology: tpu7x:2x2x1
jax: 0.10.0
libtpu: 0.0.40
codegen_flags: <defaults>
</compile_context>

<pallas_src>
import functools

import numpy as np
import jax
import jax.numpy as jnp
from jax.experimental import pallas as pl
from jax.experimental.pallas import tpu as pltpu

EXPLORATORY_PROCEDURE_NUM = 4   # module-level constant in the original file
LEAKY_SLOPE = 0.01              # nn.LeakyReLU default negative_slope
BN_EPS = 1e-5                   # nn.BatchNorm1d default eps


def _round_up(x, m):
    return ((x + m - 1) // m) * m


# ----------------------------- fused Pallas kernel ---------------------------

def _leaky(x):
    return jnp.where(x > 0, x, LEAKY_SLOPE * x)


def _channel_group_selectors(C, L):
    """0/1 matrices grouping columns c*L..(c+1)*L-1 into channel c, built
    in-kernel from iota (no division; only int mul/compare)."""
    CL = C * L
    r = jax.lax.broadcasted_iota(jnp.int32, (CL, C), 0)
    c = jax.lax.broadcasted_iota(jnp.int32, (CL, C), 1)
    s_fwd = jnp.logical_and(r >= c * L, r < (c + 1) * L).astype(jnp.float32)   # (CL, C)
    rr = jax.lax.broadcasted_iota(jnp.int32, (C, CL), 0)
    cc = jax.lax.broadcasted_iota(jnp.int32, (C, CL), 1)
    s_bwd = jnp.logical_and(cc >= rr * L, cc < (rr + 1) * L).astype(jnp.float32)  # (C, CL)
    return s_fwd, s_bwd


def _make_decoder_kernel(stage_dims):
    """stage_dims: tuple of (C_out, L_out) for every ConvT+BN+LeakyReLU stage
    (the last stage is the fused mu/var head with 2*Co channels)."""

    def kernel(*refs):
        nreal_ref = refs[0]           # SMEM (1,) int32: real (unpadded) batch rows
        x_ref = refs[1]               # (Np, D) f32
        o_ref = refs[-1]              # (Np, out_cols) f32
        p = refs[2:-1]

        w1, b1, w2, b2 = p[0], p[1], p[2], p[3]

        n_real = nreal_ref[0]
        nrf = n_real.astype(jnp.float32)
        rows_padded = x_ref.shape[0]
        # mask padded rows out of the BatchNorm statistics
        row_mask = (jax.lax.broadcasted_iota(jnp.int32, (rows_padded, 1), 0)
                    < n_real).astype(jnp.float32)

        # decoder_input: Linear -> LeakyReLU -> Linear   (bf16 MXU, f32 acc)
        h = jnp.dot(x_ref[...].astype(jnp.bfloat16), w1[...],
                    preferred_element_type=jnp.float32) + b1[...]
        cur = jnp.dot(_leaky(h).astype(jnp.bfloat16), w2[...],
                      preferred_element_type=jnp.float32) + b2[...]

        idx = 4
        for (C, L) in stage_dims:
            M, bias, gamma, beta = p[idx], p[idx + 1], p[idx + 2], p[idx + 3]
            idx += 4
            # ConvTranspose1d as one dense matmul
            y = jnp.dot(cur.astype(jnp.bfloat16), M[...],
                        preferred_element_type=jnp.float32) + bias[...]

            # BatchNorm1d, training-mode batch statistics (biased variance),
            # computed over the real rows only, two-pass (centered) variance,
            # all in f32.
            s_fwd, s_bwd = _channel_group_selectors(C, L)
            inv = 1.0 / (nrf * float(L))
            ym = y * row_mask
            mean_c = jnp.dot(jnp.sum(ym, axis=0, keepdims=True), s_fwd,
                             preferred_element_type=jnp.float32) * inv        # (1, C)
            mean_row = jnp.dot(mean_c, s_bwd,
                               preferred_element_type=jnp.float32)            # (1, C*L)
            d = (y - mean_row) * row_mask
            var_c = jnp.dot(jnp.sum(d * d, axis=0, keepdims=True), s_fwd,
                            preferred_element_type=jnp.float32) * inv         # (1, C)
            scale_c = gamma[...] * jax.lax.rsqrt(var_c + BN_EPS)
            shift_c = beta[...] - mean_c * scale_c
            z = (y * jnp.dot(scale_c, s_bwd, preferred_element_type=jnp.float32)
                 + jnp.dot(shift_c, s_bwd, preferred_element_type=jnp.float32))
            cur = _leaky(z)

        # fused final Conv1d (block-diagonal mu|logvar) + Tanh, padded lanes
        Mc, bc = p[idx], p[idx + 1]
        y = jnp.dot(cur.astype(jnp.bfloat16), Mc[...],
                    preferred_element_type=jnp.float32) + bc[...]
        o_ref[...] = jnp.tanh(y)

    return kernel


# --------------------- dense-matrix construction (host, ONCE) ----------------

def convtranspose1d_as_matrix(w, Li, stride, pad, out_pad):
    """w: (Ci, Co, K) torch ConvTranspose1d weight -> dense (Ci*Li, Co*Lo)."""
    Ci, Co, K = w.shape
    Lo = (Li - 1) * stride - 2 * pad + K + out_pad
    M = np.zeros((Ci * Li, Co * Lo), np.float32)
    for li in range(Li):
        for k in range(K):
            lo = li * stride - pad + k
            if 0 <= lo < Lo:
                M[np.ix_(np.arange(Ci) * Li + li, np.arange(Co) * Lo + lo)] += w[:, :, k]
    return M, Lo


def conv1d_as_matrix(w, Li, pad):
    """w: (Co, Ci, K) torch Conv1d weight (stride 1) -> dense (Ci*Li, Co*Lo)."""
    Co, Ci, K = w.shape
    Lo = Li + 2 * pad - K + 1
    M = np.zeros((Ci * Li, Co * Lo), np.float32)
    for lo in range(Lo):
        for k in range(K):
            li = lo - pad + k
            if 0 <= li < Li:
                M[np.ix_(np.arange(Ci) * Li + li, np.arange(Co) * Lo + lo)] += w[:, :, k].T
    return M, Lo


# ------------------------- parameters (deterministic) ------------------------

def init_decoder_params(key, style_dim, content_dim, data_len,
                        hidden_dims, kernels, strides, paddings, out_channels):
    hd = list(reversed(hidden_dims))
    ks = list(reversed(kernels))
    st = list(reversed(strides))
    pd = list(reversed(paddings))
    inner_size = hd[0]

    keys = iter(jax.random.split(key, 64))

    def nrm(shape, scale=0.1):
        return scale * jax.random.normal(next(keys), shape, jnp.float32)

    params = {'inner_size': inner_size, 'data_len': data_len}
    in_dim = style_dim + content_dim + EXPLORATORY_PROCEDURE_NUM
    params['lin1_w'] = nrm((in_dim, 100))
    params['lin1_b'] = nrm((1, 100))
    params['lin2_w'] = nrm((100, inner_size * data_len))
    params['lin2_b'] = nrm((1, inner_size * data_len))

    params['dec'] = []
    for i in range(len(hd) - 1):
        params['dec'].append(dict(
            w=nrm((hd[i], hd[i + 1], ks[i])),
            b=nrm((hd[i + 1],)),
            gamma=1.0 + nrm((1, hd[i + 1])),
            beta=nrm((1, hd[i + 1])),
            stride=st[i], pad=pd[i], out_pad=0,
        ))

    def final():
        return dict(
            ct_w=nrm((hd[-1], hd[-1], ks[-1])),
            ct_b=nrm((hd[-1],)),
            gamma=1.0 + nrm((1, hd[-1])),
            beta=nrm((1, hd[-1])),
            ct_stride=st[-1], ct_pad=pd[-1], ct_out_pad=pd[-1],
            cv_w=nrm((out_channels, hd[-1], ks[-1])),
            cv_b=nrm((out_channels,)),
            cv_pad=2 * pd[-1],
        )

    params['final_mu'] = final()
    params['final_var'] = final()
    return params


# ------------------ one-time prepare: weights as device arrays ----------------

def prepare_decoder(params):
    """Build every dense matmul matrix once (host) and push to device.
    Returns (meta, arrays): static metadata + flat list of device arrays."""
    C0, L0 = params['inner_size'], params['data_len']
    arrays = []

    # MLP weights, hidden dim padded to a multiple of 128 lanes.
    lin1_w = np.asarray(params['lin1_w'], np.float32)
    lin1_b = np.asarray(params['lin1_b'], np.float32)
    lin2_w = np.asarray(params['lin2_w'], np.float32)
    lin2_b = np.asarray(params['lin2_b'], np.float32)
    H = lin1_w.shape[1]
    Hp = _round_up(H, 128)
    w1 = np.zeros((lin1_w.shape[0], Hp), np.float32); w1[:, :H] = lin1_w
    b1 = np.zeros((1, Hp), np.float32); b1[:, :H] = lin1_b
    w2 = np.zeros((Hp, C0 * L0), np.float32); w2[:H] = lin2_w
    arrays += [jnp.asarray(w1, jnp.bfloat16), jnp.asarray(b1, jnp.float32),
               jnp.asarray(w2, jnp.bfloat16), jnp.asarray(lin2_b, jnp.float32)]

    stage_dims = []
    Li = L0
    for layer in params['dec']:
        w = np.asarray(layer['w'], np.float32)
        M, Lo = convtranspose1d_as_matrix(w, Li, layer['stride'],
                                          layer['pad'], layer['out_pad'])
        Co = w.shape[1]
        bias = np.repeat(np.asarray(layer['b'], np.float32), Lo)[None, :]
        arrays += [jnp.asarray(M, jnp.bfloat16), jnp.asarray(bias, jnp.float32),
                   jnp.asarray(np.asarray(layer['gamma'], np.float32)),
                   jnp.asarray(np.asarray(layer['beta'], np.float32))]
        stage_dims.append((Co, Lo))
        Li = Lo

    # Fused mu/var head: ConvTranspose+BN+LeakyReLU stage with 2*Co channels.
    fmu, fvar = params['final_mu'], params['final_var']

    def head_ct(fp):
        w = np.asarray(fp['ct_w'], np.float32)
        M, Lo = convtranspose1d_as_matrix(w, Li, fp['ct_stride'],
                                          fp['ct_pad'], fp['ct_out_pad'])
        bias = np.repeat(np.asarray(fp['ct_b'], np.float32), Lo)[None, :]
        return M, bias, w.shape[1], Lo

    M_mu, b_mu, Ch, Lh = head_ct(fmu)
    M_va, b_va, _, _ = head_ct(fvar)
    M_head = np.concatenate([M_mu, M_va], axis=1)
    b_head = np.concatenate([b_mu, b_va], axis=1)
    g_head = np.concatenate([np.asarray(fmu['gamma'], np.float32),
                             np.asarray(fvar['gamma'], np.float32)], axis=1)
    be_head = np.concatenate([np.asarray(fmu['beta'], np.float32),
                              np.asarray(fvar['beta'], np.float32)], axis=1)
    arrays += [jnp.asarray(M_head, jnp.bfloat16), jnp.asarray(b_head, jnp.float32),
               jnp.asarray(g_head, jnp.float32), jnp.asarray(be_head, jnp.float32)]
    stage_dims.append((2 * Ch, Lh))

    # Fused final Conv1d + Tanh as one block-diagonal matrix, output lanes
    # padded to a multiple of 128 so the kernel's only store is unmasked.
    def head_conv(fp):
        wv = np.asarray(fp['cv_w'], np.float32)
        M2, Lo2 = conv1d_as_matrix(wv, Lh, fp['cv_pad'])
        b2_ = np.repeat(np.asarray(fp['cv_b'], np.float32), Lo2)[None, :]
        return M2, b2_, wv.shape[0], Lo2

    Mc_mu, bc_mu, C2, L2 = head_conv(fmu)
    Mc_va, bc_va, _, _ = head_conv(fvar)
    CL2 = C2 * L2
    out_cols = _round_up(2 * CL2, 128)
    Mc = np.zeros((2 * Ch * Lh, out_cols), np.float32)
    Mc[:Ch * Lh, :CL2] = Mc_mu
    Mc[Ch * Lh:, CL2:2 * CL2] = Mc_va
    bc = np.zeros((1, out_cols), np.float32)
    bc[:, :CL2] = bc_mu
    bc[:, CL2:2 * CL2] = bc_va
    arrays += [jnp.asarray(Mc, jnp.bfloat16), jnp.asarray(bc, jnp.float32)]

    meta = dict(stage_dims=tuple(stage_dims), out_cols=out_cols,
                head=(C2, L2), cl2=CL2)
    return meta, arrays


# ------------------------------ jitted forward --------------------------------

def build_decoder_forward(meta):
    stage_dims = meta['stage_dims']
    out_cols = meta['out_cols']
    C2, L2 = meta['head']
    CL2 = meta['cl2']
    kernel = _make_decoder_kernel(stage_dims)

    @jax.jit
    def forward(arrays, style, content, action):
        x = jnp.concatenate([style, content, action], axis=-1)
        B0, B1, D = x.shape
        N = B0 * B1
        Np = max(_round_up(N, 8), 8)                 # sublane-aligned rows
        x2 = x.reshape(N, D).astype(jnp.float32)
        x2 = jnp.pad(x2, ((0, Np - N), (0, 0)))
        n_real = jnp.full((1,), N, jnp.int32)        # runtime batch size -> SMEM

        # Advisory cost estimate (matmul flops, tanh count, bytes moved).
        flops = 0
        bytes_accessed = x2.size * 4 + Np * out_cols * 4
        for a in arrays:
            bytes_accessed += int(a.size) * a.dtype.itemsize
            if a.ndim == 2 and a.shape[0] > 1:       # matmul weights only
                flops += 2 * Np * a.shape[0] * a.shape[1]

        out = pl.pallas_call(
            kernel,
            out_shape=jax.ShapeDtypeStruct((Np, out_cols), jnp.float32),
            in_specs=[pl.BlockSpec(memory_space=pltpu.MemorySpace.SMEM),
                      pl.BlockSpec(memory_space=pltpu.MemorySpace.VMEM)]
                     + [pl.BlockSpec(memory_space=pltpu.MemorySpace.VMEM)] * len(arrays),
            out_specs=pl.BlockSpec(memory_space=pltpu.MemorySpace.VMEM),
            compiler_params=pltpu.CompilerParams(vmem_limit_bytes=32 * 1024 * 1024),
            cost_estimate=pl.CostEstimate(flops=int(flops),
                                          transcendentals=int(Np * out_cols),
                                          bytes_accessed=int(bytes_accessed)),
        )(n_real, x2, *arrays)

        out = out[:N, :2 * CL2]
        mu = out[:, :CL2].reshape(B0, B1, C2, L2)
        logvar = out[:, CL2:].reshape(B0, B1, C2, L2)
        return mu, logvar

    return forward


# ----------------------------- numpy reference --------------------------------

def _np_leaky(x):
    return np.where(x > 0, x, LEAKY_SLOPE * x)


def _np_convtranspose1d(x, w, b, stride, pad, out_pad):
    N, Ci, Li = x.shape
    _, Co, K = w.shape
    Lo = (Li - 1) * stride - 2 * pad + K + out_pad
    y = np.zeros((N, Co, Lo), np.float32)
    for li in range(Li):
        for k in range(K):
            lo = li * stride - pad + k
            if 0 <= lo < Lo:
                y[:, :, lo] += x[:, :, li] @ w[:, :, k]
    return y + b[None, :, None]


def _np_conv1d(x, w, b, pad):
    N, Ci, Li = x.shape
    Co, _, K = w.shape
    Lo = Li + 2 * pad - K + 1
    xp = np.pad(x, ((0, 0), (0, 0), (pad, pad)))
    y = np.zeros((N, Co, Lo), np.float32)
    for lo in range(Lo):
        y[:, :, lo] = np.einsum('nck,ock->no', xp[:, :, lo:lo + K], w)
    return y + b[None, :, None]


def _np_bn_train(x, gamma, beta):
    mean = x.mean(axis=(0, 2), keepdims=True)
    var = x.var(axis=(0, 2), keepdims=True)
    return gamma.reshape(1, -1, 1) * (x - mean) / np.sqrt(var + BN_EPS) + beta.reshape(1, -1, 1)


def decoder_forward_numpy(params, style, content, action):
    style, content, action = (np.asarray(a, np.float32) for a in (style, content, action))
    x = np.concatenate([style, content, action], axis=-1)
    ds = x.shape
    n = ds[0] * ds[1]
    h = x.reshape(n, -1)
    h = _np_leaky(h @ np.asarray(params['lin1_w']) + np.asarray(params['lin1_b']))
    h = h @ np.asarray(params['lin2_w']) + np.asarray(params['lin2_b'])
    cur = h.reshape(n, params['inner_size'], params['data_len'])
    for layer in params['dec']:
        cur = _np_convtranspose1d(cur, np.asarray(layer['w']), np.asarray(layer['b']),
                                  layer['stride'], layer['pad'], layer['out_pad'])
        cur = _np_leaky(_np_bn_train(cur, np.asarray(layer['gamma']), np.asarray(layer['beta'])))

    def run_final(fp, xin):
        y = _np_convtranspose1d(xin, np.asarray(fp['ct_w']), np.asarray(fp['ct_b']),
                                fp['ct_stride'], fp['ct_pad'], fp['ct_out_pad'])
        y = _np_leaky(_np_bn_train(y, np.asarray(fp['gamma']), np.asarray(fp['beta'])))
        z = _np_conv1d(y, np.asarray(fp['cv_w']), np.asarray(fp['cv_b']), fp['cv_pad'])
        return np.tanh(z)

    mu = run_final(params['final_mu'], cur)
    lv = run_final(params['final_var'], cur)
    os = mu.shape
    return (mu.reshape(ds[0], ds[1], os[-2], os[-1]),
            lv.reshape(ds[0], ds[1], os[-2], os[-1]))


# ----------------------------------- main --------------------------------------

if __name__ == "__main__":
    key = jax.random.PRNGKey(0)
    kp, ks, kc, ka = jax.random.split(key, 4)

    style_dim, content_dim, data_len = 8, 8, 8
    hidden_dims = [16, 32]        # original (un-reversed) order, as passed to __init__
    kernels = [4, 4]
    strides = [2, 2]
    paddings = [1, 1]
    out_channels = 3

    params = init_decoder_params(kp, style_dim, content_dim, data_len,
                                 hidden_dims, kernels, strides, paddings, out_channels)
    meta, arrays = prepare_decoder(params)          # one-time host work
    forward = build_decoder_forward(meta)           # jitted, single pallas_call

    B0, B1 = 2, 3
    style = jax.random.normal(ks, (B0, B1, style_dim), jnp.float32)
    content = jax.random.normal(kc, (B0, B1, content_dim), jnp.float32)
    action = jax.random.normal(ka, (B0, B1, EXPLORATORY_PROCEDURE_NUM), jnp.float32)

    mu, logvar = forward(arrays, style, content, action)
    jax.block_until_ready((mu, logvar))

    mu_ref, lv_ref = decoder_forward_numpy(params, style, content, action)
    assert mu.shape == mu_ref.shape == (B0, B1, out_channels, 34), mu.shape
    # bf16 MXU operands => percent-level tolerance vs. the f32 conv reference.
    np.testing.assert_allclose(np.asarray(mu), mu_ref, rtol=5e-2, atol=5e-2)
    np.testing.assert_allclose(np.asarray(logvar), lv_ref, rtol=5e-2, atol=5e-2)

    print("KERNEL_OK")
</pallas_src>

<mosaic_0001>
module attributes {stable_mosaic.version = 11 : i64} {
  func.func @kernel(%arg0: memref<1xi32, #tpu.memory_space<smem>>, %arg1: memref<8x20xf32, #tpu.memory_space<vmem>>, %arg2: memref<20x128xbf16, #tpu.memory_space<vmem>>, %arg3: memref<1x128xf32, #tpu.memory_space<vmem>>, %arg4: memref<128x256xbf16, #tpu.memory_space<vmem>>, %arg5: memref<1x256xf32, #tpu.memory_space<vmem>>, %arg6: memref<256x256xbf16, #tpu.memory_space<vmem>>, %arg7: memref<1x256xf32, #tpu.memory_space<vmem>>, %arg8: memref<1x16xf32, #tpu.memory_space<vmem>>, %arg9: memref<1x16xf32, #tpu.memory_space<vmem>>, %arg10: memref<256x1056xbf16, #tpu.memory_space<vmem>>, %arg11: memref<1x1056xf32, #tpu.memory_space<vmem>>, %arg12: memref<1x32xf32, #tpu.memory_space<vmem>>, %arg13: memref<1x32xf32, #tpu.memory_space<vmem>>, %arg14: memref<1056x256xbf16, #tpu.memory_space<vmem>>, %arg15: memref<1x256xf32, #tpu.memory_space<vmem>>, %arg16: memref<8x256xf32, #tpu.memory_space<vmem>>) attributes {dimension_semantics = [], scalar_prefetch = 0 : i64, scratch_operands = 0 : i64, tpu.core_type = #tpu.core_type<tc>} {
    %c0 = arith.constant 0 : index
    %0 = memref.load %arg0[%c0] : memref<1xi32, #tpu.memory_space<smem>>
    %1 = arith.sitofp %0 : i32 to f32
    %2 = tpu.iota {dimensions = array<i32: 0>} : vector<8x1xi32>
    %3 = vector.broadcast %0 : i32 to vector<8x1xi32>
    %4 = arith.cmpi slt, %2, %3 : vector<8x1xi32>
    %5 = arith.extui %4 : vector<8x1xi1> to vector<8x1xi32>
    %6 = arith.sitofp %5 : vector<8x1xi32> to vector<8x1xf32>
    %c0_0 = arith.constant 0 : index
    %c0_1 = arith.constant 0 : index
    %7 = vector.load %arg1[%c0_0, %c0_1] : memref<8x20xf32, #tpu.memory_space<vmem>>, vector<8x20xf32>
    %8 = arith.truncf %7 : vector<8x20xf32> to vector<8x20xbf16>
    %c0_2 = arith.constant 0 : index
    %c0_3 = arith.constant 0 : index
    %9 = vector.load %arg2[%c0_2, %c0_3] : memref<20x128xbf16, #tpu.memory_space<vmem>>, vector<20x128xbf16>
    %cst = arith.constant dense<0.000000e+00> : vector<8x128xf32>
    %10 = tpu.matmul %8, %9, %cst {dimension_numbers = #tpu.dot_dimension_numbers<[1], [0], [0], [1], [0, 0, 1, 1], [], []>} : vector<8x20xbf16>, vector<20x128xbf16>, vector<8x128xf32> -> vector<8x128xf32>
    %c0_4 = arith.constant 0 : index
    %c0_5 = arith.constant 0 : index
    %11 = vector.load %arg3[%c0_4, %c0_5] : memref<1x128xf32, #tpu.memory_space<vmem>>, vector<1x128xf32>
    %12 = vector.broadcast %11 : vector<1x128xf32> to vector<8x128xf32>
    %13 = arith.addf %10, %12 : vector<8x128xf32>
    %cst_6 = arith.constant 0.000000e+00 : f32
    %14 = vector.broadcast %cst_6 : f32 to vector<8x128xf32>
    %15 = arith.cmpf ogt, %13, %14 : vector<8x128xf32>
    %cst_7 = arith.constant 0.00999999977 : f32
    %16 = vector.broadcast %cst_7 : f32 to vector<8x128xf32>
    %17 = arith.mulf %16, %13 : vector<8x128xf32>
    %18 = arith.select %15, %13, %17 : vector<8x128xi1>, vector<8x128xf32>
    %19 = arith.truncf %18 : vector<8x128xf32> to vector<8x128xbf16>
    %c0_8 = arith.constant 0 : index
    %c0_9 = arith.constant 0 : index
    %20 = vector.load %arg4[%c0_8, %c0_9] : memref<128x256xbf16, #tpu.memory_space<vmem>>, vector<128x256xbf16>
    %cst_10 = arith.constant dense<0.000000e+00> : vector<8x256xf32>
    %21 = tpu.matmul %19, %20, %cst_10 {dimension_numbers = #tpu.dot_dimension_numbers<[1], [0], [0], [1], [0, 0, 1, 1], [], []>} : vector<8x128xbf16>, vector<128x256xbf16>, vector<8x256xf32> -> vector<8x256xf32>
    %c0_11 = arith.constant 0 : index
    %c0_12 = arith.constant 0 : index
    %22 = vector.load %arg5[%c0_11, %c0_12] : memref<1x256xf32, #tpu.memory_space<vmem>>, vector<1x256xf32>
    %23 = vector.broadcast %22 : vector<1x256xf32> to vector<8x256xf32>
    %24 = arith.addf %21, %23 : vector<8x256xf32>
    %25 = arith.truncf %24 : vector<8x256xf32> to vector<8x256xbf16>
    %c0_13 = arith.constant 0 : index
    %c0_14 = arith.constant 0 : index
    %26 = vector.load %arg6[%c0_13, %c0_14] : memref<256x256xbf16, #tpu.memory_space<vmem>>, vector<256x256xbf16>
    %cst_15 = arith.constant dense<0.000000e+00> : vector<8x256xf32>
    %27 = tpu.matmul %25, %26, %cst_15 {dimension_numbers = #tpu.dot_dimension_numbers<[1], [0], [0], [1], [0, 0, 1, 1], [], []>} : vector<8x256xbf16>, vector<256x256xbf16>, vector<8x256xf32> -> vector<8x256xf32>
    %c0_16 = arith.constant 0 : index
    %c0_17 = arith.constant 0 : index
    %28 = vector.load %arg7[%c0_16, %c0_17] : memref<1x256xf32, #tpu.memory_space<vmem>>, vector<1x256xf32>
    %29 = vector.broadcast %28 : vector<1x256xf32> to vector<8x256xf32>
    %30 = arith.addf %27, %29 : vector<8x256xf32>
    %31 = tpu.iota {dimensions = array<i32: 0>} : vector<256x16xi32>
    %32 = tpu.iota {dimensions = array<i32: 1>} : vector<256x16xi32>
    %c16_i32 = arith.constant 16 : i32
    %33 = vector.broadcast %c16_i32 : i32 to vector<256x16xi32>
    %34 = arith.muli %32, %33 : vector<256x16xi32>
    %35 = arith.cmpi sge, %31, %34 : vector<256x16xi32>
    %c1_i32 = arith.constant 1 : i32
    %36 = vector.broadcast %c1_i32 : i32 to vector<256x16xi32>
    %37 = arith.addi %32, %36 : vector<256x16xi32>
    %c16_i32_18 = arith.constant 16 : i32
    %38 = vector.broadcast %c16_i32_18 : i32 to vector<256x16xi32>
    %39 = arith.muli %37, %38 : vector<256x16xi32>
    %40 = arith.cmpi slt, %31, %39 : vector<256x16xi32>
    %41 = arith.andi %35, %40 : vector<256x16xi1>
    %42 = arith.extui %41 : vector<256x16xi1> to vector<256x16xi32>
    %43 = arith.sitofp %42 : vector<256x16xi32> to vector<256x16xf32>
    %44 = tpu.iota {dimensions = array<i32: 0>} : vector<16x256xi32>
    %45 = tpu.iota {dimensions = array<i32: 1>} : vector<16x256xi32>
    %c16_i32_19 = arith.constant 16 : i32
    %46 = vector.broadcast %c16_i32_19 : i32 to vector<16x256xi32>
    %47 = arith.muli %44, %46 : vector<16x256xi32>
    %48 = arith.cmpi sge, %45, %47 : vector<16x256xi32>
    %c1_i32_20 = arith.constant 1 : i32
    %49 = vector.broadcast %c1_i32_20 : i32 to vector<16x256xi32>
    %50 = arith.addi %44, %49 : vector<16x256xi32>
    %c16_i32_21 = arith.constant 16 : i32
    %51 = vector.broadcast %c16_i32_21 : i32 to vector<16x256xi32>
    %52 = arith.muli %50, %51 : vector<16x256xi32>
    %53 = arith.cmpi slt, %45, %52 : vector<16x256xi32>
    %54 = arith.andi %48, %53 : vector<16x256xi1>
    %55 = arith.extui %54 : vector<16x256xi1> to vector<16x256xi32>
    %56 = arith.sitofp %55 : vector<16x256xi32> to vector<16x256xf32>
    %cst_22 = arith.constant 1.600000e+01 : f32
    %57 = arith.mulf %1, %cst_22 : f32
    %cst_23 = arith.constant 1.000000e+00 : f32
    %58 = arith.divf %cst_23, %57 : f32
    %59 = vector.broadcast %6 : vector<8x1xf32> to vector<8x256xf32>
    %60 = arith.mulf %30, %59 : vector<8x256xf32>
    %cst_24 = arith.constant dense<0.000000e+00> : vector<256xf32>
    %61 = vector.multi_reduction <add>, %60, %cst_24 [0] : vector<8x256xf32> to vector<256xf32>
    %62 = vector.shape_cast %61 : vector<256xf32> to vector<1x256xf32>
    %cst_25 = arith.constant dense<0.000000e+00> : vector<1x16xf32>
    %63 = tpu.matmul %62, %43, %cst_25 {dimension_numbers = #tpu.dot_dimension_numbers<[1], [0], [0], [1], [0, 0, 1, 1], [], []>} : vector<1x256xf32>, vector<256x16xf32>, vector<1x16xf32> -> vector<1x16xf32>
    %64 = vector.broadcast %58 : f32 to vector<1x16xf32>
    %65 = arith.mulf %63, %64 : vector<1x16xf32>
    %cst_26 = arith.constant dense<0.000000e+00> : vector<1x256xf32>
    %66 = tpu.matmul %65, %56, %cst_26 {dimension_numbers = #tpu.dot_dimension_numbers<[1], [0], [0], [1], [0, 0, 1, 1], [], []>} : vector<1x16xf32>, vector<16x256xf32>, vector<1x256xf32> -> vector<1x256xf32>
    %67 = vector.broadcast %66 : vector<1x256xf32> to vector<8x256xf32>
    %68 = arith.subf %30, %67 : vector<8x256xf32>
    %69 = vector.broadcast %6 : vector<8x1xf32> to vector<8x256xf32>
    %70 = arith.mulf %68, %69 : vector<8x256xf32>
    %71 = arith.mulf %70, %70 : vector<8x256xf32>
    %cst_27 = arith.constant dense<0.000000e+00> : vector<256xf32>
    %72 = vector.multi_reduction <add>, %71, %cst_27 [0] : vector<8x256xf32> to vector<256xf32>
    %73 = vector.shape_cast %72 : vector<256xf32> to vector<1x256xf32>
    %cst_28 = arith.constant dense<0.000000e+00> : vector<1x16xf32>
    %74 = tpu.matmul %73, %43, %cst_28 {dimension_numbers = #tpu.dot_dimension_numbers<[1], [0], [0], [1], [0, 0, 1, 1], [], []>} : vector<1x256xf32>, vector<256x16xf32>, vector<1x16xf32> -> vector<1x16xf32>
    %75 = vector.broadcast %58 : f32 to vector<1x16xf32>
    %76 = arith.mulf %74, %75 : vector<1x16xf32>
    %c0_29 = arith.constant 0 : index
    %c0_30 = arith.constant 0 : index
    %77 = vector.load %arg8[%c0_29, %c0_30] : memref<1x16xf32, #tpu.memory_space<vmem>>, vector<1x16xf32>
    %cst_31 = arith.constant 9.99999974E-6 : f32
    %78 = vector.broadcast %cst_31 : f32 to vector<1x16xf32>
    %79 = arith.addf %76, %78 : vector<1x16xf32>
    %80 = math.rsqrt %79 : vector<1x16xf32>
    %81 = arith.mulf %77, %80 : vector<1x16xf32>
    %c0_32 = arith.constant 0 : index
    %c0_33 = arith.constant 0 : index
    %82 = vector.load %arg9[%c0_32, %c0_33] : memref<1x16xf32, #tpu.memory_space<vmem>>, vector<1x16xf32>
    %83 = arith.mulf %65, %81 : vector<1x16xf32>
    %84 = arith.subf %82, %83 : vector<1x16xf32>
    %cst_34 = arith.constant dense<0.000000e+00> : vector<1x256xf32>
    %85 = tpu.matmul %81, %56, %cst_34 {dimension_numbers = #tpu.dot_dimension_numbers<[1], [0], [0], [1], [0, 0, 1, 1], [], []>} : vector<1x16xf32>, vector<16x256xf32>, vector<1x256xf32> -> vector<1x256xf32>
    %86 = vector.broadcast %85 : vector<1x256xf32> to vector<8x256xf32>
    %87 = arith.mulf %30, %86 : vector<8x256xf32>
    %cst_35 = arith.constant dense<0.000000e+00> : vector<1x256xf32>
    %88 = tpu.matmul %84, %56, %cst_35 {dimension_numbers = #tpu.dot_dimension_numbers<[1], [0], [0], [1], [0, 0, 1, 1], [], []>} : vector<1x16xf32>, vector<16x256xf32>, vector<1x256xf32> -> vector<1x256xf32>
    %89 = vector.broadcast %88 : vector<1x256xf32> to vector<8x256xf32>
    %90 = arith.addf %87, %89 : vector<8x256xf32>
    %cst_36 = arith.constant 0.000000e+00 : f32
    %91 = vector.broadcast %cst_36 : f32 to vector<8x256xf32>
    %92 = arith.cmpf ogt, %90, %91 : vector<8x256xf32>
    %cst_37 = arith.constant 0.00999999977 : f32
    %93 = vector.broadcast %cst_37 : f32 to vector<8x256xf32>
    %94 = arith.mulf %93, %90 : vector<8x256xf32>
    %95 = arith.select %92, %90, %94 : vector<8x256xi1>, vector<8x256xf32>
    %96 = arith.truncf %95 : vector<8x256xf32> to vector<8x256xbf16>
    %c0_38 = arith.constant 0 : index
    %c0_39 = arith.constant 0 : index
    %97 = vector.load %arg10[%c0_38, %c0_39] : memref<256x1056xbf16, #tpu.memory_space<vmem>>, vector<256x1056xbf16>
    %cst_40 = arith.constant dense<0.000000e+00> : vector<8x1056xf32>
    %98 = tpu.matmul %96, %97, %cst_40 {dimension_numbers = #tpu.dot_dimension_numbers<[1], [0], [0], [1], [0, 0, 1, 1], [], []>} : vector<8x256xbf16>, vector<256x1056xbf16>, vector<8x1056xf32> -> vector<8x1056xf32>
    %c0_41 = arith.constant 0 : index
    %c0_42 = arith.constant 0 : index
    %99 = vector.load %arg11[%c0_41, %c0_42] : memref<1x1056xf32, #tpu.memory_space<vmem>>, vector<1x1056xf32>
    %100 = vector.broadcast %99 : vector<1x1056xf32> to vector<8x1056xf32>
    %101 = arith.addf %98, %100 : vector<8x1056xf32>
    %102 = tpu.iota {dimensions = array<i32: 0>} : vector<1056x32xi32>
    %103 = tpu.iota {dimensions = array<i32: 1>} : vector<1056x32xi32>
    %c33_i32 = arith.constant 33 : i32
    %104 = vector.broadcast %c33_i32 : i32 to vector<1056x32xi32>
    %105 = arith.muli %103, %104 : vector<1056x32xi32>
    %106 = arith.cmpi sge, %102, %105 : vector<1056x32xi32>
    %c1_i32_43 = arith.constant 1 : i32
    %107 = vector.broadcast %c1_i32_43 : i32 to vector<1056x32xi32>
    %108 = arith.addi %103, %107 : vector<1056x32xi32>
    %c33_i32_44 = arith.constant 33 : i32
    %109 = vector.broadcast %c33_i32_44 : i32 to vector<1056x32xi32>
    %110 = arith.muli %108, %109 : vector<1056x32xi32>
    %111 = arith.cmpi slt, %102, %110 : vector<1056x32xi32>
    %112 = arith.andi %106, %111 : vector<1056x32xi1>
    %113 = arith.extui %112 : vector<1056x32xi1> to vector<1056x32xi32>
    %114 = arith.sitofp %113 : vector<1056x32xi32> to vector<1056x32xf32>
    %115 = tpu.iota {dimensions = array<i32: 0>} : vector<32x1056xi32>
    %116 = tpu.iota {dimensions = array<i32: 1>} : vector<32x1056xi32>
    %c33_i32_45 = arith.constant 33 : i32
    %117 = vector.broadcast %c33_i32_45 : i32 to vector<32x1056xi32>
    %118 = arith.muli %115, %117 : vector<32x1056xi32>
    %119 = arith.cmpi sge, %116, %118 : vector<32x1056xi32>
    %c1_i32_46 = arith.constant 1 : i32
    %120 = vector.broadcast %c1_i32_46 : i32 to vector<32x1056xi32>
    %121 = arith.addi %115, %120 : vector<32x1056xi32>
    %c33_i32_47 = arith.constant 33 : i32
    %122 = vector.broadcast %c33_i32_47 : i32 to vector<32x1056xi32>
    %123 = arith.muli %121, %122 : vector<32x1056xi32>
    %124 = arith.cmpi slt, %116, %123 : vector<32x1056xi32>
    %125 = arith.andi %119, %124 : vector<32x1056xi1>
    %126 = arith.extui %125 : vector<32x1056xi1> to vector<32x1056xi32>
    %127 = arith.sitofp %126 : vector<32x1056xi32> to vector<32x1056xf32>
    %cst_48 = arith.constant 3.300000e+01 : f32
    %128 = arith.mulf %1, %cst_48 : f32
    %cst_49 = arith.constant 1.000000e+00 : f32
    %129 = arith.divf %cst_49, %128 : f32
    %130 = vector.broadcast %6 : vector<8x1xf32> to vector<8x1056xf32>
    %131 = arith.mulf %101, %130 : vector<8x1056xf32>
    %cst_50 = arith.constant dense<0.000000e+00> : vector<1056xf32>
    %132 = vector.multi_reduction <add>, %131, %cst_50 [0] : vector<8x1056xf32> to vector<1056xf32>
    %133 = vector.shape_cast %132 : vector<1056xf32> to vector<1x1056xf32>
    %cst_51 = arith.constant dense<0.000000e+00> : vector<1x32xf32>
    %134 = tpu.matmul %133, %114, %cst_51 {dimension_numbers = #tpu.dot_dimension_numbers<[1], [0], [0], [1], [0, 0, 1, 1], [], []>} : vector<1x1056xf32>, vector<1056x32xf32>, vector<1x32xf32> -> vector<1x32xf32>
    %135 = vector.broadcast %129 : f32 to vector<1x32xf32>
    %136 = arith.mulf %134, %135 : vector<1x32xf32>
    %cst_52 = arith.constant dense<0.000000e+00> : vector<1x1056xf32>
    %137 = tpu.matmul %136, %127, %cst_52 {dimension_numbers = #tpu.dot_dimension_numbers<[1], [0], [0], [1], [0, 0, 1, 1], [], []>} : vector<1x32xf32>, vector<32x1056xf32>, vector<1x1056xf32> -> vector<1x1056xf32>
    %138 = vector.broadcast %137 : vector<1x1056xf32> to vector<8x1056xf32>
    %139 = arith.subf %101, %138 : vector<8x1056xf32>
    %140 = vector.broadcast %6 : vector<8x1xf32> to vector<8x1056xf32>
    %141 = arith.mulf %139, %140 : vector<8x1056xf32>
    %142 = arith.mulf %141, %141 : vector<8x1056xf32>
    %cst_53 = arith.constant dense<0.000000e+00> : vector<1056xf32>
    %143 = vector.multi_reduction <add>, %142, %cst_53 [0] : vector<8x1056xf32> to vector<1056xf32>
    %144 = vector.shape_cast %143 : vector<1056xf32> to vector<1x1056xf32>
    %cst_54 = arith.constant dense<0.000000e+00> : vector<1x32xf32>
    %145 = tpu.matmul %144, %114, %cst_54 {dimension_numbers = #tpu.dot_dimension_numbers<[1], [0], [0], [1], [0, 0, 1, 1], [], []>} : vector<1x1056xf32>, vector<1056x32xf32>, vector<1x32xf32> -> vector<1x32xf32>
    %146 = vector.broadcast %129 : f32 to vector<1x32xf32>
    %147 = arith.mulf %145, %146 : vector<1x32xf32>
    %c0_55 = arith.constant 0 : index
    %c0_56 = arith.constant 0 : index
    %148 = vector.load %arg12[%c0_55, %c0_56] : memref<1x32xf32, #tpu.memory_space<vmem>>, vector<1x32xf32>
    %cst_57 = arith.constant 9.99999974E-6 : f32
    %149 = vector.broadcast %cst_57 : f32 to vector<1x32xf32>
    %150 = arith.addf %147, %149 : vector<1x32xf32>
    %151 = math.rsqrt %150 : vector<1x32xf32>
    %152 = arith.mulf %148, %151 : vector<1x32xf32>
    %c0_58 = arith.constant 0 : index
    %c0_59 = arith.constant 0 : index
    %153 = vector.load %arg13[%c0_58, %c0_59] : memref<1x32xf32, #tpu.memory_space<vmem>>, vector<1x32xf32>
    %154 = arith.mulf %136, %152 : vector<1x32xf32>
    %155 = arith.subf %153, %154 : vector<1x32xf32>
    %cst_60 = arith.constant dense<0.000000e+00> : vector<1x1056xf32>
    %156 = tpu.matmul %152, %127, %cst_60 {dimension_numbers = #tpu.dot_dimension_numbers<[1], [0], [0], [1], [0, 0, 1, 1], [], []>} : vector<1x32xf32>, vector<32x1056xf32>, vector<1x1056xf32> -> vector<1x1056xf32>
    %157 = vector.broadcast %156 : vector<1x1056xf32> to vector<8x1056xf32>
    %158 = arith.mulf %101, %157 : vector<8x1056xf32>
    %cst_61 = arith.constant dense<0.000000e+00> : vector<1x1056xf32>
    %159 = tpu.matmul %155, %127, %cst_61 {dimension_numbers = #tpu.dot_dimension_numbers<[1], [0], [0], [1], [0, 0, 1, 1], [], []>} : vector<1x32xf32>, vector<32x1056xf32>, vector<1x1056xf32> -> vector<1x1056xf32>
    %160 = vector.broadcast %159 : vector<1x1056xf32> to vector<8x1056xf32>
    %161 = arith.addf %158, %160 : vector<8x1056xf32>
    %cst_62 = arith.constant 0.000000e+00 : f32
    %162 = vector.broadcast %cst_62 : f32 to vector<8x1056xf32>
    %163 = arith.cmpf ogt, %161, %162 : vector<8x1056xf32>
    %cst_63 = arith.constant 0.00999999977 : f32
    %164 = vector.broadcast %cst_63 : f32 to vector<8x1056xf32>
    %165 = arith.mulf %164, %161 : vector<8x1056xf32>
    %166 = arith.select %163, %161, %165 : vector<8x1056xi1>, vector<8x1056xf32>
    %167 = arith.truncf %166 : vector<8x1056xf32> to vector<8x1056xbf16>
    %c0_64 = arith.constant 0 : index
    %c0_65 = arith.constant 0 : index
    %168 = vector.load %arg14[%c0_64, %c0_65] : memref<1056x256xbf16, #tpu.memory_space<vmem>>, vector<1056x256xbf16>
    %cst_66 = arith.constant dense<0.000000e+00> : vector<8x256xf32>
    %169 = tpu.matmul %167, %168, %cst_66 {dimension_numbers = #tpu.dot_dimension_numbers<[1], [0], [0], [1], [0, 0, 1, 1], [], []>} : vector<8x1056xbf16>, vector<1056x256xbf16>, vector<8x256xf32> -> vector<8x256xf32>
    %c0_67 = arith.constant 0 : index
    %c0_68 = arith.constant 0 : index
    %170 = vector.load %arg15[%c0_67, %c0_68] : memref<1x256xf32, #tpu.memory_space<vmem>>, vector<1x256xf32>
    %171 = vector.broadcast %170 : vector<1x256xf32> to vector<8x256xf32>
    %172 = arith.addf %169, %171 : vector<8x256xf32>
    %173 = math.tanh %172 : vector<8x256xf32>
    %c0_69 = arith.constant 0 : index
    %c0_70 = arith.constant 0 : index
    %174 = vector.load %arg16[%c0_69, %c0_70] : memref<8x256xf32, #tpu.memory_space<vmem>>, vector<8x256xf32>
    tpu.vector_store %arg16[%c0_69, %c0_70], %173 {strides = array<i32>} : memref<8x256xf32, #tpu.memory_space<vmem>>, vector<8x256xf32>,
    return
  }
}

</mosaic_0001>

<llo_original>
// kernel: forward.1
$region0: #{forward.1}
  #allocation0 [shape = 'u32[]', space=smem, size = 0x4, offset = 0x4, fixed_abs, tag = 'smem constant byte address 0x4 - core index']
  #allocation1 [shape = 'u32[144,128]{1,0:T(1,128)}', space=vmem, size = 0x12000, scoped, tag = 'internal scratch']
  #allocation2 [shape = 's32[1]{0:T(128)S(6)}', space=smem, size = 0x200, scoped, tag = 'scoped memory for forward.1']
  %s0 = inlined_call_operand.<no memory space> [shape: s32[1], index: 0, kind: input, shape index: {}]
  %s1 = inlined_call_operand.vmem [shape: f32[8,20], index: 1, kind: input, shape index: {}]
  %s2 = inlined_call_operand.vmem [shape: bf16[20,128], index: 2, kind: input, shape index: {}]
  %s3 = inlined_call_operand.vmem [shape: f32[1,128], index: 3, kind: input, shape index: {}]
  %s4 = inlined_call_operand.vmem [shape: bf16[128,256], index: 4, kind: input, shape index: {}]
  %s5 = inlined_call_operand.vmem [shape: f32[1,256], index: 5, kind: input, shape index: {}]
  %s6 = inlined_call_operand.vmem [shape: bf16[256,256], index: 6, kind: input, shape index: {}]
  %s7 = inlined_call_operand.vmem [shape: f32[1,256], index: 7, kind: input, shape index: {}]
  %s8 = inlined_call_operand.vmem [shape: f32[1,16], index: 8, kind: input, shape index: {}]
  %s9 = inlined_call_operand.vmem [shape: f32[1,16], index: 9, kind: input, shape index: {}]
  %s10 = inlined_call_operand.vmem [shape: bf16[256,1056], index: 10, kind: input, shape index: {}]
  %s11 = inlined_call_operand.vmem [shape: f32[1,1056], index: 11, kind: input, shape index: {}]
  %s12 = inlined_call_operand.vmem [shape: f32[1,32], index: 12, kind: input, shape index: {}]
  %s13 = inlined_call_operand.vmem [shape: f32[1,32], index: 13, kind: input, shape index: {}]
  %s14 = inlined_call_operand.vmem [shape: bf16[1056,256], index: 14, kind: input, shape index: {}]
  %s15 = inlined_call_operand.vmem [shape: f32[1,256], index: 15, kind: input, shape index: {}]
  %s16 = inlined_call_operand.vmem [shape: f32[8,256], index: 16, kind: output, shape index: {}]
  %s17 = sld [smem:[#allocation0]]
  $region74: #{forward.1} parent=0
    _
  %s19 = ssub.s32 1, %s17
  %s20 = scalar_select 0, %s19, %s17
  %21 = sst [smem:[#allocation2]] %s0
  // Predicated region
  $region2: #{forward.1} parent=0 // pred_check
    _
  $region3: #{forward.1} parent=0 // pred_check_branch
    %23 = sbr.rel (0) target = $region5
  $region4: #{forward.1} parent=0 // pred_region
    _
  $region5: #{forward.1} parent=0 // pred_fallthru
    _
  // Predicated region
  $region6: #{forward.1} parent=0 // pred_check
    _
  $region7: #{forward.1} parent=0 // pred_check_branch
    %25 = sbr.rel (0) target = $region9
  $region8: #{forward.1} parent=0 // pred_region
    _
  $region9: #{forward.1} parent=0 // pred_fallthru
    _
  // Predicated region
  $region10: #{forward.1} parent=0 // pred_check
    _
  $region11: #{forward.1} parent=0 // pred_check_branch
    %27 = sbr.rel (0) target = $region13
  $region12: #{forward.1} parent=0 // pred_region
    _
  $region13: #{forward.1} parent=0 // pred_fallthru
    _
  // Predicated region
  $region14: #{forward.1} parent=0 // pred_check
    _
  $region15: #{forward.1} parent=0 // pred_check_branch
    %29 = sbr.rel (0) target = $region17
  $region16: #{forward.1} parent=0 // pred_region
    _
  $region17: #{forward.1} parent=0 // pred_fallthru
    _
  // Predicated region
  $region18: #{forward.1} parent=0 // pred_check
    _
  $region19: #{forward.1} parent=0 // pred_check_branch
    %31 = sbr.rel (0) target = $region21
  $region20: #{forward.1} parent=0 // pred_region
    _
  $region21: #{forward.1} parent=0 // pred_fallthru
    _
  // Predicated region
  $region22: #{forward.1} parent=0 // pred_check
    _
  $region23: #{forward.1} parent=0 // pred_check_branch
    %33 = sbr.rel (0) target = $region25
  $region24: #{forward.1} parent=0 // pred_region
    _
  $region25: #{forward.1} parent=0 // pred_fallthru
    _
  // Predicated region
  $region26: #{forward.1} parent=0 // pred_check
    _
  $region27: #{forward.1} parent=0 // pred_check_branch
    %35 = sbr.rel (0) target = $region29
  $region28: #{forward.1} parent=0 // pred_region
    _
  $region29: #{forward.1} parent=0 // pred_fallthru
    _
  // Predicated region
  $region30: #{forward.1} parent=0 // pred_check
    _
  $region31: #{forward.1} parent=0 // pred_check_branch
    %37 = sbr.rel (0) target = $region33
  $region32: #{forward.1} parent=0 // pred_region
    _
  $region33: #{forward.1} parent=0 // pred_fallthru
    _
  // Predicated region
  $region34: #{forward.1} parent=0 // pred_check
    _
  $region35: #{forward.1} parent=0 // pred_check_branch
    %39 = sbr.rel (0) target = $region37
  $region36: #{forward.1} parent=0 // pred_region
    _
  $region37: #{forward.1} parent=0 // pred_fallthru
    _
  // Predicated region
  $region38: #{forward.1} parent=0 // pred_check
    _
  $region39: #{forward.1} parent=0 // pred_check_branch
    %41 = sbr.rel (0) target = $region41
  $region40: #{forward.1} parent=0 // pred_region
    _
  $region41: #{forward.1} parent=0 // pred_fallthru
    _
  // Predicated region
  $region42: #{forward.1} parent=0 // pred_check
    _
  $region43: #{forward.1} parent=0 // pred_check_branch
    %43 = sbr.rel (0) target = $region45
  $region44: #{forward.1} parent=0 // pred_region
    _
  $region45: #{forward.1} parent=0 // pred_fallthru
    _
  // Predicated region
  $region46: #{forward.1} parent=0 // pred_check
    _
  $region47: #{forward.1} parent=0 // pred_check_branch
    %45 = sbr.rel (0) target = $region49
  $region48: #{forward.1} parent=0 // pred_region
    _
  $region49: #{forward.1} parent=0 // pred_fallthru
    _
  // Predicated region
  $region50: #{forward.1} parent=0 // pred_check
    _
  $region51: #{forward.1} parent=0 // pred_check_branch
    %47 = sbr.rel (0) target = $region53
  $region52: #{forward.1} parent=0 // pred_region
    _
  $region53: #{forward.1} parent=0 // pred_fallthru
    _
  // Predicated region
  $region54: #{forward.1} parent=0 // pred_check
    _
  $region55: #{forward.1} parent=0 // pred_check_branch
    %49 = sbr.rel (0) target = $region57
  $region56: #{forward.1} parent=0 // pred_region
    _
  $region57: #{forward.1} parent=0 // pred_fallthru
    _
  // Predicated region
  $region58: #{forward.1} parent=0 // pred_check
    _
  $region59: #{forward.1} parent=0 // pred_check_branch
    %51 = sbr.rel (0) target = $region61
  $region60: #{forward.1} parent=0 // pred_region
    _
  $region61: #{forward.1} parent=0 // pred_fallthru
    _
  // Predicated region
  $region62: #{forward.1} parent=0 // pred_check
    _
  $region63: #{forward.1} parent=0 // pred_check_branch
    %53 = sbr.rel (0) target = $region65
  $region64: #{forward.1} parent=0 // pred_region
    _
  $region65: #{forward.1} parent=0 // pred_fallthru
    _
  %s55 = sld [smem:[#allocation2]]
  %s56 = scvt.s32.f32 %s55
  %v57 = vlaneseq
  %v58 = vshrl.u32 %v57, 7
  %v59 = vstv %s55
  %vm60 = vcmp.lt.s32.totalorder %v58, %v59
  %v61 = vsel %vm60, 1, 0
  %v62 = vcvt.s32.f32 %v61
  %v63 = vld [vmem:[%s1] sm:$0xff]
  %v64 = vpack.c.bf16 %v63, %v63
  %v65 = vld [vmem:[%s2] sm:$0xf]
  %v66 = vld [vmem:[%s2 + $0x4] sm:$0xf]
  %v67 = vld [vmem:[%s2 + $0x8] sm:$0x3]
  %v68 = vld [vmem:[%s3] sm:$0x1]
  %v70 = vlaneseq
  %v71 = vshrl.u32 %v70, 7
  %v72 = vsub.s32 0, %v71
  %v73 = vrot.slane %v68, %v72
  %v78 = vunpack.c.l.b16 %v65
  %v79 = vunpack.c.l.b16 %v66
  %v80 = vunpack.c.l.b16 %v67
  %v81 = vpack.c.b16 %v79, %v78
  %v82 = vpack.c.b16 %v80, %v80
  %vm84 = vcmask 162816
  %v86 = vsel %vm84, %v64, 0
  %vm88 = vcmask 1041408
  %v90 = vsel %vm88, %v82, 0
  %92 = vmatprep.subr.bf16.mxu0 0
  %93 = vmatpush1.bf16.msra.mxu0 %v81
  %94 = vmatprep.subr.bf16.mxu0 0
  %95 = vmatpush1.bf16.msra.mxu0 %v90
  %96 = vmatprep.subr.bf16.mxu0 0
  %97 = vmatpush1.bf16.msra.mxu0 0
  %98 = vmatprep.subr.bf16.mxu0 0
  %99 = vmatpush1.bf16.msra.mxu0 0
  %100 = vmatprep.subr.bf16.mxu0 0
  %101 = vmatpush1.bf16.msra.mxu0 0
  %102 = vmatprep.subr.bf16.mxu0 0
  %103 = vmatpush1.bf16.msra.mxu0 0
  %104 = vmatprep.subr.bf16.mxu0 0
  %105 = vmatpush1.bf16.msra.mxu0 0
  %106 = vmatprep.subr.bf16.mxu0 0
  %107 = vmatpush1.bf16.msra.mxu0 0
  %108 = vmatprep.subr.bf16.mxu0 0
  %109 = vmatpush1.bf16.msra.mxu0 0
  %110 = vmatprep.subr.bf16.mxu0 0
  %111 = vmatpush1.bf16.msra.mxu0 0
  %112 = vmatprep.subr.bf16.mxu0 0
  %113 = vmatpush1.bf16.msra.mxu0 0
  %114 = vmatprep.subr.bf16.mxu0 0
  %115 = vmatpush1.bf16.msra.mxu0 0
  %116 = vmatprep.subr.bf16.mxu0 0
  %117 = vmatpush1.bf16.msra.mxu0 0
  %118 = vmatprep.subr.bf16.mxu0 0
  %119 = vmatpush1.bf16.msra.mxu0 0
  %120 = vmatprep.subr.bf16.mxu0 0
  %121 = vmatpush1.bf16.msra.mxu0 0
  %122 = vmatprep.subr.bf16.mxu0 0
  %123 = vmatpush1.bf16.msra.mxu0 0
  %124 = vmatprep.mubr.bf16.mxu0 0
  %125 = vmatmul.mubr.bf16.gmra.mrb[0].mxu0 %v86
  %v126 = vpop.f32.mrb[0].mxu0
  %v127 = vadd.f32 %v73, %v126
  %v128 = vpop.f32.mrb[0].mxu0
  %v129 = vpop.f32.mrb[0].mxu0
  %v130 = vpop.f32.mrb[0].mxu0
  %131 = vdwg.mxu0
  %vm132 = vcmp.gt.f32.partialorder %v127, 0.0
  %v133 = vmul.f32 %v127, 0.01
  %v134 = vsel %vm132, %v127, %v133
  %v135 = vpack.c.bf16 %v134, %v134
  %v136 = vld [vmem:[%s4] sm:$0xff]
  %v137 = vld [vmem:[%s4 + $0x8] sm:$0xff]
  %v138 = vld [vmem:[%s4 + $0x10] sm:$0xff]
  %v139 = vld [vmem:[%s4 + $0x18] sm:$0xff]
  %v140 = vld [vmem:[%s4 + $0x20] sm:$0xff]
  %v141 = vld [vmem:[%s4 + $0x28] sm:$0xff]
  %v142 = vld [vmem:[%s4 + $0x30] sm:$0xff]
  %v143 = vld [vmem:[%s4 + $0x38] sm:$0xff]
  %v144 = vld [vmem:[%s4 + $0x40] sm:$0xff]
  %v145 = vld [vmem:[%s4 + $0x48] sm:$0xff]
  %v146 = vld [vmem:[%s4 + $0x50] sm:$0xff]
  %v147 = vld [vmem:[%s4 + $0x58] sm:$0xff]
  %v148 = vld [vmem:[%s4 + $0x60] sm:$0xff]
  %v149 = vld [vmem:[%s4 + $0x68] sm:$0xff]
  %v150 = vld [vmem:[%s4 + $0x70] sm:$0xff]
  %v151 = vld [vmem:[%s4 + $0x78] sm:$0xff]
  %v152 = vld [vmem:[%s5] sm:$0x3]
  %v154 = vlaneseq
  %v155 = vshrl.u32 %v154, 7
  %v156 = vsub.s32 0, %v155
  %v157 = vrot.slane %v152, %v156
  %v158 = vlaneseq
  %v159 = vshrl.u32 %v158, 7
  %v160 = vsub.s32 1, %v159
  %v161 = vrot.slane %v152, %v160
  %v180 = vunpack.c.l.b16 %v136
  %v181 = vunpack.c.h.b16 %v136
  %v182 = vunpack.c.l.b16 %v137
  %v183 = vunpack.c.h.b16 %v137
  %v184 = vunpack.c.l.b16 %v138
  %v185 = vunpack.c.h.b16 %v138
  %v186 = vunpack.c.l.b16 %v139
  %v187 = vunpack.c.h.b16 %v139
  %v188 = vunpack.c.l.b16 %v140
  %v189 = vunpack.c.h.b16 %v140
  %v190 = vunpack.c.l.b16 %v141
  %v191 = vunpack.c.h.b16 %v141
  %v192 = vunpack.c.l.b16 %v142
  %v193 = vunpack.c.h.b16 %v142
  %v194 = vunpack.c.l.b16 %v143
  %v195 = vunpack.c.h.b16 %v143
  %v196 = vunpack.c.l.b16 %v144
  %v197 = vunpack.c.h.b16 %v144
  %v198 = vunpack.c.l.b16 %v145
  %v199 = vunpack.c.h.b16 %v145
  %v200 = vunpack.c.l.b16 %v146
  %v201 = vunpack.c.h.b16 %v146
  %v202 = vunpack.c.l.b16 %v147
  %v203 = vunpack.c.h.b16 %v147
  %v204 = vunpack.c.l.b16 %v148
  %v205 = vunpack.c.h.b16 %v148
  %v206 = vunpack.c.l.b16 %v149
  %v207 = vunpack.c.h.b16 %v149
  %v208 = vunpack.c.l.b16 %v150
  %v209 = vunpack.c.h.b16 %v150
  %v210 = vunpack.c.l.b16 %v151
  %v211 = vunpack.c.h.b16 %v151
  %v212 = vpack.c.b16 %v182, %v180
  %v213 = vpack.c.b16 %v183, %v181
  %v214 = vpack.c.b16 %v186, %v184
  %v215 = vpack.c.b16 %v187, %v185
  %v216 = vpack.c.b16 %v190, %v188
  %v217 = vpack.c.b16 %v191, %v189
  %v218 = vpack.c.b16 %v194, %v192
  %v219 = vpack.c.b16 %v195, %v193
  %v220 = vpack.c.b16 %v198, %v196
  %v221 = vpack.c.b16 %v199, %v197
  %v222 = vpack.c.b16 %v202, %v200
  %v223 = vpack.c.b16 %v203, %v201
  %v224 = vpack.c.b16 %v206, %v204
  %v225 = vpack.c.b16 %v207, %v205
  %v226 = vpack.c.b16 %v210, %v208
  %v227 = vpack.c.b16 %v211, %v209
  %244 = vmatprep.subr.bf16.mxu0 %v213
  %245 = vmatpush1.bf16.msra.mxu0 %v212
  %246 = vmatprep.subr.bf16.mxu0 %v215
  %247 = vmatpush1.bf16.msra.mxu0 %v214
  %248 = vmatprep.subr.bf16.mxu0 %v217
  %249 = vmatpush1.bf16.msra.mxu0 %v216
  %250 = vmatprep.subr.bf16.mxu0 %v219
  %251 = vmatpush1.bf16.msra.mxu0 %v218
  %252 = vmatprep.subr.bf16.mxu0 %v221
  %253 = vmatpush1.bf16.msra.mxu0 %v220
  %254 = vmatprep.subr.bf16.mxu0 %v223
  %255 = vmatpush1.bf16.msra.mxu0 %v222
  %256 = vmatprep.subr.bf16.mxu0 %v225
  %257 = vmatpush1.bf16.msra.mxu0 %v224
  %258 = vmatprep.subr.bf16.mxu0 %v227
  %259 = vmatpush1.bf16.msra.mxu0 %v226
  %260 = vmatprep.subr.bf16.mxu0 0
  %261 = vmatpush1.bf16.msra.mxu0 0
  %262 = vmatprep.subr.bf16.mxu0 0
  %263 = vmatpush1.bf16.msra.mxu0 0
  %264 = vmatprep.subr.bf16.mxu0 0
  %265 = vmatpush1.bf16.msra.mxu0 0
  %266 = vmatprep.subr.bf16.mxu0 0
  %267 = vmatpush1.bf16.msra.mxu0 0
  %268 = vmatprep.subr.bf16.mxu0 0
  %269 = vmatpush1.bf16.msra.mxu0 0
  %270 = vmatprep.subr.bf16.mxu0 0
  %271 = vmatpush1.bf16.msra.mxu0 0
  %272 = vmatprep.subr.bf16.mxu0 0
  %273 = vmatpush1.bf16.msra.mxu0 0
  %274 = vmatprep.subr.bf16.mxu0 0
  %275 = vmatpush1.bf16.msra.mxu0 0
  %276 = vmatprep.mubr.bf16.mxu0 0
  %277 = vmatmul.mubr.bf16.gmra.mrb[0].mxu0 %v135
  %v278 = vpop.f32.mrb[0].mxu0
  %v279 = vadd.f32 %v157, %v278
  %v280 = vpop.f32.mrb[0].mxu0
  %v281 = vadd.f32 %v161, %v280
  %v282 = vpop.f32.mrb[0].mxu0
  %v283 = vpop.f32.mrb[0].mxu0
  %284 = vdwg.mxu0
  %v285 = vpack.c.bf16 %v279, %v279
  %v286 = vpack.c.bf16 %v281, %v281
  %v287 = vld [vmem:[%s6] sm:$0xff]
  %v288 = vld [vmem:[%s6 + $0x8] sm:$0xff]
  %v289 = vld [vmem:[%s6 + $0x10] sm:$0xff]
  %v290 = vld [vmem:[%s6 + $0x18] sm:$0xff]
  %v291 = vld [vmem:[%s6 + $0x20] sm:$0xff]
  %v292 = vld [vmem:[%s6 + $0x28] sm:$0xff]
  %v293 = vld [vmem:[%s6 + $0x30] sm:$0xff]
  %v294 = vld [vmem:[%s6 + $0x38] sm:$0xff]
  %v295 = vld [vmem:[%s6 + $0x40] sm:$0xff]
  %v296 = vld [vmem:[%s6 + $0x48] sm:$0xff]
  %v297 = vld [vmem:[%s6 + $0x50] sm:$0xff]
  %v298 = vld [vmem:[%s6 + $0x58] sm:$0xff]
  %v299 = vld [vmem:[%s6 + $0x60] sm:$0xff]
  %v300 = vld [vmem:[%s6 + $0x68] sm:$0xff]
  %v301 = vld [vmem:[%s6 + $0x70] sm:$0xff]
  %v302 = vld [vmem:[%s6 + $0x78] sm:$0xff]
  %v303 = vld [vmem:[%s6 + $0x80] sm:$0xff]
  %v304 = vld [vmem:[%s6 + $0x88] sm:$0xff]
  %v305 = vld [vmem:[%s6 + $0x90] sm:$0xff]
  %v306 = vld [vmem:[%s6 + $0x98] sm:$0xff]
  %v307 = vld [vmem:[%s6 + $0xa0] sm:$0xff]
  %v308 = vld [vmem:[%s6 + $0xa8] sm:$0xff]
  %v309 = vld [vmem:[%s6 + $0xb0] sm:$0xff]
  %v310 = vld [vmem:[%s6 + $0xb8] sm:$0xff]
  %v311 = vld [vmem:[%s6 + $0xc0] sm:$0xff]
  %v312 = vld [vmem:[%s6 + $0xc8] sm:$0xff]
  %v313 = vld [vmem:[%s6 + $0xd0] sm:$0xff]
  %v314 = vld [vmem:[%s6 + $0xd8] sm:$0xff]
  %v315 = vld [vmem:[%s6 + $0xe0] sm:$0xff]
  %v316 = vld [vmem:[%s6 + $0xe8] sm:$0xff]
  %v317 = vld [vmem:[%s6 + $0xf0] sm:$0xff]
  %v318 = vld [vmem:[%s6 + $0xf8] sm:$0xff]
  %v319 = vld [vmem:[%s7] sm:$0x3]
  %v321 = vlaneseq
  %v322 = vshrl.u32 %v321, 7
  %v323 = vsub.s32 0, %v322
  %v324 = vrot.slane %v319, %v323
  %v325 = vlaneseq
  %v326 = vshrl.u32 %v325, 7
  %v327 = vsub.s32 1, %v326
  %v328 = vrot.slane %v319, %v327
  %v363 = vunpack.c.l.b16 %v287
  %v364 = vunpack.c.h.b16 %v287
  %v365 = vunpack.c.l.b16 %v288
  %v366 = vunpack.c.h.b16 %v288
  %v367 = vunpack.c.l.b16 %v289
  %v368 = vunpack.c.h.b16 %v289
  %v369 = vunpack.c.l.b16 %v290
  %v370 = vunpack.c.h.b16 %v290
  %v371 = vunpack.c.l.b16 %v291
  %v372 = vunpack.c.h.b16 %v291
  %v373 = vunpack.c.l.b16 %v292
  %v374 = vunpack.c.h.b16 %v292
  %v375 = vunpack.c.l.b16 %v293
  %v376 = vunpack.c.h.b16 %v293
  %v377 = vunpack.c.l.b16 %v294
  %v378 = vunpack.c.h.b16 %v294
  %v379 = vunpack.c.l.b16 %v295
  %v380 = vunpack.c.h.b16 %v295
  %v381 = vunpack.c.l.b16 %v296
  %v382 = vunpack.c.h.b16 %v296
  %v383 = vunpack.c.l.b16 %v297
  %v384 = vunpack.c.h.b16 %v297
  %v385 = vunpack.c.l.b16 %v298
  %v386 = vunpack.c.h.b16 %v298
  %v387 = vunpack.c.l.b16 %v299
  %v388 = vunpack.c.h.b16 %v299
  %v389 = vunpack.c.l.b16 %v300
  %v390 = vunpack.c.h.b16 %v300
  %v391 = vunpack.c.l.b16 %v301
  %v392 = vunpack.c.h.b16 %v301
  %v393 = vunpack.c.l.b16 %v302
  %v394 = vunpack.c.h.b16 %v302
  %v395 = vunpack.c.l.b16 %v303
  %v396 = vunpack.c.h.b16 %v303
  %v397 = vunpack.c.l.b16 %v304
  %v398 = vunpack.c.h.b16 %v304
  %v399 = vunpack.c.l.b16 %v305
  %v400 = vunpack.c.h.b16 %v305
  %v401 = vunpack.c.l.b16 %v306
  %v402 = vunpack.c.h.b16 %v306
  %v403 = vunpack.c.l.b16 %v307
  %v404 = vunpack.c.h.b16 %v307
  %v405 = vunpack.c.l.b16 %v308
  %v406 = vunpack.c.h.b16 %v308
  %v407 = vunpack.c.l.b16 %v309
  %v408 = vunpack.c.h.b16 %v309
  %v409 = vunpack.c.l.b16 %v310
  %v410 = vunpack.c.h.b16 %v310
  %v411 = vunpack.c.l.b16 %v311
  %v412 = vunpack.c.h.b16 %v311
  %v413 = vunpack.c.l.b16 %v312
  %v414 = vunpack.c.h.b16 %v312
  %v415 = vunpack.c.l.b16 %v313
  %v416 = vunpack.c.h.b16 %v313
  %v417 = vunpack.c.l.b16 %v314
  %v418 = vunpack.c.h.b16 %v314
  %v419 = vunpack.c.l.b16 %v315
  %v420 = vunpack.c.h.b16 %v315
  %v421 = vunpack.c.l.b16 %v316
  %v422 = vunpack.c.h.b16 %v316
  %v423 = vunpack.c.l.b16 %v317
  %v424 = vunpack.c.h.b16 %v317
  %v425 = vunpack.c.l.b16 %v318
  %v426 = vunpack.c.h.b16 %v318
  %v427 = vpack.c.b16 %v365, %v363
  %v428 = vpack.c.b16 %v366, %v364
  %v429 = vpack.c.b16 %v369, %v367
  %v430 = vpack.c.b16 %v370, %v368
  %v431 = vpack.c.b16 %v373, %v371
  %v432 = vpack.c.b16 %v374, %v372
  %v433 = vpack.c.b16 %v377, %v375
  %v434 = vpack.c.b16 %v378, %v376
  %v435 = vpack.c.b16 %v381, %v379
  %v436 = vpack.c.b16 %v382, %v380
  %v437 = vpack.c.b16 %v385, %v383
  %v438 = vpack.c.b16 %v386, %v384
  %v439 = vpack.c.b16 %v389, %v387
  %v440 = vpack.c.b16 %v390, %v388
  %v441 = vpack.c.b16 %v393, %v391
  %v442 = vpack.c.b16 %v394, %v392
  %v443 = vpack.c.b16 %v397, %v395
  %v444 = vpack.c.b16 %v398, %v396
  %v445 = vpack.c.b16 %v401, %v399
  %v446 = vpack.c.b16 %v402, %v400
  %v447 = vpack.c.b16 %v405, %v403
  %v448 = vpack.c.b16 %v406, %v404
  %v449 = vpack.c.b16 %v409, %v407
  %v450 = vpack.c.b16 %v410, %v408
  %v451 = vpack.c.b16 %v413, %v411
  %v452 = vpack.c.b16 %v414, %v412
  %v453 = vpack.c.b16 %v417, %v415
  %v454 = vpack.c.b16 %v418, %v416
  %v455 = vpack.c.b16 %v421, %v419
  %v456 = vpack.c.b16 %v422, %v420
  %v457 = vpack.c.b16 %v425, %v423
  %v458 = vpack.c.b16 %v426, %v424
  %491 = vmatprep.subr.bf16.mxu0 %v428
  %492 = vmatpush1.bf16.msra.mxu0 %v427
  %493 = vmatprep.subr.bf16.mxu0 %v430
  %494 = vmatpush1.bf16.msra.mxu0 %v429
  %495 = vmatprep.subr.bf16.mxu0 %v432
  %496 = vmatpush1.bf16.msra.mxu0 %v431
  %497 = vmatprep.subr.bf16.mxu0 %v434
  %498 = vmatpush1.bf16.msra.mxu0 %v433
  %499 = vmatprep.subr.bf16.mxu0 %v436
  %500 = vmatpush1.bf16.msra.mxu0 %v435
  %501 = vmatprep.subr.bf16.mxu0 %v438
  %502 = vmatpush1.bf16.msra.mxu0 %v437
  %503 = vmatprep.subr.bf16.mxu0 %v440
  %504 = vmatpush1.bf16.msra.mxu0 %v439
  %505 = vmatprep.subr.bf16.mxu0 %v442
  %506 = vmatpush1.bf16.msra.mxu0 %v441
  %507 = vmatprep.subr.bf16.mxu0 %v444
  %508 = vmatpush1.bf16.msra.mxu0 %v443
  %509 = vmatprep.subr.bf16.mxu0 %v446
  %510 = vmatpush1.bf16.msra.mxu0 %v445
  %511 = vmatprep.subr.bf16.mxu0 %v448
  %512 = vmatpush1.bf16.msra.mxu0 %v447
  %513 = vmatprep.subr.bf16.mxu0 %v450
  %514 = vmatpush1.bf16.msra.mxu0 %v449
  %515 = vmatprep.subr.bf16.mxu0 %v452
  %516 = vmatpush1.bf16.msra.mxu0 %v451
  %517 = vmatprep.subr.bf16.mxu0 %v454
  %518 = vmatpush1.bf16.msra.mxu0 %v453
  %519 = vmatprep.subr.bf16.mxu0 %v456
  %520 = vmatpush1.bf16.msra.mxu0 %v455
  %521 = vmatprep.subr.bf16.mxu0 %v458
  %522 = vmatpush1.bf16.msra.mxu0 %v457
  %523 = vmatprep.mubr.bf16.mxu0 %v286
  %524 = vmatmul.mubr.bf16.gmra.mrb[0].mxu0 %v285
  %v525 = vpop.f32.mrb[0].mxu0
  %v526 = vadd.f32 %v324, %v525
  %v527 = vpop.f32.mrb[0].mxu0
  %v528 = vadd.f32 %v328, %v527
  %v529 = vpop.f32.mrb[0].mxu0
  %v530 = vpop.f32.mrb[0].mxu0
  %531 = vdwg.mxu0
  %v532 = vadd.s32 %v58, 8
  %v533 = vadd.s32 %v58, 16
  %v534 = vadd.s32 %v58, 24
  %v535 = vadd.s32 %v58, 32
  %v536 = vadd.s32 %v58, 40
  %v537 = vadd.s32 %v58, 48
  %v538 = vadd.s32 %v58, 56
  %v539 = vadd.s32 %v58, 64
  %v540 = vadd.s32 %v58, 72
  %v541 = vadd.s32 %v58, 80
  %v542 = vadd.s32 %v58, 88
  %v543 = vadd.s32 %v58, 96
  %v544 = vadd.s32 %v58, 104
  %v545 = vadd.s32 %v58, 112
  %v546 = vadd.s32 %v58, 120
  %v547 = vadd.s32 %v58, 128
  %v548 = vadd.s32 %v58, 136
  %v549 = vadd.s32 %v58, 144
  %v550 = vadd.s32 %v58, 152
  %v551 = vadd.s32 %v58, 160
  %v552 = vadd.s32 %v58, 168
  %v553 = vadd.s32 %v58, 176
  %v554 = vadd.s32 %v58, 184
  %v555 = vadd.s32 %v58, 192
  %v556 = vadd.s32 %v58, 200
  %v557 = vadd.s32 %v58, 208
  %v558 = vadd.s32 %v58, 216
  %v559 = vadd.s32 %v58, 224
  %v560 = vadd.s32 %v58, 232
  %v561 = vadd.s32 %v58, 240
  %v562 = vadd.s32 %v58, 248
  %v563 = vlaneseq
  %v564 = vand.u32 %v563, 127
  %v565 = vmul.u32 %v564, 16
  %vm566 = vcmp.ge.s32.totalorder %v58, %v565
  %vm567 = vcmp.ge.s32.totalorder %v532, %v565
  %vm568 = vcmp.ge.s32.totalorder %v533, %v565
  %vm569 = vcmp.ge.s32.totalorder %v534, %v565
  %vm570 = vcmp.ge.s32.totalorder %v535, %v565
  %vm571 = vcmp.ge.s32.totalorder %v536, %v565
  %vm572 = vcmp.ge.s32.totalorder %v537, %v565
  %vm573 = vcmp.ge.s32.totalorder %v538, %v565
  %vm574 = vcmp.ge.s32.totalorder %v539, %v565
  %vm575 = vcmp.ge.s32.totalorder %v540, %v565
  %vm576 = vcmp.ge.s32.totalorder %v541, %v565
  %vm577 = vcmp.ge.s32.totalorder %v542, %v565
  %vm578 = vcmp.ge.s32.totalorder %v543, %v565
  %vm579 = vcmp.ge.s32.totalorder %v544, %v565
  %vm580 = vcmp.ge.s32.totalorder %v545, %v565
  %vm581 = vcmp.ge.s32.totalorder %v546, %v565
  %vm582 = vcmp.ge.s32.totalorder %v547, %v565
  %vm583 = vcmp.ge.s32.totalorder %v548, %v565
  %vm584 = vcmp.ge.s32.totalorder %v549, %v565
  %vm585 = vcmp.ge.s32.totalorder %v550, %v565
  %vm586 = vcmp.ge.s32.totalorder %v551, %v565
  %vm587 = vcmp.ge.s32.totalorder %v552, %v565
  %vm588 = vcmp.ge.s32.totalorder %v553, %v565
  %vm589 = vcmp.ge.s32.totalorder %v554, %v565
  %vm590 = vcmp.ge.s32.totalorder %v555, %v565
  %vm591 = vcmp.ge.s32.totalorder %v556, %v565
  %vm592 = vcmp.ge.s32.totalorder %v557, %v565
  %vm593 = vcmp.ge.s32.totalorder %v558, %v565
  %vm594 = vcmp.ge.s32.totalorder %v559, %v565
  %vm595 = vcmp.ge.s32.totalorder %v560, %v565
  %vm596 = vcmp.ge.s32.totalorder %v561, %v565
  %vm597 = vcmp.ge.s32.totalorder %v562, %v565
  %v598 = vadd.s32 %v564, 1
  %v599 = vmul.u32 %v598, 16
  %vm600 = vcmp.lt.s32.totalorder %v58, %v599
  %vm601 = vcmp.lt.s32.totalorder %v532, %v599
  %vm602 = vcmp.lt.s32.totalorder %v533, %v599
  %vm603 = vcmp.lt.s32.totalorder %v534, %v599
  %vm604 = vcmp.lt.s32.totalorder %v535, %v599
  %vm605 = vcmp.lt.s32.totalorder %v536, %v599
  %vm606 = vcmp.lt.s32.totalorder %v537, %v599
  %vm607 = vcmp.lt.s32.totalorder %v538, %v599
  %vm608 = vcmp.lt.s32.totalorder %v539, %v599
  %vm609 = vcmp.lt.s32.totalorder %v540, %v599
  %vm610 = vcmp.lt.s32.totalorder %v541, %v599
  %vm611 = vcmp.lt.s32.totalorder %v542, %v599
  %vm612 = vcmp.lt.s32.totalorder %v543, %v599
  %vm613 = vcmp.lt.s32.totalorder %v544, %v599
  %vm614 = vcmp.lt.s32.totalorder %v545, %v599
  %vm615 = vcmp.lt.s32.totalorder %v546, %v599
  %vm616 = vcmp.lt.s32.totalorder %v547, %v599
  %vm617 = vcmp.lt.s32.totalorder %v548, %v599
  %vm618 = vcmp.lt.s32.totalorder %v549, %v599
  %vm619 = vcmp.lt.s32.totalorder %v550, %v599
  %vm620 = vcmp.lt.s32.totalorder %v551, %v599
  %vm621 = vcmp.lt.s32.totalorder %v552, %v599
  %vm622 = vcmp.lt.s32.totalorder %v553, %v599
  %vm623 = vcmp.lt.s32.totalorder %v554, %v599
  %vm624 = vcmp.lt.s32.totalorder %v555, %v599
  %vm625 = vcmp.lt.s32.totalorder %v556, %v599
  %vm626 = vcmp.lt.s32.totalorder %v557, %v599
  %vm627 = vcmp.lt.s32.totalorder %v558, %v599
  %vm628 = vcmp.lt.s32.totalorder %v559, %v599
  %vm629 = vcmp.lt.s32.totalorder %v560, %v599
  %vm630 = vcmp.lt.s32.totalorder %v561, %v599
  %vm631 = vcmp.lt.s32.totalorder %v562, %v599
  %vm632 = vmand %vm566, %vm600
  %vm633 = vmand %vm567, %vm601
  %vm634 = vmand %vm568, %vm602
  %vm635 = vmand %vm569, %vm603
  %vm636 = vmand %vm570, %vm604
  %vm637 = vmand %vm571, %vm605
  %vm638 = vmand %vm572, %vm606
  %vm639 = vmand %vm573, %vm607
  %vm640 = vmand %vm574, %vm608
  %vm641 = vmand %vm575, %vm609
  %vm642 = vmand %vm576, %vm610
  %vm643 = vmand %vm577, %vm611
  %vm644 = vmand %vm578, %vm612
  %vm645 = vmand %vm579, %vm613
  %vm646 = vmand %vm580, %vm614
  %vm647 = vmand %vm581, %vm615
  %vm648 = vmand %vm582, %vm616
  %vm649 = vmand %vm583, %vm617
  %vm650 = vmand %vm584, %vm618
  %vm651 = vmand %vm585, %vm619
  %vm652 = vmand %vm586, %vm620
  %vm653 = vmand %vm587, %vm621
  %vm654 = vmand %vm588, %vm622
  %vm655 = vmand %vm589, %vm623
  %vm656 = vmand %vm590, %vm624
  %vm657 = vmand %vm591, %vm625
  %vm658 = vmand %vm592, %vm626
  %vm659 = vmand %vm593, %vm627
  %vm660 = vmand %vm594, %vm628
  %vm661 = vmand %vm595, %vm629
  %vm662 = vmand %vm596, %vm630
  %vm663 = vmand %vm597, %vm631
  %v664 = vsel %vm632, 1, 0
  %v665 = vsel %vm633, 1, 0
  %v666 = vsel %vm634, 1, 0
  %v667 = vsel %vm635, 1, 0
  %v668 = vsel %vm636, 1, 0
  %v669 = vsel %vm637, 1, 0
  %v670 = vsel %vm638, 1, 0
  %v671 = vsel %vm639, 1, 0
  %v672 = vsel %vm640, 1, 0
  %v673 = vsel %vm641, 1, 0
  %v674 = vsel %vm642, 1, 0
  %v675 = vsel %vm643, 1, 0
  %v676 = vsel %vm644, 1, 0
  %v677 = vsel %vm645, 1, 0
  %v678 = vsel %vm646, 1, 0
  %v679 = vsel %vm647, 1, 0
  %v680 = vsel %vm648, 1, 0
  %v681 = vsel %vm649, 1, 0
  %v682 = vsel %vm650, 1, 0
  %v683 = vsel %vm651, 1, 0
  %v684 = vsel %vm652, 1, 0
  %v685 = vsel %vm653, 1, 0
  %v686 = vsel %vm654, 1, 0
  %v687 = vsel %vm655, 1, 0
  %v688 = vsel %vm656, 1, 0
  %v689 = vsel %vm657, 1, 0
  %v690 = vsel %vm658, 1, 0
  %v691 = vsel %vm659, 1, 0
  %v692 = vsel %vm660, 1, 0
  %v693 = vsel %vm661, 1, 0
  %v694 = vsel %vm662, 1, 0
  %v695 = vsel %vm663, 1, 0
  %v696 = vcvt.s32.f32 %v664
  %v697 = vcvt.s32.f32 %v665
  %v698 = vcvt.s32.f32 %v666
  %v699 = vcvt.s32.f32 %v667
  %v700 = vcvt.s32.f32 %v668
  %v701 = vcvt.s32.f32 %v669
  %v702 = vcvt.s32.f32 %v670
  %v703 = vcvt.s32.f32 %v671
  %v704 = vcvt.s32.f32 %v672
  %v705 = vcvt.s32.f32 %v673
  %v706 = vcvt.s32.f32 %v674
  %v707 = vcvt.s32.f32 %v675
  %v708 = vcvt.s32.f32 %v676
  %v709 = vcvt.s32.f32 %v677
  %v710 = vcvt.s32.f32 %v678
  %v711 = vcvt.s32.f32 %v679
  %v712 = vcvt.s32.f32 %v680
  %v713 = vcvt.s32.f32 %v681
  %v714 = vcvt.s32.f32 %v682
  %v715 = vcvt.s32.f32 %v683
  %v716 = vcvt.s32.f32 %v684
  %v717 = vcvt.s32.f32 %v685
  %v718 = vcvt.s32.f32 %v686
  %v719 = vcvt.s32.f32 %v687
  %v720 = vcvt.s32.f32 %v688
  %v721 = vcvt.s32.f32 %v689
  %v722 = vcvt.s32.f32 %v690
  %v723 = vcvt.s32.f32 %v691
  %v724 = vcvt.s32.f32 %v692
  %v725 = vcvt.s32.f32 %v693
  %v726 = vcvt.s32.f32 %v694
  %v727 = vcvt.s32.f32 %v695
  %v728 = vadd.s32 %v564, 128
  %v729 = vmul.u32 %v58, 16
  %v730 = vmul.u32 %v532, 16
  %vm731 = vcmp.ge.s32.totalorder %v564, %v729
  %vm732 = vcmp.ge.s32.totalorder %v728, %v729
  %vm733 = vcmp.ge.s32.totalorder %v564, %v730
  %vm734 = vcmp.ge.s32.totalorder %v728, %v730
  %v735 = vadd.s32 %v58, 1
  %v736 = vadd.s32 %v532, 1
  %v737 = vmul.u32 %v735, 16
  %v738 = vmul.u32 %v736, 16
  %vm739 = vcmp.lt.s32.totalorder %v564, %v737
  %vm740 = vcmp.lt.s32.totalorder %v728, %v737
  %vm741 = vcmp.lt.s32.totalorder %v564, %v738
  %vm742 = vcmp.lt.s32.totalorder %v728, %v738
  %vm743 = vmand %vm731, %vm739
  %vm744 = vmand %vm732, %vm740
  %vm745 = vmand %vm733, %vm741
  %vm746 = vmand %vm734, %vm742
  %v747 = vsel %vm743, 1, 0
  %v748 = vsel %vm744, 1, 0
  %v749 = vsel %vm745, 1, 0
  %v750 = vsel %vm746, 1, 0
  %v751 = vcvt.s32.f32 %v747
  %v752 = vcvt.s32.f32 %v748
  %v753 = vcvt.s32.f32 %v749
  %v754 = vcvt.s32.f32 %v750
  %s755 = smul.f32 %s56, 16.0
  %v756 = vstv %s755
  %v757 = vrcp.pop %v756
  %s758 = vtos %v757
  %v759 = vmul.f32 %v526, %v62
  %v760 = vmul.f32 %v528, %v62
  %v761 = vrot.slane %v759, 4
  %v762 = vadd.f32 %v759, %v761
  %v763 = vrot.slane %v762, 2
  %v764 = vadd.f32 %v762, %v763
  %v765 = vrot.slane %v764, 1
  %v766 = vadd.f32 %v764, %v765
  %v767 = vrot.slane %v760, 4
  %v768 = vadd.f32 %v760, %v767
  %v769 = vrot.slane %v768, 2
  %v770 = vadd.f32 %v768, %v769
  %v771 = vrot.slane %v770, 1
  %v772 = vadd.f32 %v770, %v771
  %773 = vmatprep.subr.mxu0 0.0
  %774 = vmatpush1.msra.mxu0 %v696
  %775 = vmatprep.subr.mxu0 0.0
  %776 = vmatpush1.msra.mxu0 %v697
  %777 = vmatprep.subr.mxu0 0.0
  %778 = vmatpush1.msra.mxu0 %v698
  %779 = vmatprep.subr.mxu0 0.0
  %780 = vmatpush1.msra.mxu0 %v699
  %781 = vmatprep.subr.mxu0 0.0
  %782 = vmatpush1.msra.mxu0 %v700
  %783 = vmatprep.subr.mxu0 0.0
  %784 = vmatpush1.msra.mxu0 %v701
  %785 = vmatprep.subr.mxu0 0.0
  %786 = vmatpush1.msra.mxu0 %v702
  %787 = vmatprep.subr.mxu0 0.0
  %788 = vmatpush1.msra.mxu0 %v703
  %789 = vmatprep.subr.mxu0 0.0
  %790 = vmatpush1.msra.mxu0 %v704
  %791 = vmatprep.subr.mxu0 0.0
  %792 = vmatpush1.msra.mxu0 %v705
  %793 = vmatprep.subr.mxu0 0.0
  %794 = vmatpush1.msra.mxu0 %v706
  %795 = vmatprep.subr.mxu0 0.0
  %796 = vmatpush1.msra.mxu0 %v707
  %797 = vmatprep.subr.mxu0 0.0
  %798 = vmatpush1.msra.mxu0 %v708
  %799 = vmatprep.subr.mxu0 0.0
  %800 = vmatpush1.msra.mxu0 %v709
  %801 = vmatprep.subr.mxu0 0.0
  %802 = vmatpush1.msra.mxu0 %v710
  %803 = vmatprep.subr.mxu0 0.0
  %804 = vmatpush1.msra.mxu0 %v711
  %805 = vmatprep.subr.mxu0 0.0
  %806 = vmatpush1.msra.mxu0 %v712
  %807 = vmatprep.subr.mxu0 0.0
  %808 = vmatpush1.msra.mxu0 %v713
  %809 = vmatprep.subr.mxu0 0.0
  %810 = vmatpush1.msra.mxu0 %v714
  %811 = vmatprep.subr.mxu0 0.0
  %812 = vmatpush1.msra.mxu0 %v715
  %813 = vmatprep.subr.mxu0 0.0
  %814 = vmatpush1.msra.mxu0 %v716
  %815 = vmatprep.subr.mxu0 0.0
  %816 = vmatpush1.msra.mxu0 %v717
  %817 = vmatprep.subr.mxu0 0.0
  %818 = vmatpush1.msra.mxu0 %v718
  %819 = vmatprep.subr.mxu0 0.0
  %820 = vmatpush1.msra.mxu0 %v719
  %821 = vmatprep.subr.mxu0 0.0
  %822 = vmatpush1.msra.mxu0 %v720
  %823 = vmatprep.subr.mxu0 0.0
  %824 = vmatpush1.msra.mxu0 %v721
  %825 = vmatprep.subr.mxu0 0.0
  %826 = vmatpush1.msra.mxu0 %v722
  %827 = vmatprep.subr.mxu0 0.0
  %828 = vmatpush1.msra.mxu0 %v723
  %829 = vmatprep.subr.mxu0 0.0
  %830 = vmatpush1.msra.mxu0 %v724
  %831 = vmatprep.subr.mxu0 0.0
  %832 = vmatpush1.msra.mxu0 %v725
  %833 = vmatprep.subr.mxu0 0.0
  %834 = vmatpush1.msra.mxu0 %v726
  %835 = vmatprep.subr.mxu0 0.0
  %836 = vmatpush1.msra.mxu0 %v727
  %837 = vmatprep.mubr.f32.mxu0 %v772
  %838 = vmatmul.mubr.f32.gmra.mrb[0].mxu0 %v766
  %v839 = vpop.f32.mrb[0].mxu0
  %v840 = vadd.f32 0.0, %v839
  %v841 = vpop.f32.mrb[0].mxu0
  %842 = vdwg.mxu0
  %v843 = vstv %s758
  %v844 = vmul.f32 %v840, %v843
  %vm845 = vcmask 130048
  %v847 = vsel %vm845, %v844, 0
  %849 = vmatprep.subr.mxu0 %v752
  %850 = vmatpush1.msra.mxu0 %v751
  %851 = vmatprep.subr.mxu0 %v754
  %852 = vmatpush1.msra.mxu0 %v753
  %853 = vmatprep.subr.mxu0 0.0
  %854 = vmatpush1.msra.mxu0 0.0
  %855 = vmatprep.subr.mxu0 0.0
  %856 = vmatpush1.msra.mxu0 0.0
  %857 = vmatprep.subr.mxu0 0.0
  %858 = vmatpush1.msra.mxu0 0.0
  %859 = vmatprep.subr.mxu0 0.0
  %860 = vmatpush1.msra.mxu0 0.0
  %861 = vmatprep.subr.mxu0 0.0
  %862 = vmatpush1.msra.mxu0 0.0
  %863 = vmatprep.subr.mxu0 0.0
  %864 = vmatpush1.msra.mxu0 0.0
  %865 = vmatprep.subr.mxu0 0.0
  %866 = vmatpush1.msra.mxu0 0.0
  %867 = vmatprep.subr.mxu0 0.0
  %868 = vmatpush1.msra.mxu0 0.0
  %869 = vmatprep.subr.mxu0 0.0
  %870 = vmatpush1.msra.mxu0 0.0
  %871 = vmatprep.subr.mxu0 0.0
  %872 = vmatpush1.msra.mxu0 0.0
  %873 = vmatprep.subr.mxu0 0.0
  %874 = vmatpush1.msra.mxu0 0.0
  %875 = vmatprep.subr.mxu0 0.0
  %876 = vmatpush1.msra.mxu0 0.0
  %877 = vmatprep.subr.mxu0 0.0
  %878 = vmatpush1.msra.mxu0 0.0
  %879 = vmatprep.subr.mxu0 0.0
  %880 = vmatpush1.msra.mxu0 0.0
  %881 = vmatprep.subr.mxu0 0.0
  %882 = vmatpush1.msra.mxu0 0.0
  %883 = vmatprep.subr.mxu0 0.0
  %884 = vmatpush1.msra.mxu0 0.0
  %885 = vmatprep.subr.mxu0 0.0
  %886 = vmatpush1.msra.mxu0 0.0
  %887 = vmatprep.subr.mxu0 0.0
  %888 = vmatpush1.msra.mxu0 0.0
  %889 = vmatprep.subr.mxu0 0.0
  %890 = vmatpush1.msra.mxu0 0.0
  %891 = vmatprep.subr.mxu0 0.0
  %892 = vmatpush1.msra.mxu0 0.0
  %893 = vmatprep.subr.mxu0 0.0
  %894 = vmatpush1.msra.mxu0 0.0
  %895 = vmatprep.subr.mxu0 0.0
  %896 = vmatpush1.msra.mxu0 0.0
  %897 = vmatprep.subr.mxu0 0.0
  %898 = vmatpush1.msra.mxu0 0.0
  %899 = vmatprep.subr.mxu0 0.0
  %900 = vmatpush1.msra.mxu0 0.0
  %901 = vmatprep.subr.mxu0 0.0
  %902 = vmatpush1.msra.mxu0 0.0
  %903 = vmatprep.subr.mxu0 0.0
  %904 = vmatpush1.msra.mxu0 0.0
  %905 = vmatprep.subr.mxu0 0.0
  %906 = vmatpush1.msra.mxu0 0.0
  %907 = vmatprep.subr.mxu0 0.0
  %908 = vmatpush1.msra.mxu0 0.0
  %909 = vmatprep.subr.mxu0 0.0
  %910 = vmatpush1.msra.mxu0 0.0
  %911 = vmatprep.subr.mxu0 0.0
  %912 = vmatpush1.msra.mxu0 0.0
  %913 = vmatprep.mubr.f32.mxu0 0.0
  %914 = vmatmul.mubr.f32.gmra.mrb[0].mxu0 %v847
  %v915 = vpop.f32.mrb[0].mxu0
  %v916 = vadd.f32 0.0, %v915
  %v917 = vpop.f32.mrb[0].mxu0
  %v918 = vadd.f32 0.0, %v917
  %919 = vdwg.mxu0
  %v920 = vlaneseq
  %v921 = vshrl.u32 %v920, 7
  %v922 = vsub.s32 0, %v921
  %v923 = vrot.slane %v916, %v922
  %v924 = vlaneseq
  %v925 = vshrl.u32 %v924, 7
  %v926 = vsub.s32 0, %v925
  %v927 = vrot.slane %v918, %v926
  %v928 = vsub.f32 %v526, %v923
  %v929 = vsub.f32 %v528, %v927
  %v930 = vmul.f32 %v928, %v62
  %v931 = vmul.f32 %v929, %v62
  %v932 = vmul.f32 %v930, %v930
  %v933 = vmul.f32 %v931, %v931
  %v934 = vrot.slane %v932, 4
  %v935 = vadd.f32 %v932, %v934
  %v936 = vrot.slane %v935, 2
  %v937 = vadd.f32 %v935, %v936
  %v938 = vrot.slane %v937, 1
  %v939 = vadd.f32 %v937, %v938
  %v940 = vrot.slane %v933, 4
  %v941 = vadd.f32 %v933, %v940
  %v942 = vrot.slane %v941, 2
  %v943 = vadd.f32 %v941, %v942
  %v944 = vrot.slane %v943, 1
  %v945 = vadd.f32 %v943, %v944
  %946 = vmatprep.subr.mxu0 0.0
  %947 = vmatpush1.msra.mxu0 %v696
  %948 = vmatprep.subr.mxu0 0.0
  %949 = vmatpush1.msra.mxu0 %v697
  %950 = vmatprep.subr.mxu0 0.0
  %951 = vmatpush1.msra.mxu0 %v698
  %952 = vmatprep.subr.mxu0 0.0
  %953 = vmatpush1.msra.mxu0 %v699
  %954 = vmatprep.subr.mxu0 0.0
  %955 = vmatpush1.msra.mxu0 %v700
  %956 = vmatprep.subr.mxu0 0.0
  %957 = vmatpush1.msra.mxu0 %v701
  %958 = vmatprep.subr.mxu0 0.0
  %959 = vmatpush1.msra.mxu0 %v702
  %960 = vmatprep.subr.mxu0 0.0
  %961 = vmatpush1.msra.mxu0 %v703
  %962 = vmatprep.subr.mxu0 0.0
  %963 = vmatpush1.msra.mxu0 %v704
  %964 = vmatprep.subr.mxu0 0.0
  %965 = vmatpush1.msra.mxu0 %v705
  %966 = vmatprep.subr.mxu0 0.0
  %967 = vmatpush1.msra.mxu0 %v706
  %968 = vmatprep.subr.mxu0 0.0
  %969 = vmatpush1.msra.mxu0 %v707
  %970 = vmatprep.subr.mxu0 0.0
  %971 = vmatpush1.msra.mxu0 %v708
  %972 = vmatprep.subr.mxu0 0.0
  %973 = vmatpush1.msra.mxu0 %v709
  %974 = vmatprep.subr.mxu0 0.0
  %975 = vmatpush1.msra.mxu0 %v710
  %976 = vmatprep.subr.mxu0 0.0
  %977 = vmatpush1.msra.mxu0 %v711
  %978 = vmatprep.subr.mxu0 0.0
  %979 = vmatpush1.msra.mxu0 %v712
  %980 = vmatprep.subr.mxu0 0.0
  %981 = vmatpush1.msra.mxu0 %v713
  %982 = vmatprep.subr.mxu0 0.0
  %983 = vmatpush1.msra.mxu0 %v714
  %984 = vmatprep.subr.mxu0 0.0
  %985 = vmatpush1.msra.mxu0 %v715
  %986 = vmatprep.subr.mxu0 0.0
  %987 = vmatpush1.msra.mxu0 %v716
  %988 = vmatprep.subr.mxu0 0.0
  %989 = vmatpush1.msra.mxu0 %v717
  %990 = vmatprep.subr.mxu0 0.0
  %991 = vmatpush1.msra.mxu0 %v718
  %992 = vmatprep.subr.mxu0 0.0
  %993 = vmatpush1.msra.mxu0 %v719
  %994 = vmatprep.subr.mxu0 0.0
  %995 = vmatpush1.msra.mxu0 %v720
  %996 = vmatprep.subr.mxu0 0.0
  %997 = vmatpush1.msra.mxu0 %v721
  %998 = vmatprep.subr.mxu0 0.0
  %999 = vmatpush1.msra.mxu0 %v722
  %1000 = vmatprep.subr.mxu0 0.0
  %1001 = vmatpush1.msra.mxu0 %v723
  %1002 = vmatprep.subr.mxu0 0.0
  %1003 = vmatpush1.msra.mxu0 %v724
  %1004 = vmatprep.subr.mxu0 0.0
  %1005 = vmatpush1.msra.mxu0 %v725
  %1006 = vmatprep.subr.mxu0 0.0
  %1007 = vmatpush1.msra.mxu0 %v726
  %1008 = vmatprep.subr.mxu0 0.0
  %1009 = vmatpush1.msra.mxu0 %v727
  %1010 = vmatprep.mubr.f32.mxu0 %v945
  %1011 = vmatmul.mubr.f32.gmra.mrb[0].mxu0 %v939
  %v1012 = vpop.f32.mrb[0].mxu0
  %v1013 = vadd.f32 0.0, %v1012
  %v1014 = vpop.f32.mrb[0].mxu0
  %1015 = vdwg.mxu0
  %v1016 = vmul.f32 %v1013, %v843
  %v1017 = vld [vmem:[%s8] sm:$0x1]
  %v1018 = vadd.f32 %v1016, 1e-05
  %v1019 = vrsqrt.pop %v1018
  %v1020 = vmul.f32 %v1017, %v1019
  %v1021 = vld [vmem:[%s9] sm:$0x1]
  %v1022 = vmul.f32 %v844, %v1020
  %v1023 = vsub.f32 %v1021, %v1022
  %v1025 = vsel %vm845, %v1020, 0
  %1027 = vmatprep.subr.mxu0 %v752
  %1028 = vmatpush1.msra.mxu0 %v751
  %1029 = vmatprep.subr.mxu0 %v754
  %1030 = vmatpush1.msra.mxu0 %v753
  %1031 = vmatprep.subr.mxu0 0.0
  %1032 = vmatpush1.msra.mxu0 0.0
  %1033 = vmatprep.subr.mxu0 0.0
  %1034 = vmatpush1.msra.mxu0 0.0
  %1035 = vmatprep.subr.mxu0 0.0
  %1036 = vmatpush1.msra.mxu0 0.0
  %1037 = vmatprep.subr.mxu0 0.0
  %1038 = vmatpush1.msra.mxu0 0.0
  %1039 = vmatprep.subr.mxu0 0.0
  %1040 = vmatpush1.msra.mxu0 0.0
  %1041 = vmatprep.subr.mxu0 0.0
  %1042 = vmatpush1.msra.mxu0 0.0
  %1043 = vmatprep.subr.mxu0 0.0
  %1044 = vmatpush1.msra.mxu0 0.0
  %1045 = vmatprep.subr.mxu0 0.0
  %1046 = vmatpush1.msra.mxu0 0.0
  %1047 = vmatprep.subr.mxu0 0.0
  %1048 = vmatpush1.msra.mxu0 0.0
  %1049 = vmatprep.subr.mxu0 0.0
  %1050 = vmatpush1.msra.mxu0 0.0
  %1051 = vmatprep.subr.mxu0 0.0
  %1052 = vmatpush1.msra.mxu0 0.0
  %1053 = vmatprep.subr.mxu0 0.0
  %1054 = vmatpush1.msra.mxu0 0.0
  %1055 = vmatprep.subr.mxu0 0.0
  %1056 = vmatpush1.msra.mxu0 0.0
  %1057 = vmatprep.subr.mxu0 0.0
  %1058 = vmatpush1.msra.mxu0 0.0
  %1059 = vmatprep.subr.mxu0 0.0
  %1060 = vmatpush1.msra.mxu0 0.0
  %1061 = vmatprep.subr.mxu0 0.0
  %1062 = vmatpush1.msra.mxu0 0.0
  %1063 = vmatprep.subr.mxu0 0.0
  %1064 = vmatpush1.msra.mxu0 0.0
  %1065 = vmatprep.subr.mxu0 0.0
  %1066 = vmatpush1.msra.mxu0 0.0
  %1067 = vmatprep.subr.mxu0 0.0
  %1068 = vmatpush1.msra.mxu0 0.0
  %1069 = vmatprep.subr.mxu0 0.0
  %1070 = vmatpush1.msra.mxu0 0.0
  %1071 = vmatprep.subr.mxu0 0.0
  %1072 = vmatpush1.msra.mxu0 0.0
  %1073 = vmatprep.subr.mxu0 0.0
  %1074 = vmatpush1.msra.mxu0 0.0
  %1075 = vmatprep.subr.mxu0 0.0
  %1076 = vmatpush1.msra.mxu0 0.0
  %1077 = vmatprep.subr.mxu0 0.0
  %1078 = vmatpush1.msra.mxu0 0.0
  %1079 = vmatprep.subr.mxu0 0.0
  %1080 = vmatpush1.msra.mxu0 0.0
  %1081 = vmatprep.subr.mxu0 0.0
  %1082 = vmatpush1.msra.mxu0 0.0
  %1083 = vmatprep.subr.mxu0 0.0
  %1084 = vmatpush1.msra.mxu0 0.0
  %1085 = vmatprep.subr.mxu0 0.0
  %1086 = vmatpush1.msra.mxu0 0.0
  %1087 = vmatprep.subr.mxu0 0.0
  %1088 = vmatpush1.msra.mxu0 0.0
  %1089 = vmatprep.subr.mxu0 0.0
  %1090 = vmatpush1.msra.mxu0 0.0
  %1091 = vmatprep.mubr.f32.mxu0 0.0
  %1092 = vmatmul.mubr.f32.gmra.mrb[0].mxu0 %v1025
  %v1093 = vpop.f32.mrb[0].mxu0
  %v1094 = vadd.f32 0.0, %v1093
  %v1095 = vpop.f32.mrb[0].mxu0
  %v1096 = vadd.f32 0.0, %v1095
  %1097 = vdwg.mxu0
  %v1098 = vlaneseq
  %v1099 = vshrl.u32 %v1098, 7
  %v1100 = vsub.s32 0, %v1099
  %v1101 = vrot.slane %v1094, %v1100
  %v1102 = vlaneseq
  %v1103 = vshrl.u32 %v1102, 7
  %v1104 = vsub.s32 0, %v1103
  %v1105 = vrot.slane %v1096, %v1104
  %v1106 = vmul.f32 %v526, %v1101
  %v1107 = vmul.f32 %v528, %v1105
  %v1109 = vsel %vm845, %v1023, 0
  %1111 = vmatprep.subr.mxu0 %v752
  %1112 = vmatpush1.msra.mxu0 %v751
  %1113 = vmatprep.subr.mxu0 %v754
  %1114 = vmatpush1.msra.mxu0 %v753
  %1115 = vmatprep.subr.mxu0 0.0
  %1116 = vmatpush1.msra.mxu0 0.0
  %1117 = vmatprep.subr.mxu0 0.0
  %1118 = vmatpush1.msra.mxu0 0.0
  %1119 = vmatprep.subr.mxu0 0.0
  %1120 = vmatpush1.msra.mxu0 0.0
  %1121 = vmatprep.subr.mxu0 0.0
  %1122 = vmatpush1.msra.mxu0 0.0
  %1123 = vmatprep.subr.mxu0 0.0
  %1124 = vmatpush1.msra.mxu0 0.0
  %1125 = vmatprep.subr.mxu0 0.0
  %1126 = vmatpush1.msra.mxu0 0.0
  %1127 = vmatprep.subr.mxu0 0.0
  %1128 = vmatpush1.msra.mxu0 0.0
  %1129 = vmatprep.subr.mxu0 0.0
  %1130 = vmatpush1.msra.mxu0 0.0
  %1131 = vmatprep.subr.mxu0 0.0
  %1132 = vmatpush1.msra.mxu0 0.0
  %1133 = vmatprep.subr.mxu0 0.0
  %1134 = vmatpush1.msra.mxu0 0.0
  %1135 = vmatprep.subr.mxu0 0.0
  %1136 = vmatpush1.msra.mxu0 0.0
  %1137 = vmatprep.subr.mxu0 0.0
  %1138 = vmatpush1.msra.mxu0 0.0
  %1139 = vmatprep.subr.mxu0 0.0
  %1140 = vmatpush1.msra.mxu0 0.0
  %1141 = vmatprep.subr.mxu0 0.0
  %1142 = vmatpush1.msra.mxu0 0.0
  %1143 = vmatprep.subr.mxu0 0.0
  %1144 = vmatpush1.msra.mxu0 0.0
  %1145 = vmatprep.subr.mxu0 0.0
  %1146 = vmatpush1.msra.mxu0 0.0
  %1147 = vmatprep.subr.mxu0 0.0
  %1148 = vmatpush1.msra.mxu0 0.0
  %1149 = vmatprep.subr.mxu0 0.0
  %1150 = vmatpush1.msra.mxu0 0.0
  %1151 = vmatprep.subr.mxu0 0.0
  %1152 = vmatpush1.msra.mxu0 0.0
  %1153 = vmatprep.subr.mxu0 0.0
  %1154 = vmatpush1.msra.mxu0 0.0
  %1155 = vmatprep.subr.mxu0 0.0
  %1156 = vmatpush1.msra.mxu0 0.0
  %1157 = vmatprep.subr.mxu0 0.0
  %1158 = vmatpush1.msra.mxu0 0.0
  %1159 = vmatprep.subr.mxu0 0.0
  %1160 = vmatpush1.msra.mxu0 0.0
  %1161 = vmatprep.subr.mxu0 0.0
  %1162 = vmatpush1.msra.mxu0 0.0
  %1163 = vmatprep.subr.mxu0 0.0
  %1164 = vmatpush1.msra.mxu0 0.0
  %1165 = vmatprep.subr.mxu0 0.0
  %1166 = vmatpush1.msra.mxu0 0.0
  %1167 = vmatprep.subr.mxu0 0.0
  %1168 = vmatpush1.msra.mxu0 0.0
  %1169 = vmatprep.subr.mxu0 0.0
  %1170 = vmatpush1.msra.mxu0 0.0
  %1171 = vmatprep.subr.mxu0 0.0
  %1172 = vmatpush1.msra.mxu0 0.0
  %1173 = vmatprep.subr.mxu0 0.0
  %1174 = vmatpush1.msra.mxu0 0.0
  %1175 = vmatprep.mubr.f32.mxu0 0.0
  %1176 = vmatmul.mubr.f32.gmra.mrb[0].mxu0 %v1109
  %v1177 = vpop.f32.mrb[0].mxu0
  %v1178 = vadd.f32 0.0, %v1177
  %v1179 = vpop.f32.mrb[0].mxu0
  %v1180 = vadd.f32 0.0, %v1179
  %1181 = vdwg.mxu0
  %v1182 = vlaneseq
  %v1183 = vshrl.u32 %v1182, 7
  %v1184 = vsub.s32 0, %v1183
  %v1185 = vrot.slane %v1178, %v1184
  %v1186 = vlaneseq
  %v1187 = vshrl.u32 %v1186, 7
  %v1188 = vsub.s32 0, %v1187
  %v1189 = vrot.slane %v1180, %v1188
  %v1190 = vadd.f32 %v1106, %v1185
  %v1191 = vadd.f32 %v1107, %v1189
  %vm1192 = vcmp.gt.f32.partialorder %v1190, 0.0
  %vm1193 = vcmp.gt.f32.partialorder %v1191, 0.0
  %v1194 = vmul.f32 %v1190, 0.01
  %v1195 = vmul.f32 %v1191, 0.01
  %v1196 = vsel %vm1192, %v1190, %v1194
  %v1197 = vsel %vm1193, %v1191, %v1195
  %v1198 = vpack.c.bf16 %v1196, %v1196
  %v1199 = vpack.c.bf16 %v1197, %v1197
  %v1200 = vld [vmem:[%s10] sm:$0xff]
  %v1201 = vld [vmem:[%s10 + $0x8] sm:$0xff]
  %v1202 = vld [vmem:[%s10 + $0x10] sm:$0xff]
  %v1203 = vld [vmem:[%s10 + $0x18] sm:$0xff]
  %v1204 = vld [vmem:[%s10 + $0x20] sm:$0xf]
  %v1205 = vld [vmem:[%s10 + $0x24] sm:$0xff]
  %v1206 = vld [vmem:[%s10 + $0x2c] sm:$0xff]
  %v1207 = vld [vmem:[%s10 + $0x34] sm:$0xff]
  %v1208 = vld [vmem:[%s10 + $0x3c] sm:$0xff]
  %v1209 = vld [vmem:[%s10 + $0x44] sm:$0xf]
  %v1210 = vld [vmem:[%s10 + $0x48] sm:$0xff]
  %v1211 = vld [vmem:[%s10 + $0x50] sm:$0xff]
  %v1212 = vld [vmem:[%s10 + $0x58] sm:$0xff]
  %v1213 = vld [vmem:[%s10 + $0x60] sm:$0xff]
  %v1214 = vld [vmem:[%s10 + $0x68] sm:$0xf]
  %v1215 = vld [vmem:[%s10 + $0x6c] sm:$0xff]
  %v1216 = vld [vmem:[%s10 + $0x74] sm:$0xff]
  %v1217 = vld [vmem:[%s10 + $0x7c] sm:$0xff]
  %v1218 = vld [vmem:[%s10 + $0x84] sm:$0xff]
  %v1219 = vld [vmem:[%s10 + $0x8c] sm:$0xf]
  %v1220 = vld [vmem:[%s10 + $0x90] sm:$0xff]
  %v1221 = vld [vmem:[%s10 + $0x98] sm:$0xff]
  %v1222 = vld [vmem:[%s10 + $0xa0] sm:$0xff]
  %v1223 = vld [vmem:[%s10 + $0xa8] sm:$0xff]
  %v1224 = vld [vmem:[%s10 + $0xb0] sm:$0xf]
  %v1225 = vld [vmem:[%s10 + $0xb4] sm:$0xff]
  %v1226 = vld [vmem:[%s10 + $0xbc] sm:$0xff]
  %v1227 = vld [vmem:[%s10 + $0xc4] sm:$0xff]
  %v1228 = vld [vmem:[%s10 + $0xcc] sm:$0xff]
  %v1229 = vld [vmem:[%s10 + $0xd4] sm:$0xf]
  %v1230 = vld [vmem:[%s10 + $0xd8] sm:$0xff]
  %v1231 = vld [vmem:[%s10 + $0xe0] sm:$0xff]
  %v1232 = vld [vmem:[%s10 + $0xe8] sm:$0xff]
  %v1233 = vld [vmem:[%s10 + $0xf0] sm:$0xff]
  %v1234 = vld [vmem:[%s10 + $0xf8] sm:$0xf]
  %v1235 = vld [vmem:[%s10 + $0xfc] sm:$0xff]
  %v1236 = vld [vmem:[%s10 + $0x104] sm:$0xff]
  %v1237 = vld [vmem:[%s10 + $0x10c] sm:$0xff]
  %v1238 = vld [vmem:[%s10 + $0x114] sm:$0xff]
  %v1239 = vld [vmem:[%s10 + $0x11c] sm:$0xf]
  %v1240 = vld [vmem:[%s10 + $0x120] sm:$0xff]
  %v1241 = vld [vmem:[%s10 + $0x128] sm:$0xff]
  %v1242 = vld [vmem:[%s10 + $0x130] sm:$0xff]
  %v1243 = vld [vmem:[%s10 + $0x138] sm:$0xff]
  %v1244 = vld [vmem:[%s10 + $0x140] sm:$0xf]
  %v1245 = vld [vmem:[%s10 + $0x144] sm:$0xff]
  %v1246 = vld [vmem:[%s10 + $0x14c] sm:$0xff]
  %v1247 = vld [vmem:[%s10 + $0x154] sm:$0xff]
  %v1248 = vld [vmem:[%s10 + $0x15c] sm:$0xff]
  %v1249 = vld [vmem:[%s10 + $0x164] sm:$0xf]
  %v1250 = vld [vmem:[%s10 + $0x168] sm:$0xff]
  %v1251 = vld [vmem:[%s10 + $0x170] sm:$0xff]
  %v1252 = vld [vmem:[%s10 + $0x178] sm:$0xff]
  %v1253 = vld [vmem:[%s10 + $0x180] sm:$0xff]
  %v1254 = vld [vmem:[%s10 + $0x188] sm:$0xf]
  %v1255 = vld [vmem:[%s10 + $0x18c] sm:$0xff]
  %v1256 = vld [vmem:[%s10 + $0x194] sm:$0xff]
  %v1257 = vld [vmem:[%s10 + $0x19c] sm:$0xff]
  %v1258 = vld [vmem:[%s10 + $0x1a4] sm:$0xff]
  %v1259 = vld [vmem:[%s10 + $0x1ac] sm:$0xf]
  %v1260 = vld [vmem:[%s10 + $0x1b0] sm:$0xff]
  %v1261 = vld [vmem:[%s10 + $0x1b8] sm:$0xff]
  %v1262 = vld [vmem:[%s10 + $0x1c0] sm:$0xff]
  %v1263 = vld [vmem:[%s10 + $0x1c8] sm:$0xff]
  %v1264 = vld [vmem:[%s10 + $0x1d0] sm:$0xf]
  %v1265 = vld [vmem:[%s10 + $0x1d4] sm:$0xff]
  %v1266 = vld [vmem:[%s10 + $0x1dc] sm:$0xff]
  %v1267 = vld [vmem:[%s10 + $0x1e4] sm:$0xff]
  %v1268 = vld [vmem:[%s10 + $0x1ec] sm:$0xff]
  %v1269 = vld [vmem:[%s10 + $0x1f4] sm:$0xf]
  %v1270 = vld [vmem:[%s10 + $0x1f8] sm:$0xff]
  %v1271 = vld [vmem:[%s10 + $0x200] sm:$0xff]
  %v1272 = vld [vmem:[%s10 + $0x208] sm:$0xff]
  %v1273 = vld [vmem:[%s10 + $0x210] sm:$0xff]
  %v1274 = vld [vmem:[%s10 + $0x218] sm:$0xf]
  %v1275 = vld [vmem:[%s10 + $0x21c] sm:$0xff]
  %v1276 = vld [vmem:[%s10 + $0x224] sm:$0xff]
  %v1277 = vld [vmem:[%s10 + $0x22c] sm:$0xff]
  %v1278 = vld [vmem:[%s10 + $0x234] sm:$0xff]
  %v1279 = vld [vmem:[%s10 + $0x23c] sm:$0xf]
  %v1280 = vld [vmem:[%s10 + $0x240] sm:$0xff]
  %v1281 = vld [vmem:[%s10 + $0x248] sm:$0xff]
  %v1282 = vld [vmem:[%s10 + $0x250] sm:$0xff]
  %v1283 = vld [vmem:[%s10 + $0x258] sm:$0xff]
  %v1284 = vld [vmem:[%s10 + $0x260] sm:$0xf]
  %v1285 = vld [vmem:[%s10 + $0x264] sm:$0xff]
  %v1286 = vld [vmem:[%s10 + $0x26c] sm:$0xff]
  %v1287 = vld [vmem:[%s10 + $0x274] sm:$0xff]
  %v1288 = vld [vmem:[%s10 + $0x27c] sm:$0xff]
  %v1289 = vld [vmem:[%s10 + $0x284] sm:$0xf]
  %v1290 = vld [vmem:[%s10 + $0x288] sm:$0xff]
  %v1291 = vld [vmem:[%s10 + $0x290] sm:$0xff]
  %v1292 = vld [vmem:[%s10 + $0x298] sm:$0xff]
  %v1293 = vld [vmem:[%s10 + $0x2a0] sm:$0xff]
  %v1294 = vld [vmem:[%s10 + $0x2a8] sm:$0xf]
  %v1295 = vld [vmem:[%s10 + $0x2ac] sm:$0xff]
  %v1296 = vld [vmem:[%s10 + $0x2b4] sm:$0xff]
  %v1297 = vld [vmem:[%s10 + $0x2bc] sm:$0xff]
  %v1298 = vld [vmem:[%s10 + $0x2c4] sm:$0xff]
  %v1299 = vld [vmem:[%s10 + $0x2cc] sm:$0xf]
  %v1300 = vld [vmem:[%s10 + $0x2d0] sm:$0xff]
  %v1301 = vld [vmem:[%s10 + $0x2d8] sm:$0xff]
  %v1302 = vld [vmem:[%s10 + $0x2e0] sm:$0xff]
  %v1303 = vld [vmem:[%s10 + $0x2e8] sm:$0xff]
  %v1304 = vld [vmem:[%s10 + $0x2f0] sm:$0xf]
  %v1305 = vld [vmem:[%s10 + $0x2f4] sm:$0xff]
  %v1306 = vld [vmem:[%s10 + $0x2fc] sm:$0xff]
  %v1307 = vld [vmem:[%s10 + $0x304] sm:$0xff]
  %v1308 = vld [vmem:[%s10 + $0x30c] sm:$0xff]
  %v1309 = vld [vmem:[%s10 + $0x314] sm:$0xf]
  %v1310 = vld [vmem:[%s10 + $0x318] sm:$0xff]
  %v1311 = vld [vmem:[%s10 + $0x320] sm:$0xff]
  %v1312 = vld [vmem:[%s10 + $0x328] sm:$0xff]
  %v1313 = vld [vmem:[%s10 + $0x330] sm:$0xff]
  %v1314 = vld [vmem:[%s10 + $0x338] sm:$0xf]
  %v1315 = vld [vmem:[%s10 + $0x33c] sm:$0xff]
  %v1316 = vld [vmem:[%s10 + $0x344] sm:$0xff]
  %v1317 = vld [vmem:[%s10 + $0x34c] sm:$0xff]
  %v1318 = vld [vmem:[%s10 + $0x354] sm:$0xff]
  %v1319 = vld [vmem:[%s10 + $0x35c] sm:$0xf]
  %v1320 = vld [vmem:[%s10 + $0x360] sm:$0xff]
  %v1321 = vld [vmem:[%s10 + $0x368] sm:$0xff]
  %v1322 = vld [vmem:[%s10 + $0x370] sm:$0xff]
  %v1323 = vld [vmem:[%s10 + $0x378] sm:$0xff]
  %v1324 = vld [vmem:[%s10 + $0x380] sm:$0xf]
  %v1325 = vld [vmem:[%s10 + $0x384] sm:$0xff]
  %v1326 = vld [vmem:[%s10 + $0x38c] sm:$0xff]
  %v1327 = vld [vmem:[%s10 + $0x394] sm:$0xff]
  %v1328 = vld [vmem:[%s10 + $0x39c] sm:$0xff]
  %v1329 = vld [vmem:[%s10 + $0x3a4] sm:$0xf]
  %v1330 = vld [vmem:[%s10 + $0x3a8] sm:$0xff]
  %v1331 = vld [vmem:[%s10 + $0x3b0] sm:$0xff]
  %v1332 = vld [vmem:[%s10 + $0x3b8] sm:$0xff]
  %v1333 = vld [vmem:[%s10 + $0x3c0] sm:$0xff]
  %v1334 = vld [vmem:[%s10 + $0x3c8] sm:$0xf]
  %v1335 = vld [vmem:[%s10 + $0x3cc] sm:$0xff]
  %v1336 = vld [vmem:[%s10 + $0x3d4] sm:$0xff]
  %v1337 = vld [vmem:[%s10 + $0x3dc] sm:$0xff]
  %v1338 = vld [vmem:[%s10 + $0x3e4] sm:$0xff]
  %v1339 = vld [vmem:[%s10 + $0x3ec] sm:$0xf]
  %v1340 = vld [vmem:[%s10 + $0x3f0] sm:$0xff]
  %v1341 = vld [vmem:[%s10 + $0x3f8] sm:$0xff]
  %v1342 = vld [vmem:[%s10 + $0x400] sm:$0xff]
  %v1343 = vld [vmem:[%s10 + $0x408] sm:$0xff]
  %v1344 = vld [vmem:[%s10 + $0x410] sm:$0xf]
  %v1345 = vld [vmem:[%s10 + $0x414] sm:$0xff]
  %v1346 = vld [vmem:[%s10 + $0x41c] sm:$0xff]
  %v1347 = vld [vmem:[%s10 + $0x424] sm:$0xff]
  %v1348 = vld [vmem:[%s10 + $0x42c] sm:$0xff]
  %v1349 = vld [vmem:[%s10 + $0x434] sm:$0xf]
  %v1350 = vld [vmem:[%s10 + $0x438] sm:$0xff]
  %v1351 = vld [vmem:[%s10 + $0x440] sm:$0xff]
  %v1352 = vld [vmem:[%s10 + $0x448] sm:$0xff]
  %v1353 = vld [vmem:[%s10 + $0x450] sm:$0xff]
  %v1354 = vld [vmem:[%s10 + $0x458] sm:$0xf]
  %v1355 = vld [vmem:[%s10 + $0x45c] sm:$0xff]
  %v1356 = vld [vmem:[%s10 + $0x464] sm:$0xff]
  %v1357 = vld [vmem:[%s10 + $0x46c] sm:$0xff]
  %v1358 = vld [vmem:[%s10 + $0x474] sm:$0xff]
  %v1359 = vld [vmem:[%s10 + $0x47c] sm:$0xf]
  %v1360 = vld [vmem:[%s11] sm:$0xff]
  %v1361 = vld [vmem:[%s11 + $0x8] sm:$0x1]
  %v1364 = vlaneseq
  %v1365 = vshrl.u32 %v1364, 7
  %v1366 = vsub.s32 0, %v1365
  %v1367 = vrot.slane %v1360, %v1366
  %v1368 = vlaneseq
  %v1369 = vshrl.u32 %v1368, 7
  %v1370 = vsub.s32 1, %v1369
  %v1371 = vrot.slane %v1360, %v1370
  %v1372 = vlaneseq
  %v1373 = vshrl.u32 %v1372, 7
  %v1374 = vsub.s32 2, %v1373
  %v1375 = vrot.slane %v1360, %v1374
  %v1376 = vlaneseq
  %v1377 = vshrl.u32 %v1376, 7
  %v1378 = vsub.s32 3, %v1377
  %v1379 = vrot.slane %v1360, %v1378
  %v1380 = vlaneseq
  %v1381 = vshrl.u32 %v1380, 7
  %v1382 = vsub.s32 4, %v1381
  %v1383 = vrot.slane %v1360, %v1382
  %v1384 = vlaneseq
  %v1385 = vshrl.u32 %v1384, 7
  %v1386 = vsub.s32 5, %v1385
  %v1387 = vrot.slane %v1360, %v1386
  %v1388 = vlaneseq
  %v1389 = vshrl.u32 %v1388, 7
  %v1390 = vsub.s32 6, %v1389
  %v1391 = vrot.slane %v1360, %v1390
  %v1392 = vlaneseq
  %v1393 = vshrl.u32 %v1392, 7
  %v1394 = vsub.s32 7, %v1393
  %v1395 = vrot.slane %v1360, %v1394
  %v1396 = vlaneseq
  %v1397 = vshrl.u32 %v1396, 7
  %v1398 = vsub.s32 0, %v1397
  %v1399 = vrot.slane %v1361, %v1398
  %v1569 = vunpack.c.l.b16 %v1200
  %v1570 = vunpack.c.h.b16 %v1200
  %v1571 = vunpack.c.l.b16 %v1201
  %v1572 = vunpack.c.h.b16 %v1201
  %v1573 = vunpack.c.l.b16 %v1202
  %v1574 = vunpack.c.h.b16 %v1202
  %v1575 = vunpack.c.l.b16 %v1203
  %v1576 = vunpack.c.h.b16 %v1203
  %v1577 = vunpack.c.l.b16 %v1204
  %v1578 = vunpack.c.l.b16 %v1205
  %v1579 = vunpack.c.h.b16 %v1205
  %v1580 = vunpack.c.l.b16 %v1206
  %v1581 = vunpack.c.h.b16 %v1206
  %v1582 = vunpack.c.l.b16 %v1207
  %v1583 = vunpack.c.h.b16 %v1207
  %v1584 = vunpack.c.l.b16 %v1208
  %v1585 = vunpack.c.h.b16 %v1208
  %v1586 = vunpack.c.l.b16 %v1209
  %v1587 = vunpack.c.l.b16 %v1210
  %v1588 = vunpack.c.h.b16 %v1210
  %v1589 = vunpack.c.l.b16 %v1211
  %v1590 = vunpack.c.h.b16 %v1211
  %v1591 = vunpack.c.l.b16 %v1212
  %v1592 = vunpack.c.h.b16 %v1212
  %v1593 = vunpack.c.l.b16 %v1213
  %v1594 = vunpack.c.h.b16 %v1213
  %v1595 = vunpack.c.l.b16 %v1214
  %v1596 = vunpack.c.l.b16 %v1215
  %v1597 = vunpack.c.h.b16 %v1215
  %v1598 = vunpack.c.l.b16 %v1216
  %v1599 = vunpack.c.h.b16 %v1216
  %v1600 = vunpack.c.l.b16 %v1217
  %v1601 = vunpack.c.h.b16 %v1217
  %v1602 = vunpack.c.l.b16 %v1218
  %v1603 = vunpack.c.h.b16 %v1218
  %v1604 = vunpack.c.l.b16 %v1219
  %v1605 = vunpack.c.l.b16 %v1220
  %v1606 = vunpack.c.h.b16 %v1220
  %v1607 = vunpack.c.l.b16 %v1221
  %v1608 = vunpack.c.h.b16 %v1221
  %v1609 = vunpack.c.l.b16 %v1222
  %v1610 = vunpack.c.h.b16 %v1222
  %v1611 = vunpack.c.l.b16 %v1223
  %v1612 = vunpack.c.h.b16 %v1223
  %v1613 = vunpack.c.l.b16 %v1224
  %v1614 = vunpack.c.l.b16 %v1225
  %v1615 = vunpack.c.h.b16 %v1225
  %v1616 = vunpack.c.l.b16 %v1226
  %v1617 = vunpack.c.h.b16 %v1226
  %v1618 = vunpack.c.l.b16 %v1227
  %v1619 = vunpack.c.h.b16 %v1227
  %v1620 = vunpack.c.l.b16 %v1228
  %v1621 = vunpack.c.h.b16 %v1228
  %v1622 = vunpack.c.l.b16 %v1229
  %v1623 = vunpack.c.l.b16 %v1230
  %v1624 = vunpack.c.h.b16 %v1230
  %v1625 = vunpack.c.l.b16 %v1231
  %v1626 = vunpack.c.h.b16 %v1231
  %v1627 = vunpack.c.l.b16 %v1232
  %v1628 = vunpack.c.h.b16 %v1232
  %v1629 = vunpack.c.l.b16 %v1233
  %v1630 = vunpack.c.h.b16 %v1233
  %v1631 = vunpack.c.l.b16 %v1234
  %v1632 = vunpack.c.l.b16 %v1235
  %v1633 = vunpack.c.h.b16 %v1235
  %v1634 = vunpack.c.l.b16 %v1236
  %v1635 = vunpack.c.h.b16 %v1236
  %v1636 = vunpack.c.l.b16 %v1237
  %v1637 = vunpack.c.h.b16 %v1237
  %v1638 = vunpack.c.l.b16 %v1238
  %v1639 = vunpack.c.h.b16 %v1238
  %v1640 = vunpack.c.l.b16 %v1239
  %v1641 = vunpack.c.l.b16 %v1240
  %v1642 = vunpack.c.h.b16 %v1240
  %v1643 = vunpack.c.l.b16 %v1241
  %v1644 = vunpack.c.h.b16 %v1241
  %v1645 = vunpack.c.l.b16 %v1242
  %v1646 = vunpack.c.h.b16 %v1242
  %v1647 = vunpack.c.l.b16 %v1243
  %v1648 = vunpack.c.h.b16 %v1243
  %v1649 = vunpack.c.l.b16 %v1244
  %v1650 = vunpack.c.l.b16 %v1245
  %v1651 = vunpack.c.h.b16 %v1245
  %v1652 = vunpack.c.l.b16 %v1246
  %v1653 = vunpack.c.h.b16 %v1246
  %v1654 = vunpack.c.l.b16 %v1247
  %v1655 = vunpack.c.h.b16 %v1247
  %v1656 = vunpack.c.l.b16 %v1248
  %v1657 = vunpack.c.h.b16 %v1248
  %v1658 = vunpack.c.l.b16 %v1249
  %v1659 = vunpack.c.l.b16 %v1250
  %v1660 = vunpack.c.h.b16 %v1250
  %v1661 = vunpack.c.l.b16 %v1251
  %v1662 = vunpack.c.h.b16 %v1251
  %v1663 = vunpack.c.l.b16 %v1252
  %v1664 = vunpack.c.h.b16 %v1252
  %v1665 = vunpack.c.l.b16 %v1253
  %v1666 = vunpack.c.h.b16 %v1253
  %v1667 = vunpack.c.l.b16 %v1254
  %v1668 = vunpack.c.l.b16 %v1255
  %v1669 = vunpack.c.h.b16 %v1255
  %v1670 = vunpack.c.l.b16 %v1256
  %v1671 = vunpack.c.h.b16 %v1256
  %v1672 = vunpack.c.l.b16 %v1257
  %v1673 = vunpack.c.h.b16 %v1257
  %v1674 = vunpack.c.l.b16 %v1258
  %v1675 = vunpack.c.h.b16 %v1258
  %v1676 = vunpack.c.l.b16 %v1259
  %v1677 = vunpack.c.l.b16 %v1260
  %v1678 = vunpack.c.h.b16 %v1260
  %v1679 = vunpack.c.l.b16 %v1261
  %v1680 = vunpack.c.h.b16 %v1261
  %v1681 = vunpack.c.l.b16 %v1262
  %v1682 = vunpack.c.h.b16 %v1262
  %v1683 = vunpack.c.l.b16 %v1263
  %v1684 = vunpack.c.h.b16 %v1263
  %v1685 = vunpack.c.l.b16 %v1264
  %v1686 = vunpack.c.l.b16 %v1265
  %v1687 = vunpack.c.h.b16 %v1265
  %v1688 = vunpack.c.l.b16 %v1266
  %v1689 = vunpack.c.h.b16 %v1266
  %v1690 = vunpack.c.l.b16 %v1267
  %v1691 = vunpack.c.h.b16 %v1267
  %v1692 = vunpack.c.l.b16 %v1268
  %v1693 = vunpack.c.h.b16 %v1268
  %v1694 = vunpack.c.l.b16 %v1269
  %v1695 = vunpack.c.l.b16 %v1270
  %v1696 = vunpack.c.h.b16 %v1270
  %v1697 = vunpack.c.l.b16 %v1271
  %v1698 = vunpack.c.h.b16 %v1271
  %v1699 = vunpack.c.l.b16 %v1272
  %v1700 = vunpack.c.h.b16 %v1272
  %v1701 = vunpack.c.l.b16 %v1273
  %v1702 = vunpack.c.h.b16 %v1273
  %v1703 = vunpack.c.l.b16 %v1274
  %v1704 = vunpack.c.l.b16 %v1275
  %v1705 = vunpack.c.h.b16 %v1275
  %v1706 = vunpack.c.l.b16 %v1276
  %v1707 = vunpack.c.h.b16 %v1276
  %v1708 = vunpack.c.l.b16 %v1277
  %v1709 = vunpack.c.h.b16 %v1277
  %v1710 = vunpack.c.l.b16 %v1278
  %v1711 = vunpack.c.h.b16 %v1278
  %v1712 = vunpack.c.l.b16 %v1279
  %v1713 = vunpack.c.l.b16 %v1280
  %v1714 = vunpack.c.h.b16 %v1280
  %v1715 = vunpack.c.l.b16 %v1281
  %v1716 = vunpack.c.h.b16 %v1281
  %v1717 = vunpack.c.l.b16 %v1282
  %v1718 = vunpack.c.h.b16 %v1282
  %v1719 = vunpack.c.l.b16 %v1283
  %v1720 = vunpack.c.h.b16 %v1283
  %v1721 = vunpack.c.l.b16 %v1284
  %v1722 = vunpack.c.l.b16 %v1285
  %v1723 = vunpack.c.h.b16 %v1285
  %v1724 = vunpack.c.l.b16 %v1286
  %v1725 = vunpack.c.h.b16 %v1286
  %v1726 = vunpack.c.l.b16 %v1287
  %v1727 = vunpack.c.h.b16 %v1287
  %v1728 = vunpack.c.l.b16 %v1288
  %v1729 = vunpack.c.h.b16 %v1288
  %v1730 = vunpack.c.l.b16 %v1289
  %v1731 = vunpack.c.l.b16 %v1290
  %v1732 = vunpack.c.h.b16 %v1290
  %v1733 = vunpack.c.l.b16 %v1291
  %v1734 = vunpack.c.h.b16 %v1291
  %v1735 = vunpack.c.l.b16 %v1292
  %v1736 = vunpack.c.h.b16 %v1292
  %v1737 = vunpack.c.l.b16 %v1293
  %v1738 = vunpack.c.h.b16 %v1293
  %v1739 = vunpack.c.l.b16 %v1294
  %v1740 = vunpack.c.l.b16 %v1295
  %v1741 = vunpack.c.h.b16 %v1295
  %v1742 = vunpack.c.l.b16 %v1296
  %v1743 = vunpack.c.h.b16 %v1296
  %v1744 = vunpack.c.l.b16 %v1297
  %v1745 = vunpack.c.h.b16 %v1297
  %v1746 = vunpack.c.l.b16 %v1298
  %v1747 = vunpack.c.h.b16 %v1298
  %v1748 = vunpack.c.l.b16 %v1299
  %v1749 = vunpack.c.l.b16 %v1300
  %v1750 = vunpack.c.h.b16 %v1300
  %v1751 = vunpack.c.l.b16 %v1301
  %v1752 = vunpack.c.h.b16 %v1301
  %v1753 = vunpack.c.l.b16 %v1302
  %v1754 = vunpack.c.h.b16 %v1302
  %v1755 = vunpack.c.l.b16 %v1303
  %v1756 = vunpack.c.h.b16 %v1303
  %v1757 = vunpack.c.l.b16 %v1304
  %v1758 = vunpack.c.l.b16 %v1305
  %v1759 = vunpack.c.h.b16 %v1305
  %v1760 = vunpack.c.l.b16 %v1306
  %v1761 = vunpack.c.h.b16 %v1306
  %v1762 = vunpack.c.l.b16 %v1307
  %v1763 = vunpack.c.h.b16 %v1307
  %v1764 = vunpack.c.l.b16 %v1308
  %v1765 = vunpack.c.h.b16 %v1308
  %v1766 = vunpack.c.l.b16 %v1309
  %v1767 = vunpack.c.l.b16 %v1310
  %v1768 = vunpack.c.h.b16 %v1310
  %v1769 = vunpack.c.l.b16 %v1311
  %v1770 = vunpack.c.h.b16 %v1311
  %v1771 = vunpack.c.l.b16 %v1312
  %v1772 = vunpack.c.h.b16 %v1312
  %v1773 = vunpack.c.l.b16 %v1313
  %v1774 = vunpack.c.h.b16 %v1313
  %v1775 = vunpack.c.l.b16 %v1314
  %v1776 = vunpack.c.l.b16 %v1315
  %v1777 = vunpack.c.h.b16 %v1315
  %v1778 = vunpack.c.l.b16 %v1316
  %v1779 = vunpack.c.h.b16 %v1316
  %v1780 = vunpack.c.l.b16 %v1317
  %v1781 = vunpack.c.h.b16 %v1317
  %v1782 = vunpack.c.l.b16 %v1318
  %v1783 = vunpack.c.h.b16 %v1318
  %v1784 = vunpack.c.l.b16 %v1319
  %v1785 = vunpack.c.l.b16 %v1320
  %v1786 = vunpack.c.h.b16 %v1320
  %v1787 = vunpack.c.l.b16 %v1321
  %v1788 = vunpack.c.h.b16 %v1321
  %v1789 = vunpack.c.l.b16 %v1322
  %v1790 = vunpack.c.h.b16 %v1322
  %v1791 = vunpack.c.l.b16 %v1323
  %v1792 = vunpack.c.h.b16 %v1323
  %v1793 = vunpack.c.l.b16 %v1324
  %v1794 = vunpack.c.l.b16 %v1325
  %v1795 = vunpack.c.h.b16 %v1325
  %v1796 = vunpack.c.l.b16 %v1326
  %v1797 = vunpack.c.h.b16 %v1326
  %v1798 = vunpack.c.l.b16 %v1327
  %v1799 = vunpack.c.h.b16 %v1327
  %v1800 = vunpack.c.l.b16 %v1328
  %v1801 = vunpack.c.h.b16 %v1328
  %v1802 = vunpack.c.l.b16 %v1329
  %v1803 = vunpack.c.l.b16 %v1330
  %v1804 = vunpack.c.h.b16 %v1330
  %v1805 = vunpack.c.l.b16 %v1331
  %v1806 = vunpack.c.h.b16 %v1331
  %v1807 = vunpack.c.l.b16 %v1332
  %v1808 = vunpack.c.h.b16 %v1332
  %v1809 = vunpack.c.l.b16 %v1333
  %v1810 = vunpack.c.h.b16 %v1333
  %v1811 = vunpack.c.l.b16 %v1334
  %v1812 = vunpack.c.l.b16 %v1335
  %v1813 = vunpack.c.h.b16 %v1335
  %v1814 = vunpack.c.l.b16 %v1336
  %v1815 = vunpack.c.h.b16 %v1336
  %v1816 = vunpack.c.l.b16 %v1337
  %v1817 = vunpack.c.h.b16 %v1337
  %v1818 = vunpack.c.l.b16 %v1338
  %v1819 = vunpack.c.h.b16 %v1338
  %v1820 = vunpack.c.l.b16 %v1339
  %v1821 = vunpack.c.l.b16 %v1340
  %v1822 = vunpack.c.h.b16 %v1340
  %v1823 = vunpack.c.l.b16 %v1341
  %v1824 = vunpack.c.h.b16 %v1341
  %v1825 = vunpack.c.l.b16 %v1342
  %v1826 = vunpack.c.h.b16 %v1342
  %v1827 = vunpack.c.l.b16 %v1343
  %v1828 = vunpack.c.h.b16 %v1343
  %v1829 = vunpack.c.l.b16 %v1344
  %v1830 = vunpack.c.l.b16 %v1345
  %v1831 = vunpack.c.h.b16 %v1345
  %v1832 = vunpack.c.l.b16 %v1346
  %v1833 = vunpack.c.h.b16 %v1346
  %v1834 = vunpack.c.l.b16 %v1347
  %v1835 = vunpack.c.h.b16 %v1347
  %v1836 = vunpack.c.l.b16 %v1348
  %v1837 = vunpack.c.h.b16 %v1348
  %v1838 = vunpack.c.l.b16 %v1349
  %v1839 = vunpack.c.l.b16 %v1350
  %v1840 = vunpack.c.h.b16 %v1350
  %v1841 = vunpack.c.l.b16 %v1351
  %v1842 = vunpack.c.h.b16 %v1351
  %v1843 = vunpack.c.l.b16 %v1352
  %v1844 = vunpack.c.h.b16 %v1352
  %v1845 = vunpack.c.l.b16 %v1353
  %v1846 = vunpack.c.h.b16 %v1353
  %v1847 = vunpack.c.l.b16 %v1354
  %v1848 = vunpack.c.l.b16 %v1355
  %v1849 = vunpack.c.h.b16 %v1355
  %v1850 = vunpack.c.l.b16 %v1356
  %v1851 = vunpack.c.h.b16 %v1356
  %v1852 = vunpack.c.l.b16 %v1357
  %v1853 = vunpack.c.h.b16 %v1357
  %v1854 = vunpack.c.l.b16 %v1358
  %v1855 = vunpack.c.h.b16 %v1358
  %v1856 = vunpack.c.l.b16 %v1359
  %v1857 = vpack.c.b16 %v1578, %v1569
  %v1858 = vpack.c.b16 %v1579, %v1570
  %v1859 = vpack.c.b16 %v1580, %v1571
  %v1860 = vpack.c.b16 %v1581, %v1572
  %v1861 = vpack.c.b16 %v1582, %v1573
  %v1862 = vpack.c.b16 %v1583, %v1574
  %v1863 = vpack.c.b16 %v1584, %v1575
  %v1864 = vpack.c.b16 %v1585, %v1576
  %v1865 = vpack.c.b16 %v1586, %v1577
  %v1866 = vpack.c.b16 %v1596, %v1587
  %v1867 = vpack.c.b16 %v1597, %v1588
  %v1868 = vpack.c.b16 %v1598, %v1589
  %v1869 = vpack.c.b16 %v1599, %v1590
  %v1870 = vpack.c.b16 %v1600, %v1591
  %v1871 = vpack.c.b16 %v1601, %v1592
  %v1872 = vpack.c.b16 %v1602, %v1593
  %v1873 = vpack.c.b16 %v1603, %v1594
  %v1874 = vpack.c.b16 %v1604, %v1595
  %v1875 = vpack.c.b16 %v1614, %v1605
  %v1876 = vpack.c.b16 %v1615, %v1606
  %v1877 = vpack.c.b16 %v1616, %v1607
  %v1878 = vpack.c.b16 %v1617, %v1608
  %v1879 = vpack.c.b16 %v1618, %v1609
  %v1880 = vpack.c.b16 %v1619, %v1610
  %v1881 = vpack.c.b16 %v1620, %v1611
  %v1882 = vpack.c.b16 %v1621, %v1612
  %v1883 = vpack.c.b16 %v1622, %v1613
  %v1884 = vpack.c.b16 %v1632, %v1623
  %v1885 = vpack.c.b16 %v1633, %v1624
  %v1886 = vpack.c.b16 %v1634, %v1625
  %v1887 = vpack.c.b16 %v1635, %v1626
  %v1888 = vpack.c.b16 %v1636, %v1627
  %v1889 = vpack.c.b16 %v1637, %v1628
  %v1890 = vpack.c.b16 %v1638, %v1629
  %v1891 = vpack.c.b16 %v1639, %v1630
  %v1892 = vpack.c.b16 %v1640, %v1631
  %v1893 = vpack.c.b16 %v1650, %v1641
  %v1894 = vpack.c.b16 %v1651, %v1642
  %v1895 = vpack.c.b16 %v1652, %v1643
  %v1896 = vpack.c.b16 %v1653, %v1644
  %v1897 = vpack.c.b16 %v1654, %v1645
  %v1898 = vpack.c.b16 %v1655, %v1646
  %v1899 = vpack.c.b16 %v1656, %v1647
  %v1900 = vpack.c.b16 %v1657, %v1648
  %v1901 = vpack.c.b16 %v1658, %v1649
  %v1902 = vpack.c.b16 %v1668, %v1659
  %v1903 = vpack.c.b16 %v1669, %v1660
  %v1904 = vpack.c.b16 %v1670, %v1661
  %v1905 = vpack.c.b16 %v1671, %v1662
  %v1906 = vpack.c.b16 %v1672, %v1663
  %v1907 = vpack.c.b16 %v1673, %v1664
  %v1908 = vpack.c.b16 %v1674, %v1665
  %v1909 = vpack.c.b16 %v1675, %v1666
  %v1910 = vpack.c.b16 %v1676, %v1667
  %v1911 = vpack.c.b16 %v1686, %v1677
  %v1912 = vpack.c.b16 %v1687, %v1678
  %v1913 = vpack.c.b16 %v1688, %v1679
  %v1914 = vpack.c.b16 %v1689, %v1680
  %v1915 = vpack.c.b16 %v1690, %v1681
  %v1916 = vpack.c.b16 %v1691, %v1682
  %v1917 = vpack.c.b16 %v1692, %v1683
  %v1918 = vpack.c.b16 %v1693, %v1684
  %v1919 = vpack.c.b16 %v1694, %v1685
  %v1920 = vpack.c.b16 %v1704, %v1695
  %v1921 = vpack.c.b16 %v1705, %v1696
  %v1922 = vpack.c.b16 %v1706, %v1697
  %v1923 = vpack.c.b16 %v1707, %v1698
  %v1924 = vpack.c.b16 %v1708, %v1699
  %v1925 = vpack.c.b16 %v1709, %v1700
  %v1926 = vpack.c.b16 %v1710, %v1701
  %v1927 = vpack.c.b16 %v1711, %v1702
  %v1928 = vpack.c.b16 %v1712, %v1703
  %v1929 = vpack.c.b16 %v1722, %v1713
  %v1930 = vpack.c.b16 %v1723, %v1714
  %v1931 = vpack.c.b16 %v1724, %v1715
  %v1932 = vpack.c.b16 %v1725, %v1716
  %v1933 = vpack.c.b16 %v1726, %v1717
  %v1934 = vpack.c.b16 %v1727, %v1718
  %v1935 = vpack.c.b16 %v1728, %v1719
  %v1936 = vpack.c.b16 %v1729, %v1720
  %v1937 = vpack.c.b16 %v1730, %v1721
  %v1938 = vpack.c.b16 %v1740, %v1731
  %v1939 = vpack.c.b16 %v1741, %v1732
  %v1940 = vpack.c.b16 %v1742, %v1733
  %v1941 = vpack.c.b16 %v1743, %v1734
  %v1942 = vpack.c.b16 %v1744, %v1735
  %v1943 = vpack.c.b16 %v1745, %v1736
  %v1944 = vpack.c.b16 %v1746, %v1737
  %v1945 = vpack.c.b16 %v1747, %v1738
  %v1946 = vpack.c.b16 %v1748, %v1739
  %v1947 = vpack.c.b16 %v1758, %v1749
  %v1948 = vpack.c.b16 %v1759, %v1750
  %v1949 = vpack.c.b16 %v1760, %v1751
  %v1950 = vpack.c.b16 %v1761, %v1752
  %v1951 = vpack.c.b16 %v1762, %v1753
  %v1952 = vpack.c.b16 %v1763, %v1754
  %v1953 = vpack.c.b16 %v1764, %v1755
  %v1954 = vpack.c.b16 %v1765, %v1756
  %v1955 = vpack.c.b16 %v1766, %v1757
  %v1956 = vpack.c.b16 %v1776, %v1767
  %v1957 = vpack.c.b16 %v1777, %v1768
  %v1958 = vpack.c.b16 %v1778, %v1769
  %v1959 = vpack.c.b16 %v1779, %v1770
  %v1960 = vpack.c.b16 %v1780, %v1771
  %v1961 = vpack.c.b16 %v1781, %v1772
  %v1962 = vpack.c.b16 %v1782, %v1773
  %v1963 = vpack.c.b16 %v1783, %v1774
  %v1964 = vpack.c.b16 %v1784, %v1775
  %v1965 = vpack.c.b16 %v1794, %v1785
  %v1966 = vpack.c.b16 %v1795, %v1786
  %v1967 = vpack.c.b16 %v1796, %v1787
  %v1968 = vpack.c.b16 %v1797, %v1788
  %v1969 = vpack.c.b16 %v1798, %v1789
  %v1970 = vpack.c.b16 %v1799, %v1790
  %v1971 = vpack.c.b16 %v1800, %v1791
  %v1972 = vpack.c.b16 %v1801, %v1792
  %v1973 = vpack.c.b16 %v1802, %v1793
  %v1974 = vpack.c.b16 %v1812, %v1803
  %v1975 = vpack.c.b16 %v1813, %v1804
  %v1976 = vpack.c.b16 %v1814, %v1805
  %v1977 = vpack.c.b16 %v1815, %v1806
  %v1978 = vpack.c.b16 %v1816, %v1807
  %v1979 = vpack.c.b16 %v1817, %v1808
  %v1980 = vpack.c.b16 %v1818, %v1809
  %v1981 = vpack.c.b16 %v1819, %v1810
  %v1982 = vpack.c.b16 %v1820, %v1811
  %v1983 = vpack.c.b16 %v1830, %v1821
  %v1984 = vpack.c.b16 %v1831, %v1822
  %v1985 = vpack.c.b16 %v1832, %v1823
  %v1986 = vpack.c.b16 %v1833, %v1824
  %v1987 = vpack.c.b16 %v1834, %v1825
  %v1988 = vpack.c.b16 %v1835, %v1826
  %v1989 = vpack.c.b16 %v1836, %v1827
  %v1990 = vpack.c.b16 %v1837, %v1828
  %v1991 = vpack.c.b16 %v1838, %v1829
  %v1992 = vpack.c.b16 %v1848, %v1839
  %v1993 = vpack.c.b16 %v1849, %v1840
  %v1994 = vpack.c.b16 %v1850, %v1841
  %v1995 = vpack.c.b16 %v1851, %v1842
  %v1996 = vpack.c.b16 %v1852, %v1843
  %v1997 = vpack.c.b16 %v1853, %v1844
  %v1998 = vpack.c.b16 %v1854, %v1845
  %v1999 = vpack.c.b16 %v1855, %v1846
  %v2000 = vpack.c.b16 %v1856, %v1847
  %2145 = vmatprep.subr.bf16.mxu0 %v1858
  %2146 = vmatpush1.bf16.msra.mxu0 %v1857
  %2147 = vmatprep.subr.bf16.mxu0 %v1867
  %2148 = vmatpush1.bf16.msra.mxu0 %v1866
  %2149 = vmatprep.subr.bf16.mxu0 %v1876
  %2150 = vmatpush1.bf16.msra.mxu0 %v1875
  %2151 = vmatprep.subr.bf16.mxu0 %v1885
  %2152 = vmatpush1.bf16.msra.mxu0 %v1884
  %2153 = vmatprep.subr.bf16.mxu0 %v1894
  %2154 = vmatpush1.bf16.msra.mxu0 %v1893
  %2155 = vmatprep.subr.bf16.mxu0 %v1903
  %2156 = vmatpush1.bf16.msra.mxu0 %v1902
  %2157 = vmatprep.subr.bf16.mxu0 %v1912
  %2158 = vmatpush1.bf16.msra.mxu0 %v1911
  %2159 = vmatprep.subr.bf16.mxu0 %v1921
  %2160 = vmatpush1.bf16.msra.mxu0 %v1920
  %2161 = vmatprep.subr.bf16.mxu0 %v1930
  %2162 = vmatpush1.bf16.msra.mxu0 %v1929
  %2163 = vmatprep.subr.bf16.mxu0 %v1939
  %2164 = vmatpush1.bf16.msra.mxu0 %v1938
  %2165 = vmatprep.subr.bf16.mxu0 %v1948
  %2166 = vmatpush1.bf16.msra.mxu0 %v1947
  %2167 = vmatprep.subr.bf16.mxu0 %v1957
  %2168 = vmatpush1.bf16.msra.mxu0 %v1956
  %2169 = vmatprep.subr.bf16.mxu0 %v1966
  %2170 = vmatpush1.bf16.msra.mxu0 %v1965
  %2171 = vmatprep.subr.bf16.mxu0 %v1975
  %2172 = vmatpush1.bf16.msra.mxu0 %v1974
  %2173 = vmatprep.subr.bf16.mxu0 %v1984
  %2174 = vmatpush1.bf16.msra.mxu0 %v1983
  %2175 = vmatprep.subr.bf16.mxu0 %v1993
  %2176 = vmatpush1.bf16.msra.mxu0 %v1992
  %2177 = vmatprep.mubr.bf16.mxu0 %v1199
  %2178 = vmatmul.mubr.bf16.gmra.mrb[0].mxu0 %v1198
  %v2179 = vpop.f32.mrb[0].mxu0
  %v2180 = vadd.f32 %v1367, %v2179
  %v2181 = vpop.f32.mrb[0].mxu0
  %v2182 = vadd.f32 %v1371, %v2181
  %v2183 = vpop.f32.mrb[0].mxu0
  %v2184 = vpop.f32.mrb[0].mxu0
  %2185 = vdwg.mxu0
  %2186 = vmatprep.subr.bf16.mxu0 %v1860
  %2187 = vmatpush1.bf16.msra.mxu0 %v1859
  %2188 = vmatprep.subr.bf16.mxu0 %v1869
  %2189 = vmatpush1.bf16.msra.mxu0 %v1868
  %2190 = vmatprep.subr.bf16.mxu0 %v1878
  %2191 = vmatpush1.bf16.msra.mxu0 %v1877
  %2192 = vmatprep.subr.bf16.mxu0 %v1887
  %2193 = vmatpush1.bf16.msra.mxu0 %v1886
  %2194 = vmatprep.subr.bf16.mxu0 %v1896
  %2195 = vmatpush1.bf16.msra.mxu0 %v1895
  %2196 = vmatprep.subr.bf16.mxu0 %v1905
  %2197 = vmatpush1.bf16.msra.mxu0 %v1904
  %2198 = vmatprep.subr.bf16.mxu0 %v1914
  %2199 = vmatpush1.bf16.msra.mxu0 %v1913
  %2200 = vmatprep.subr.bf16.mxu0 %v1923
  %2201 = vmatpush1.bf16.msra.mxu0 %v1922
  %2202 = vmatprep.subr.bf16.mxu0 %v1932
  %2203 = vmatpush1.bf16.msra.mxu0 %v1931
  %2204 = vmatprep.subr.bf16.mxu0 %v1941
  %2205 = vmatpush1.bf16.msra.mxu0 %v1940
  %2206 = vmatprep.subr.bf16.mxu0 %v1950
  %2207 = vmatpush1.bf16.msra.mxu0 %v1949
  %2208 = vmatprep.subr.bf16.mxu0 %v1959
  %2209 = vmatpush1.bf16.msra.mxu0 %v1958
  %2210 = vmatprep.subr.bf16.mxu0 %v1968
  %2211 = vmatpush1.bf16.msra.mxu0 %v1967
  %2212 = vmatprep.subr.bf16.mxu0 %v1977
  %2213 = vmatpush1.bf16.msra.mxu0 %v1976
  %2214 = vmatprep.subr.bf16.mxu0 %v1986
  %2215 = vmatpush1.bf16.msra.mxu0 %v1985
  %2216 = vmatprep.subr.bf16.mxu0 %v1995
  %2217 = vmatpush1.bf16.msra.mxu0 %v1994
  %2218 = vmatprep.mubr.bf16.mxu0 %v1199
  %2219 = vmatmul.mubr.bf16.gmra.mrb[0].mxu0 %v1198
  %v2220 = vpop.f32.mrb[0].mxu0
  %v2221 = vadd.f32 %v1375, %v2220
  %v2222 = vpop.f32.mrb[0].mxu0
  %v2223 = vadd.f32 %v1379, %v2222
  %v2224 = vpop.f32.mrb[0].mxu0
  %v2225 = vpop.f32.mrb[0].mxu0
  %2226 = vdwg.mxu0
  %2227 = vmatprep.subr.bf16.mxu0 %v1862
  %2228 = vmatpush1.bf16.msra.mxu0 %v1861
  %2229 = vmatprep.subr.bf16.mxu0 %v1871
  %2230 = vmatpush1.bf16.msra.mxu0 %v1870
  %2231 = vmatprep.subr.bf16.mxu0 %v1880
  %2232 = vmatpush1.bf16.msra.mxu0 %v1879
  %2233 = vmatprep.subr.bf16.mxu0 %v1889
  %2234 = vmatpush1.bf16.msra.mxu0 %v1888
  %2235 = vmatprep.subr.bf16.mxu0 %v1898
  %2236 = vmatpush1.bf16.msra.mxu0 %v1897
  %2237 = vmatprep.subr.bf16.mxu0 %v1907
  %2238 = vmatpush1.bf16.msra.mxu0 %v1906
  %2239 = vmatprep.subr.bf16.mxu0 %v1916
  %2240 = vmatpush1.bf16.msra.mxu0 %v1915
  %2241 = vmatprep.subr.bf16.mxu0 %v1925
  %2242 = vmatpush1.bf16.msra.mxu0 %v1924
  %2243 = vmatprep.subr.bf16.mxu0 %v1934
  %2244 = vmatpush1.bf16.msra.mxu0 %v1933
  %2245 = vmatprep.subr.bf16.mxu0 %v1943
  %2246 = vmatpush1.bf16.msra.mxu0 %v1942
  %2247 = vmatprep.subr.bf16.mxu0 %v1952
  %2248 = vmatpush1.bf16.msra.mxu0 %v1951
  %2249 = vmatprep.subr.bf16.mxu0 %v1961
  %2250 = vmatpush1.bf16.msra.mxu0 %v1960
  %2251 = vmatprep.subr.bf16.mxu0 %v1970
  %2252 = vmatpush1.bf16.msra.mxu0 %v1969
  %2253 = vmatprep.subr.bf16.mxu0 %v1979
  %2254 = vmatpush1.bf16.msra.mxu0 %v1978
  %2255 = vmatprep.subr.bf16.mxu0 %v1988
  %2256 = vmatpush1.bf16.msra.mxu0 %v1987
  %2257 = vmatprep.subr.bf16.mxu0 %v1997
  %2258 = vmatpush1.bf16.msra.mxu0 %v1996
  %2259 = vmatprep.mubr.bf16.mxu0 %v1199
  %2260 = vmatmul.mubr.bf16.gmra.mrb[0].mxu0 %v1198
  %v2261 = vpop.f32.mrb[0].mxu0
  %v2262 = vadd.f32 %v1383, %v2261
  %v2263 = vpop.f32.mrb[0].mxu0
  %v2264 = vadd.f32 %v1387, %v2263
  %v2265 = vpop.f32.mrb[0].mxu0
  %v2266 = vpop.f32.mrb[0].mxu0
  %2267 = vdwg.mxu0
  %2268 = vmatprep.subr.bf16.mxu0 %v1864
  %2269 = vmatpush1.bf16.msra.mxu0 %v1863
  %2270 = vmatprep.subr.bf16.mxu0 %v1873
  %2271 = vmatpush1.bf16.msra.mxu0 %v1872
  %2272 = vmatprep.subr.bf16.mxu0 %v1882
  %2273 = vmatpush1.bf16.msra.mxu0 %v1881
  %2274 = vmatprep.subr.bf16.mxu0 %v1891
  %2275 = vmatpush1.bf16.msra.mxu0 %v1890
  %2276 = vmatprep.subr.bf16.mxu0 %v1900
  %2277 = vmatpush1.bf16.msra.mxu0 %v1899
  %2278 = vmatprep.subr.bf16.mxu0 %v1909
  %2279 = vmatpush1.bf16.msra.mxu0 %v1908
  %2280 = vmatprep.subr.bf16.mxu0 %v1918
  %2281 = vmatpush1.bf16.msra.mxu0 %v1917
  %2282 = vmatprep.subr.bf16.mxu0 %v1927
  %2283 = vmatpush1.bf16.msra.mxu0 %v1926
  %2284 = vmatprep.subr.bf16.mxu0 %v1936
  %2285 = vmatpush1.bf16.msra.mxu0 %v1935
  %2286 = vmatprep.subr.bf16.mxu0 %v1945
  %2287 = vmatpush1.bf16.msra.mxu0 %v1944
  %2288 = vmatprep.subr.bf16.mxu0 %v1954
  %2289 = vmatpush1.bf16.msra.mxu0 %v1953
  %2290 = vmatprep.subr.bf16.mxu0 %v1963
  %2291 = vmatpush1.bf16.msra.mxu0 %v1962
  %2292 = vmatprep.subr.bf16.mxu0 %v1972
  %2293 = vmatpush1.bf16.msra.mxu0 %v1971
  %2294 = vmatprep.subr.bf16.mxu0 %v1981
  %2295 = vmatpush1.bf16.msra.mxu0 %v1980
  %2296 = vmatprep.subr.bf16.mxu0 %v1990
  %2297 = vmatpush1.bf16.msra.mxu0 %v1989
  %2298 = vmatprep.subr.bf16.mxu0 %v1999
  %2299 = vmatpush1.bf16.msra.mxu0 %v1998
  %2300 = vmatprep.mubr.bf16.mxu0 %v1199
  %2301 = vmatmul.mubr.bf16.gmra.mrb[0].mxu0 %v1198
  %v2302 = vpop.f32.mrb[0].mxu0
  %v2303 = vadd.f32 %v1391, %v2302
  %v2304 = vpop.f32.mrb[0].mxu0
  %v2305 = vadd.f32 %v1395, %v2304
  %v2306 = vpop.f32.mrb[0].mxu0
  %v2307 = vpop.f32.mrb[0].mxu0
  %2308 = vdwg.mxu0
  %2309 = vmatprep.subr.bf16.mxu0 0
  %2310 = vmatpush1.bf16.msra.mxu0 %v1865
  %2311 = vmatprep.subr.bf16.mxu0 0
  %2312 = vmatpush1.bf16.msra.mxu0 %v1874
  %2313 = vmatprep.subr.bf16.mxu0 0
  %2314 = vmatpush1.bf16.msra.mxu0 %v1883
  %2315 = vmatprep.subr.bf16.mxu0 0
  %2316 = vmatpush1.bf16.msra.mxu0 %v1892
  %2317 = vmatprep.subr.bf16.mxu0 0
  %2318 = vmatpush1.bf16.msra.mxu0 %v1901
  %2319 = vmatprep.subr.bf16.mxu0 0
  %2320 = vmatpush1.bf16.msra.mxu0 %v1910
  %2321 = vmatprep.subr.bf16.mxu0 0
  %2322 = vmatpush1.bf16.msra.mxu0 %v1919
  %2323 = vmatprep.subr.bf16.mxu0 0
  %2324 = vmatpush1.bf16.msra.mxu0 %v1928
  %2325 = vmatprep.subr.bf16.mxu0 0
  %2326 = vmatpush1.bf16.msra.mxu0 %v1937
  %2327 = vmatprep.subr.bf16.mxu0 0
  %2328 = vmatpush1.bf16.msra.mxu0 %v1946
  %2329 = vmatprep.subr.bf16.mxu0 0
  %2330 = vmatpush1.bf16.msra.mxu0 %v1955
  %2331 = vmatprep.subr.bf16.mxu0 0
  %2332 = vmatpush1.bf16.msra.mxu0 %v1964
  %2333 = vmatprep.subr.bf16.mxu0 0
  %2334 = vmatpush1.bf16.msra.mxu0 %v1973
  %2335 = vmatprep.subr.bf16.mxu0 0
  %2336 = vmatpush1.bf16.msra.mxu0 %v1982
  %2337 = vmatprep.subr.bf16.mxu0 0
  %2338 = vmatpush1.bf16.msra.mxu0 %v1991
  %2339 = vmatprep.subr.bf16.mxu0 0
  %2340 = vmatpush1.bf16.msra.mxu0 %v2000
  %2341 = vmatprep.mubr.bf16.mxu0 %v1199
  %2342 = vmatmul.mubr.bf16.gmra.mrb[0].mxu0 %v1198
  %v2343 = vpop.f32.mrb[0].mxu0
  %v2344 = vadd.f32 %v1399, %v2343
  %v2345 = vpop.f32.mrb[0].mxu0
  %v2346 = vpop.f32.mrb[0].mxu0
  %v2347 = vpop.f32.mrb[0].mxu0
  %2348 = vdwg.mxu0
  %v2349 = vadd.s32 %v58, 256
  %v2350 = vadd.s32 %v58, 264
  %v2351 = vadd.s32 %v58, 272
  %v2352 = vadd.s32 %v58, 280
  %v2353 = vadd.s32 %v58, 288
  %v2354 = vadd.s32 %v58, 296
  %v2355 = vadd.s32 %v58, 304
  %v2356 = vadd.s32 %v58, 312
  %v2357 = vadd.s32 %v58, 320
  %v2358 = vadd.s32 %v58, 328
  %v2359 = vadd.s32 %v58, 336
  %v2360 = vadd.s32 %v58, 344
  %v2361 = vadd.s32 %v58, 352
  %v2362 = vadd.s32 %v58, 360
  %v2363 = vadd.s32 %v58, 368
  %v2364 = vadd.s32 %v58, 376
  %v2365 = vadd.s32 %v58, 384
  %v2366 = vadd.s32 %v58, 392
  %v2367 = vadd.s32 %v58, 400
  %v2368 = vadd.s32 %v58, 408
  %v2369 = vadd.s32 %v58, 416
  %v2370 = vadd.s32 %v58, 424
  %v2371 = vadd.s32 %v58, 432
  %v2372 = vadd.s32 %v58, 440
  %v2373 = vadd.s32 %v58, 448
  %v2374 = vadd.s32 %v58, 456
  %v2375 = vadd.s32 %v58, 464
  %v2376 = vadd.s32 %v58, 472
  %v2377 = vadd.s32 %v58, 480
  %v2378 = vadd.s32 %v58, 488
  %v2379 = vadd.s32 %v58, 496
  %v2380 = vadd.s32 %v58, 504
  %v2381 = vadd.s32 %v58, 512
  %v2382 = vadd.s32 %v58, 520
  %v2383 = vadd.s32 %v58, 528
  %v2384 = vadd.s32 %v58, 536
  %v2385 = vadd.s32 %v58, 544
  %v2386 = vadd.s32 %v58, 552
  %v2387 = vadd.s32 %v58, 560
  %v2388 = vadd.s32 %v58, 568
  %v2389 = vadd.s32 %v58, 576
  %v2390 = vadd.s32 %v58, 584
  %v2391 = vadd.s32 %v58, 592
  %v2392 = vadd.s32 %v58, 600
  %v2393 = vadd.s32 %v58, 608
  %v2394 = vadd.s32 %v58, 616
  %v2395 = vadd.s32 %v58, 624
  %v2396 = vadd.s32 %v58, 632
  %v2397 = vadd.s32 %v58, 640
  %v2398 = vadd.s32 %v58, 648
  %v2399 = vadd.s32 %v58, 656
  %v2400 = vadd.s32 %v58, 664
  %v2401 = vadd.s32 %v58, 672
  %v2402 = vadd.s32 %v58, 680
  %v2403 = vadd.s32 %v58, 688
  %v2404 = vadd.s32 %v58, 696
  %v2405 = vadd.s32 %v58, 704
  %v2406 = vadd.s32 %v58, 712
  %v2407 = vadd.s32 %v58, 720
  %v2408 = vadd.s32 %v58, 728
  %v2409 = vadd.s32 %v58, 736
  %v2410 = vadd.s32 %v58, 744
  %v2411 = vadd.s32 %v58, 752
  %v2412 = vadd.s32 %v58, 760
  %v2413 = vadd.s32 %v58, 768
  %v2414 = vadd.s32 %v58, 776
  %v2415 = vadd.s32 %v58, 784
  %v2416 = vadd.s32 %v58, 792
  %v2417 = vadd.s32 %v58, 800
  %v2418 = vadd.s32 %v58, 808
  %v2419 = vadd.s32 %v58, 816
  %v2420 = vadd.s32 %v58, 824
  %v2421 = vadd.s32 %v58, 832
  %v2422 = vadd.s32 %v58, 840
  %v2423 = vadd.s32 %v58, 848
  %v2424 = vadd.s32 %v58, 856
  %v2425 = vadd.s32 %v58, 864
  %v2426 = vadd.s32 %v58, 872
  %v2427 = vadd.s32 %v58, 880
  %v2428 = vadd.s32 %v58, 888
  %v2429 = vadd.s32 %v58, 896
  %v2430 = vadd.s32 %v58, 904
  %v2431 = vadd.s32 %v58, 912
  %v2432 = vadd.s32 %v58, 920
  %v2433 = vadd.s32 %v58, 928
  %v2434 = vadd.s32 %v58, 936
  %v2435 = vadd.s32 %v58, 944
  %v2436 = vadd.s32 %v58, 952
  %v2437 = vadd.s32 %v58, 960
  %v2438 = vadd.s32 %v58, 968
  %v2439 = vadd.s32 %v58, 976
  %v2440 = vadd.s32 %v58, 984
  %v2441 = vadd.s32 %v58, 992
  %v2442 = vadd.s32 %v58, 1000
  %v2443 = vadd.s32 %v58, 1008
  %v2444 = vadd.s32 %v58, 1016
  %v2445 = vadd.s32 %v58, 1024
  %v2446 = vadd.s32 %v58, 1032
  %v2447 = vadd.s32 %v58, 1040
  %v2448 = vadd.s32 %v58, 1048
  %v2449 = vmul.u32 %v564, 33
  %vm2450 = vcmp.ge.s32.totalorder %v58, %v2449
  %vm2451 = vcmp.ge.s32.totalorder %v532, %v2449
  %vm2452 = vcmp.ge.s32.totalorder %v533, %v2449
  %vm2453 = vcmp.ge.s32.totalorder %v534, %v2449
  %vm2454 = vcmp.ge.s32.totalorder %v535, %v2449
  %vm2455 = vcmp.ge.s32.totalorder %v536, %v2449
  %vm2456 = vcmp.ge.s32.totalorder %v537, %v2449
  %vm2457 = vcmp.ge.s32.totalorder %v538, %v2449
  %vm2458 = vcmp.ge.s32.totalorder %v539, %v2449
  %vm2459 = vcmp.ge.s32.totalorder %v540, %v2449
  %vm2460 = vcmp.ge.s32.totalorder %v541, %v2449
  %vm2461 = vcmp.ge.s32.totalorder %v542, %v2449
  %vm2462 = vcmp.ge.s32.totalorder %v543, %v2449
  %vm2463 = vcmp.ge.s32.totalorder %v544, %v2449
  %vm2464 = vcmp.ge.s32.totalorder %v545, %v2449
  %vm2465 = vcmp.ge.s32.totalorder %v546, %v2449
  %vm2466 = vcmp.ge.s32.totalorder %v547, %v2449
  %vm2467 = vcmp.ge.s32.totalorder %v548, %v2449
  %vm2468 = vcmp.ge.s32.totalorder %v549, %v2449
  %vm2469 = vcmp.ge.s32.totalorder %v550, %v2449
  %vm2470 = vcmp.ge.s32.totalorder %v551, %v2449
  %vm2471 = vcmp.ge.s32.totalorder %v552, %v2449
  %vm2472 = vcmp.ge.s32.totalorder %v553, %v2449
  %vm2473 = vcmp.ge.s32.totalorder %v554, %v2449
  %vm2474 = vcmp.ge.s32.totalorder %v555, %v2449
  %vm2475 = vcmp.ge.s32.totalorder %v556, %v2449
  %vm2476 = vcmp.ge.s32.totalorder %v557, %v2449
  %vm2477 = vcmp.ge.s32.totalorder %v558, %v2449
  %vm2478 = vcmp.ge.s32.totalorder %v559, %v2449
  %vm2479 = vcmp.ge.s32.totalorder %v560, %v2449
  %vm2480 = vcmp.ge.s32.totalorder %v561, %v2449
  %vm2481 = vcmp.ge.s32.totalorder %v562, %v2449
  %vm2482 = vcmp.ge.s32.totalorder %v2349, %v2449
  %vm2483 = vcmp.ge.s32.totalorder %v2350, %v2449
  %vm2484 = vcmp.ge.s32.totalorder %v2351, %v2449
  %vm2485 = vcmp.ge.s32.totalorder %v2352, %v2449
  %vm2486 = vcmp.ge.s32.totalorder %v2353, %v2449
  %vm2487 = vcmp.ge.s32.totalorder %v2354, %v2449
  %vm2488 = vcmp.ge.s32.totalorder %v2355, %v2449
  %vm2489 = vcmp.ge.s32.totalorder %v2356, %v2449
  %vm2490 = vcmp.ge.s32.totalorder %v2357, %v2449
  %vm2491 = vcmp.ge.s32.totalorder %v2358, %v2449
  %vm2492 = vcmp.ge.s32.totalorder %v2359, %v2449
  %vm2493 = vcmp.ge.s32.totalorder %v2360, %v2449
  %vm2494 = vcmp.ge.s32.totalorder %v2361, %v2449
  %vm2495 = vcmp.ge.s32.totalorder %v2362, %v2449
  %vm2496 = vcmp.ge.s32.totalorder %v2363, %v2449
  %vm2497 = vcmp.ge.s32.totalorder %v2364, %v2449
  %vm2498 = vcmp.ge.s32.totalorder %v2365, %v2449
  %vm2499 = vcmp.ge.s32.totalorder %v2366, %v2449
  %vm2500 = vcmp.ge.s32.totalorder %v2367, %v2449
  %vm2501 = vcmp.ge.s32.totalorder %v2368, %v2449
  %vm2502 = vcmp.ge.s32.totalorder %v2369, %v2449
  %vm2503 = vcmp.ge.s32.totalorder %v2370, %v2449
  %vm2504 = vcmp.ge.s32.totalorder %v2371, %v2449
  %vm2505 = vcmp.ge.s32.totalorder %v2372, %v2449
  %vm2506 = vcmp.ge.s32.totalorder %v2373, %v2449
  %vm2507 = vcmp.ge.s32.totalorder %v2374, %v2449
  %vm2508 = vcmp.ge.s32.totalorder %v2375, %v2449
  %vm2509 = vcmp.ge.s32.totalorder %v2376, %v2449
  %vm2510 = vcmp.ge.s32.totalorder %v2377, %v2449
  %vm2511 = vcmp.ge.s32.totalorder %v2378, %v2449
  %vm2512 = vcmp.ge.s32.totalorder %v2379, %v2449
  %vm2513 = vcmp.ge.s32.totalorder %v2380, %v2449
  %vm2514 = vcmp.ge.s32.totalorder %v2381, %v2449
  %vm2515 = vcmp.ge.s32.totalorder %v2382, %v2449
  %vm2516 = vcmp.ge.s32.totalorder %v2383, %v2449
  %vm2517 = vcmp.ge.s32.totalorder %v2384, %v2449
  %vm2518 = vcmp.ge.s32.totalorder %v2385, %v2449
  %vm2519 = vcmp.ge.s32.totalorder %v2386, %v2449
  %vm2520 = vcmp.ge.s32.totalorder %v2387, %v2449
  %vm2521 = vcmp.ge.s32.totalorder %v2388, %v2449
  %vm2522 = vcmp.ge.s32.totalorder %v2389, %v2449
  %vm2523 = vcmp.ge.s32.totalorder %v2390, %v2449
  %vm2524 = vcmp.ge.s32.totalorder %v2391, %v2449
  %vm2525 = vcmp.ge.s32.totalorder %v2392, %v2449
  %vm2526 = vcmp.ge.s32.totalorder %v2393, %v2449
  %vm2527 = vcmp.ge.s32.totalorder %v2394, %v2449
  %vm2528 = vcmp.ge.s32.totalorder %v2395, %v2449
  %vm2529 = vcmp.ge.s32.totalorder %v2396, %v2449
  %vm2530 = vcmp.ge.s32.totalorder %v2397, %v2449
  %vm2531 = vcmp.ge.s32.totalorder %v2398, %v2449
  %vm2532 = vcmp.ge.s32.totalorder %v2399, %v2449
  %vm2533 = vcmp.ge.s32.totalorder %v2400, %v2449
  %vm2534 = vcmp.ge.s32.totalorder %v2401, %v2449
  %vm2535 = vcmp.ge.s32.totalorder %v2402, %v2449
  %vm2536 = vcmp.ge.s32.totalorder %v2403, %v2449
  %vm2537 = vcmp.ge.s32.totalorder %v2404, %v2449
  %vm2538 = vcmp.ge.s32.totalorder %v2405, %v2449
  %vm2539 = vcmp.ge.s32.totalorder %v2406, %v2449
  %vm2540 = vcmp.ge.s32.totalorder %v2407, %v2449
  %vm2541 = vcmp.ge.s32.totalorder %v2408, %v2449
  %vm2542 = vcmp.ge.s32.totalorder %v2409, %v2449
  %vm2543 = vcmp.ge.s32.totalorder %v2410, %v2449
  %vm2544 = vcmp.ge.s32.totalorder %v2411, %v2449
  %vm2545 = vcmp.ge.s32.totalorder %v2412, %v2449
  %vm2546 = vcmp.ge.s32.totalorder %v2413, %v2449
  %vm2547 = vcmp.ge.s32.totalorder %v2414, %v2449
  %vm2548 = vcmp.ge.s32.totalorder %v2415, %v2449
  %vm2549 = vcmp.ge.s32.totalorder %v2416, %v2449
  %vm2550 = vcmp.ge.s32.totalorder %v2417, %v2449
  %vm2551 = vcmp.ge.s32.totalorder %v2418, %v2449
  %vm2552 = vcmp.ge.s32.totalorder %v2419, %v2449
  %vm2553 = vcmp.ge.s32.totalorder %v2420, %v2449
  %vm2554 = vcmp.ge.s32.totalorder %v2421, %v2449
  %vm2555 = vcmp.ge.s32.totalorder %v2422, %v2449
  %vm2556 = vcmp.ge.s32.totalorder %v2423, %v2449
  %vm2557 = vcmp.ge.s32.totalorder %v2424, %v2449
  %vm2558 = vcmp.ge.s32.totalorder %v2425, %v2449
  %vm2559 = vcmp.ge.s32.totalorder %v2426, %v2449
  %vm2560 = vcmp.ge.s32.totalorder %v2427, %v2449
  %vm2561 = vcmp.ge.s32.totalorder %v2428, %v2449
  %vm2562 = vcmp.ge.s32.totalorder %v2429, %v2449
  %vm2563 = vcmp.ge.s32.totalorder %v2430, %v2449
  %vm2564 = vcmp.ge.s32.totalorder %v2431, %v2449
  %vm2565 = vcmp.ge.s32.totalorder %v2432, %v2449
  %vm2566 = vcmp.ge.s32.totalorder %v2433, %v2449
  %vm2567 = vcmp.ge.s32.totalorder %v2434, %v2449
  %vm2568 = vcmp.ge.s32.totalorder %v2435, %v2449
  %vm2569 = vcmp.ge.s32.totalorder %v2436, %v2449
  %vm2570 = vcmp.ge.s32.totalorder %v2437, %v2449
  %vm2571 = vcmp.ge.s32.totalorder %v2438, %v2449
  %vm2572 = vcmp.ge.s32.totalorder %v2439, %v2449
  %vm2573 = vcmp.ge.s32.totalorder %v2440, %v2449
  %vm2574 = vcmp.ge.s32.totalorder %v2441, %v2449
  %vm2575 = vcmp.ge.s32.totalorder %v2442, %v2449
  %vm2576 = vcmp.ge.s32.totalorder %v2443, %v2449
  %vm2577 = vcmp.ge.s32.totalorder %v2444, %v2449
  %vm2578 = vcmp.ge.s32.totalorder %v2445, %v2449
  %vm2579 = vcmp.ge.s32.totalorder %v2446, %v2449
  %vm2580 = vcmp.ge.s32.totalorder %v2447, %v2449
  %vm2581 = vcmp.ge.s32.totalorder %v2448, %v2449
  %v2582 = vmul.u32 %v598, 33
  %vm2583 = vcmp.lt.s32.totalorder %v58, %v2582
  %vm2584 = vcmp.lt.s32.totalorder %v532, %v2582
  %vm2585 = vcmp.lt.s32.totalorder %v533, %v2582
  %vm2586 = vcmp.lt.s32.totalorder %v534, %v2582
  %vm2587 = vcmp.lt.s32.totalorder %v535, %v2582
  %vm2588 = vcmp.lt.s32.totalorder %v536, %v2582
  %vm2589 = vcmp.lt.s32.totalorder %v537, %v2582
  %vm2590 = vcmp.lt.s32.totalorder %v538, %v2582
  %vm2591 = vcmp.lt.s32.totalorder %v539, %v2582
  %vm2592 = vcmp.lt.s32.totalorder %v540, %v2582
  %vm2593 = vcmp.lt.s32.totalorder %v541, %v2582
  %vm2594 = vcmp.lt.s32.totalorder %v542, %v2582
  %vm2595 = vcmp.lt.s32.totalorder %v543, %v2582
  %vm2596 = vcmp.lt.s32.totalorder %v544, %v2582
  %vm2597 = vcmp.lt.s32.totalorder %v545, %v2582
  %vm2598 = vcmp.lt.s32.totalorder %v546, %v2582
  %vm2599 = vcmp.lt.s32.totalorder %v547, %v2582
  %vm2600 = vcmp.lt.s32.totalorder %v548, %v2582
  %vm2601 = vcmp.lt.s32.totalorder %v549, %v2582
  %vm2602 = vcmp.lt.s32.totalorder %v550, %v2582
  %vm2603 = vcmp.lt.s32.totalorder %v551, %v2582
  %vm2604 = vcmp.lt.s32.totalorder %v552, %v2582
  %vm2605 = vcmp.lt.s32.totalorder %v553, %v2582
  %vm2606 = vcmp.lt.s32.totalorder %v554, %v2582
  %vm2607 = vcmp.lt.s32.totalorder %v555, %v2582
  %vm2608 = vcmp.lt.s32.totalorder %v556, %v2582
  %vm2609 = vcmp.lt.s32.totalorder %v557, %v2582
  %vm2610 = vcmp.lt.s32.totalorder %v558, %v2582
  %vm2611 = vcmp.lt.s32.totalorder %v559, %v2582
  %vm2612 = vcmp.lt.s32.totalorder %v560, %v2582
  %vm2613 = vcmp.lt.s32.totalorder %v561, %v2582
  %vm2614 = vcmp.lt.s32.totalorder %v562, %v2582
  %vm2615 = vcmp.lt.s32.totalorder %v2349, %v2582
  %vm2616 = vcmp.lt.s32.totalorder %v2350, %v2582
  %vm2617 = vcmp.lt.s32.totalorder %v2351, %v2582
  %vm2618 = vcmp.lt.s32.totalorder %v2352, %v2582
  %vm2619 = vcmp.lt.s32.totalorder %v2353, %v2582
  %vm2620 = vcmp.lt.s32.totalorder %v2354, %v2582
  %vm2621 = vcmp.lt.s32.totalorder %v2355, %v2582
  %vm2622 = vcmp.lt.s32.totalorder %v2356, %v2582
  %vm2623 = vcmp.lt.s32.totalorder %v2357, %v2582
  %vm2624 = vcmp.lt.s32.totalorder %v2358, %v2582
  %vm2625 = vcmp.lt.s32.totalorder %v2359, %v2582
  %vm2626 = vcmp.lt.s32.totalorder %v2360, %v2582
  %vm2627 = vcmp.lt.s32.totalorder %v2361, %v2582
  %vm2628 = vcmp.lt.s32.totalorder %v2362, %v2582
  %vm2629 = vcmp.lt.s32.totalorder %v2363, %v2582
  %vm2630 = vcmp.lt.s32.totalorder %v2364, %v2582
  %vm2631 = vcmp.lt.s32.totalorder %v2365, %v2582
  %vm2632 = vcmp.lt.s32.totalorder %v2366, %v2582
  %vm2633 = vcmp.lt.s32.totalorder %v2367, %v2582
  %vm2634 = vcmp.lt.s32.totalorder %v2368, %v2582
  %vm2635 = vcmp.lt.s32.totalorder %v2369, %v2582
  %vm2636 = vcmp.lt.s32.totalorder %v2370, %v2582
  %vm2637 = vcmp.lt.s32.totalorder %v2371, %v2582
  %vm2638 = vcmp.lt.s32.totalorder %v2372, %v2582
  %vm2639 = vcmp.lt.s32.totalorder %v2373, %v2582
  %vm2640 = vcmp.lt.s32.totalorder %v2374, %v2582
  %vm2641 = vcmp.lt.s32.totalorder %v2375, %v2582
  %vm2642 = vcmp.lt.s32.totalorder %v2376, %v2582
  %vm2643 = vcmp.lt.s32.totalorder %v2377, %v2582
  %vm2644 = vcmp.lt.s32.totalorder %v2378, %v2582
  %vm2645 = vcmp.lt.s32.totalorder %v2379, %v2582
  %vm2646 = vcmp.lt.s32.totalorder %v2380, %v2582
  %vm2647 = vcmp.lt.s32.totalorder %v2381, %v2582
  %vm2648 = vcmp.lt.s32.totalorder %v2382, %v2582
  %vm2649 = vcmp.lt.s32.totalorder %v2383, %v2582
  %vm2650 = vcmp.lt.s32.totalorder %v2384, %v2582
  %vm2651 = vcmp.lt.s32.totalorder %v2385, %v2582
  %vm2652 = vcmp.lt.s32.totalorder %v2386, %v2582
  %vm2653 = vcmp.lt.s32.totalorder %v2387, %v2582
  %vm2654 = vcmp.lt.s32.totalorder %v2388, %v2582
  %vm2655 = vcmp.lt.s32.totalorder %v2389, %v2582
  %vm2656 = vcmp.lt.s32.totalorder %v2390, %v2582
  %vm2657 = vcmp.lt.s32.totalorder %v2391, %v2582
  %vm2658 = vcmp.lt.s32.totalorder %v2392, %v2582
  %vm2659 = vcmp.lt.s32.totalorder %v2393, %v2582
  %vm2660 = vcmp.lt.s32.totalorder %v2394, %v2582
  %vm2661 = vcmp.lt.s32.totalorder %v2395, %v2582
  %vm2662 = vcmp.lt.s32.totalorder %v2396, %v2582
  %vm2663 = vcmp.lt.s32.totalorder %v2397, %v2582
  %vm2664 = vcmp.lt.s32.totalorder %v2398, %v2582
  %vm2665 = vcmp.lt.s32.totalorder %v2399, %v2582
  %vm2666 = vcmp.lt.s32.totalorder %v2400, %v2582
  %vm2667 = vcmp.lt.s32.totalorder %v2401, %v2582
  %vm2668 = vcmp.lt.s32.totalorder %v2402, %v2582
  %vm2669 = vcmp.lt.s32.totalorder %v2403, %v2582
  %vm2670 = vcmp.lt.s32.totalorder %v2404, %v2582
  %vm2671 = vcmp.lt.s32.totalorder %v2405, %v2582
  %vm2672 = vcmp.lt.s32.totalorder %v2406, %v2582
  %vm2673 = vcmp.lt.s32.totalorder %v2407, %v2582
  %vm2674 = vcmp.lt.s32.totalorder %v2408, %v2582
  %vm2675 = vcmp.lt.s32.totalorder %v2409, %v2582
  %vm2676 = vcmp.lt.s32.totalorder %v2410, %v2582
  %vm2677 = vcmp.lt.s32.totalorder %v2411, %v2582
  %vm2678 = vcmp.lt.s32.totalorder %v2412, %v2582
  %vm2679 = vcmp.lt.s32.totalorder %v2413, %v2582
  %vm2680 = vcmp.lt.s32.totalorder %v2414, %v2582
  %vm2681 = vcmp.lt.s32.totalorder %v2415, %v2582
  %vm2682 = vcmp.lt.s32.totalorder %v2416, %v2582
  %vm2683 = vcmp.lt.s32.totalorder %v2417, %v2582
  %vm2684 = vcmp.lt.s32.totalorder %v2418, %v2582
  %vm2685 = vcmp.lt.s32.totalorder %v2419, %v2582
  %vm2686 = vcmp.lt.s32.totalorder %v2420, %v2582
  %vm2687 = vcmp.lt.s32.totalorder %v2421, %v2582
  %vm2688 = vcmp.lt.s32.totalorder %v2422, %v2582
  %vm2689 = vcmp.lt.s32.totalorder %v2423, %v2582
  %vm2690 = vcmp.lt.s32.totalorder %v2424, %v2582
  %vm2691 = vcmp.lt.s32.totalorder %v2425, %v2582
  %vm2692 = vcmp.lt.s32.totalorder %v2426, %v2582
  %vm2693 = vcmp.lt.s32.totalorder %v2427, %v2582
  %vm2694 = vcmp.lt.s32.totalorder %v2428, %v2582
  %vm2695 = vcmp.lt.s32.totalorder %v2429, %v2582
  %vm2696 = vcmp.lt.s32.totalorder %v2430, %v2582
  %vm2697 = vcmp.lt.s32.totalorder %v2431, %v2582
  %vm2698 = vcmp.lt.s32.totalorder %v2432, %v2582
  %vm2699 = vcmp.lt.s32.totalorder %v2433, %v2582
  %vm2700 = vcmp.lt.s32.totalorder %v2434, %v2582
  %vm2701 = vcmp.lt.s32.totalorder %v2435, %v2582
  %vm2702 = vcmp.lt.s32.totalorder %v2436, %v2582
  %vm2703 = vcmp.lt.s32.totalorder %v2437, %v2582
  %vm2704 = vcmp.lt.s32.totalorder %v2438, %v2582
  %vm2705 = vcmp.lt.s32.totalorder %v2439, %v2582
  %vm2706 = vcmp.lt.s32.totalorder %v2440, %v2582
  %vm2707 = vcmp.lt.s32.totalorder %v2441, %v2582
  %vm2708 = vcmp.lt.s32.totalorder %v2442, %v2582
  %vm2709 = vcmp.lt.s32.totalorder %v2443, %v2582
  %vm2710 = vcmp.lt.s32.totalorder %v2444, %v2582
  %vm2711 = vcmp.lt.s32.totalorder %v2445, %v2582
  %vm2712 = vcmp.lt.s32.totalorder %v2446, %v2582
  %vm2713 = vcmp.lt.s32.totalorder %v2447, %v2582
  %vm2714 = vcmp.lt.s32.totalorder %v2448, %v2582
  %vm2715 = vmand %vm2450, %vm2583
  %vm2716 = vmand %vm2451, %vm2584
  %vm2717 = vmand %vm2452, %vm2585
  %vm2718 = vmand %vm2453, %vm2586
  %vm2719 = vmand %vm2454, %vm2587
  %vm2720 = vmand %vm2455, %vm2588
  %vm2721 = vmand %vm2456, %vm2589
  %vm2722 = vmand %vm2457, %vm2590
  %vm2723 = vmand %vm2458, %vm2591
  %vm2724 = vmand %vm2459, %vm2592
  %vm2725 = vmand %vm2460, %vm2593
  %vm2726 = vmand %vm2461, %vm2594
  %vm2727 = vmand %vm2462, %vm2595
  %vm2728 = vmand %vm2463, %vm2596
  %vm2729 = vmand %vm2464, %vm2597
  %vm2730 = vmand %vm2465, %vm2598
  %vm2731 = vmand %vm2466, %vm2599
  %vm2732 = vmand %vm2467, %vm2600
  %vm2733 = vmand %vm2468, %vm2601
  %vm2734 = vmand %vm2469, %vm2602
  %vm2735 = vmand %vm2470, %vm2603
  %vm2736 = vmand %vm2471, %vm2604
  %vm2737 = vmand %vm2472, %vm2605
  %vm2738 = vmand %vm2473, %vm2606
  %vm2739 = vmand %vm2474, %vm2607
  %vm2740 = vmand %vm2475, %vm2608
  %vm2741 = vmand %vm2476, %vm2609
  %vm2742 = vmand %vm2477, %vm2610
  %vm2743 = vmand %vm2478, %vm2611
  %vm2744 = vmand %vm2479, %vm2612
  %vm2745 = vmand %vm2480, %vm2613
  %vm2746 = vmand %vm2481, %vm2614
  %vm2747 = vmand %vm2482, %vm2615
  %vm2748 = vmand %vm2483, %vm2616
  %vm2749 = vmand %vm2484, %vm2617
  %vm2750 = vmand %vm2485, %vm2618
  %vm2751 = vmand %vm2486, %vm2619
  %vm2752 = vmand %vm2487, %vm2620
  %vm2753 = vmand %vm2488, %vm2621
  %vm2754 = vmand %vm2489, %vm2622
  %vm2755 = vmand %vm2490, %vm2623
  %vm2756 = vmand %vm2491, %vm2624
  %vm2757 = vmand %vm2492, %vm2625
  %vm2758 = vmand %vm2493, %vm2626
  %vm2759 = vmand %vm2494, %vm2627
  %vm2760 = vmand %vm2495, %vm2628
  %vm2761 = vmand %vm2496, %vm2629
  %vm2762 = vmand %vm2497, %vm2630
  %vm2763 = vmand %vm2498, %vm2631
  %vm2764 = vmand %vm2499, %vm2632
  %vm2765 = vmand %vm2500, %vm2633
  %vm2766 = vmand %vm2501, %vm2634
  %vm2767 = vmand %vm2502, %vm2635
  %vm2768 = vmand %vm2503, %vm2636
  %vm2769 = vmand %vm2504, %vm2637
  %vm2770 = vmand %vm2505, %vm2638
  %vm2771 = vmand %vm2506, %vm2639
  %vm2772 = vmand %vm2507, %vm2640
  %vm2773 = vmand %vm2508, %vm2641
  %vm2774 = vmand %vm2509, %vm2642
  %vm2775 = vmand %vm2510, %vm2643
  %vm2776 = vmand %vm2511, %vm2644
  %vm2777 = vmand %vm2512, %vm2645
  %vm2778 = vmand %vm2513, %vm2646
  %vm2779 = vmand %vm2514, %vm2647
  %vm2780 = vmand %vm2515, %vm2648
  %vm2781 = vmand %vm2516, %vm2649
  %vm2782 = vmand %vm2517, %vm2650
  %vm2783 = vmand %vm2518, %vm2651
  %vm2784 = vmand %vm2519, %vm2652
  %vm2785 = vmand %vm2520, %vm2653
  %vm2786 = vmand %vm2521, %vm2654
  %vm2787 = vmand %vm2522, %vm2655
  %vm2788 = vmand %vm2523, %vm2656
  %vm2789 = vmand %vm2524, %vm2657
  %vm2790 = vmand %vm2525, %vm2658
  %vm2791 = vmand %vm2526, %vm2659
  %vm2792 = vmand %vm2527, %vm2660
  %vm2793 = vmand %vm2528, %vm2661
  %vm2794 = vmand %vm2529, %vm2662
  %vm2795 = vmand %vm2530, %vm2663
  %vm2796 = vmand %vm2531, %vm2664
  %vm2797 = vmand %vm2532, %vm2665
  %vm2798 = vmand %vm2533, %vm2666
  %vm2799 = vmand %vm2534, %vm2667
  %vm2800 = vmand %vm2535, %vm2668
  %vm2801 = vmand %vm2536, %vm2669
  %vm2802 = vmand %vm2537, %vm2670
  %vm2803 = vmand %vm2538, %vm2671
  %vm2804 = vmand %vm2539, %vm2672
  %vm2805 = vmand %vm2540, %vm2673
  %vm2806 = vmand %vm2541, %vm2674
  %vm2807 = vmand %vm2542, %vm2675
  %vm2808 = vmand %vm2543, %vm2676
  %vm2809 = vmand %vm2544, %vm2677
  %vm2810 = vmand %vm2545, %vm2678
  %vm2811 = vmand %vm2546, %vm2679
  %vm2812 = vmand %vm2547, %vm2680
  %vm2813 = vmand %vm2548, %vm2681
  %vm2814 = vmand %vm2549, %vm2682
  %vm2815 = vmand %vm2550, %vm2683
  %vm2816 = vmand %vm2551, %vm2684
  %vm2817 = vmand %vm2552, %vm2685
  %vm2818 = vmand %vm2553, %vm2686
  %vm2819 = vmand %vm2554, %vm2687
  %vm2820 = vmand %vm2555, %vm2688
  %vm2821 = vmand %vm2556, %vm2689
  %vm2822 = vmand %vm2557, %vm2690
  %vm2823 = vmand %vm2558, %vm2691
  %vm2824 = vmand %vm2559, %vm2692
  %vm2825 = vmand %vm2560, %vm2693
  %vm2826 = vmand %vm2561, %vm2694
  %vm2827 = vmand %vm2562, %vm2695
  %vm2828 = vmand %vm2563, %vm2696
  %vm2829 = vmand %vm2564, %vm2697
  %vm2830 = vmand %vm2565, %vm2698
  %vm2831 = vmand %vm2566, %vm2699
  %vm2832 = vmand %vm2567, %vm2700
  %vm2833 = vmand %vm2568, %vm2701
  %vm2834 = vmand %vm2569, %vm2702
  %vm2835 = vmand %vm2570, %vm2703
  %vm2836 = vmand %vm2571, %vm2704
  %vm2837 = vmand %vm2572, %vm2705
  %vm2838 = vmand %vm2573, %vm2706
  %vm2839 = vmand %vm2574, %vm2707
  %vm2840 = vmand %vm2575, %vm2708
  %vm2841 = vmand %vm2576, %vm2709
  %vm2842 = vmand %vm2577, %vm2710
  %vm2843 = vmand %vm2578, %vm2711
  %vm2844 = vmand %vm2579, %vm2712
  %vm2845 = vmand %vm2580, %vm2713
  %vm2846 = vmand %vm2581, %vm2714
  %v2847 = vsel %vm2715, 1, 0
  %v2848 = vsel %vm2716, 1, 0
  %v2849 = vsel %vm2717, 1, 0
  %v2850 = vsel %vm2718, 1, 0
  %v2851 = vsel %vm2719, 1, 0
  %v2852 = vsel %vm2720, 1, 0
  %v2853 = vsel %vm2721, 1, 0
  %v2854 = vsel %vm2722, 1, 0
  %v2855 = vsel %vm2723, 1, 0
  %v2856 = vsel %vm2724, 1, 0
  %v2857 = vsel %vm2725, 1, 0
  %v2858 = vsel %vm2726, 1, 0
  %v2859 = vsel %vm2727, 1, 0
  %v2860 = vsel %vm2728, 1, 0
  %v2861 = vsel %vm2729, 1, 0
  %v2862 = vsel %vm2730, 1, 0
  %v2863 = vsel %vm2731, 1, 0
  %v2864 = vsel %vm2732, 1, 0
  %v2865 = vsel %vm2733, 1, 0
  %v2866 = vsel %vm2734, 1, 0
  %v2867 = vsel %vm2735, 1, 0
  %v2868 = vsel %vm2736, 1, 0
  %v2869 = vsel %vm2737, 1, 0
  %v2870 = vsel %vm2738, 1, 0
  %v2871 = vsel %vm2739, 1, 0
  %v2872 = vsel %vm2740, 1, 0
  %v2873 = vsel %vm2741, 1, 0
  %v2874 = vsel %vm2742, 1, 0
  %v2875 = vsel %vm2743, 1, 0
  %v2876 = vsel %vm2744, 1, 0
  %v2877 = vsel %vm2745, 1, 0
  %v2878 = vsel %vm2746, 1, 0
  %v2879 = vsel %vm2747, 1, 0
  %v2880 = vsel %vm2748, 1, 0
  %v2881 = vsel %vm2749, 1, 0
  %v2882 = vsel %vm2750, 1, 0
  %v2883 = vsel %vm2751, 1, 0
  %v2884 = vsel %vm2752, 1, 0
  %v2885 = vsel %vm2753, 1, 0
  %v2886 = vsel %vm2754, 1, 0
  %v2887 = vsel %vm2755, 1, 0
  %v2888 = vsel %vm2756, 1, 0
  %v2889 = vsel %vm2757, 1, 0
  %v2890 = vsel %vm2758, 1, 0
  %v2891 = vsel %vm2759, 1, 0
  %v2892 = vsel %vm2760, 1, 0
  %v2893 = vsel %vm2761, 1, 0
  %v2894 = vsel %vm2762, 1, 0
  %v2895 = vsel %vm2763, 1, 0
  %v2896 = vsel %vm2764, 1, 0
  %v2897 = vsel %vm2765, 1, 0
  %v2898 = vsel %vm2766, 1, 0
  %v2899 = vsel %vm2767, 1, 0
  %v2900 = vsel %vm2768, 1, 0
  %v2901 = vsel %vm2769, 1, 0
  %v2902 = vsel %vm2770, 1, 0
  %v2903 = vsel %vm2771, 1, 0
  %v2904 = vsel %vm2772, 1, 0
  %v2905 = vsel %vm2773, 1, 0
  %v2906 = vsel %vm2774, 1, 0
  %v2907 = vsel %vm2775, 1, 0
  %v2908 = vsel %vm2776, 1, 0
  %v2909 = vsel %vm2777, 1, 0
  %v2910 = vsel %vm2778, 1, 0
  %v2911 = vsel %vm2779, 1, 0
  %v2912 = vsel %vm2780, 1, 0
  %v2913 = vsel %vm2781, 1, 0
  %v2914 = vsel %vm2782, 1, 0
  %v2915 = vsel %vm2783, 1, 0
  %v2916 = vsel %vm2784, 1, 0
  %v2917 = vsel %vm2785, 1, 0
  %v2918 = vsel %vm2786, 1, 0
  %v2919 = vsel %vm2787, 1, 0
  %v2920 = vsel %vm2788, 1, 0
  %v2921 = vsel %vm2789, 1, 0
  %v2922 = vsel %vm2790, 1, 0
  %v2923 = vsel %vm2791, 1, 0
  %v2924 = vsel %vm2792, 1, 0
  %v2925 = vsel %vm2793, 1, 0
  %v2926 = vsel %vm2794, 1, 0
  %v2927 = vsel %vm2795, 1, 0
  %v2928 = vsel %vm2796, 1, 0
  %v2929 = vsel %vm2797, 1, 0
  %v2930 = vsel %vm2798, 1, 0
  %v2931 = vsel %vm2799, 1, 0
  %v2932 = vsel %vm2800, 1, 0
  %v2933 = vsel %vm2801, 1, 0
  %v2934 = vsel %vm2802, 1, 0
  %v2935 = vsel %vm2803, 1, 0
  %v2936 = vsel %vm2804, 1, 0
  %v2937 = vsel %vm2805, 1, 0
  %v2938 = vsel %vm2806, 1, 0
  %v2939 = vsel %vm2807, 1, 0
  %v2940 = vsel %vm2808, 1, 0
  %v2941 = vsel %vm2809, 1, 0
  %v2942 = vsel %vm2810, 1, 0
  %v2943 = vsel %vm2811, 1, 0
  %v2944 = vsel %vm2812, 1, 0
  %v2945 = vsel %vm2813, 1, 0
  %v2946 = vsel %vm2814, 1, 0
  %v2947 = vsel %vm2815, 1, 0
  %v2948 = vsel %vm2816, 1, 0
  %v2949 = vsel %vm2817, 1, 0
  %v2950 = vsel %vm2818, 1, 0
  %v2951 = vsel %vm2819, 1, 0
  %v2952 = vsel %vm2820, 1, 0
  %v2953 = vsel %vm2821, 1, 0
  %v2954 = vsel %vm2822, 1, 0
  %v2955 = vsel %vm2823, 1, 0
  %v2956 = vsel %vm2824, 1, 0
  %v2957 = vsel %vm2825, 1, 0
  %v2958 = vsel %vm2826, 1, 0
  %v2959 = vsel %vm2827, 1, 0
  %v2960 = vsel %vm2828, 1, 0
  %v2961 = vsel %vm2829, 1, 0
  %v2962 = vsel %vm2830, 1, 0
  %v2963 = vsel %vm2831, 1, 0
  %v2964 = vsel %vm2832, 1, 0
  %v2965 = vsel %vm2833, 1, 0
  %v2966 = vsel %vm2834, 1, 0
  %v2967 = vsel %vm2835, 1, 0
  %v2968 = vsel %vm2836, 1, 0
  %v2969 = vsel %vm2837, 1, 0
  %v2970 = vsel %vm2838, 1, 0
  %v2971 = vsel %vm2839, 1, 0
  %v2972 = vsel %vm2840, 1, 0
  %v2973 = vsel %vm2841, 1, 0
  %v2974 = vsel %vm2842, 1, 0
  %v2975 = vsel %vm2843, 1, 0
  %v2976 = vsel %vm2844, 1, 0
  %v2977 = vsel %vm2845, 1, 0
  %v2978 = vsel %vm2846, 1, 0
  %v2979 = vcvt.s32.f32 %v2847
  %v2980 = vcvt.s32.f32 %v2848
  %v2981 = vcvt.s32.f32 %v2849
  %v2982 = vcvt.s32.f32 %v2850
  %v2983 = vcvt.s32.f32 %v2851
  %v2984 = vcvt.s32.f32 %v2852
  %v2985 = vcvt.s32.f32 %v2853
  %v2986 = vcvt.s32.f32 %v2854
  %v2987 = vcvt.s32.f32 %v2855
  %v2988 = vcvt.s32.f32 %v2856
  %v2989 = vcvt.s32.f32 %v2857
  %v2990 = vcvt.s32.f32 %v2858
  %v2991 = vcvt.s32.f32 %v2859
  %v2992 = vcvt.s32.f32 %v2860
  %v2993 = vcvt.s32.f32 %v2861
  %v2994 = vcvt.s32.f32 %v2862
  %v2995 = vcvt.s32.f32 %v2863
  %v2996 = vcvt.s32.f32 %v2864
  %v2997 = vcvt.s32.f32 %v2865
  %v2998 = vcvt.s32.f32 %v2866
  %v2999 = vcvt.s32.f32 %v2867
  %v3000 = vcvt.s32.f32 %v2868
  %v3001 = vcvt.s32.f32 %v2869
  %v3002 = vcvt.s32.f32 %v2870
  %v3003 = vcvt.s32.f32 %v2871
  %v3004 = vcvt.s32.f32 %v2872
  %v3005 = vcvt.s32.f32 %v2873
  %v3006 = vcvt.s32.f32 %v2874
  %v3007 = vcvt.s32.f32 %v2875
  %v3008 = vcvt.s32.f32 %v2876
  %v3009 = vcvt.s32.f32 %v2877
  %v3010 = vcvt.s32.f32 %v2878
  %v3011 = vcvt.s32.f32 %v2879
  %v3012 = vcvt.s32.f32 %v2880
  %v3013 = vcvt.s32.f32 %v2881
  %v3014 = vcvt.s32.f32 %v2882
  %v3015 = vcvt.s32.f32 %v2883
  %v3016 = vcvt.s32.f32 %v2884
  %v3017 = vcvt.s32.f32 %v2885
  %v3018 = vcvt.s32.f32 %v2886
  %v3019 = vcvt.s32.f32 %v2887
  %v3020 = vcvt.s32.f32 %v2888
  %v3021 = vcvt.s32.f32 %v2889
  %v3022 = vcvt.s32.f32 %v2890
  %v3023 = vcvt.s32.f32 %v2891
  %v3024 = vcvt.s32.f32 %v2892
  %v3025 = vcvt.s32.f32 %v2893
  %v3026 = vcvt.s32.f32 %v2894
  %v3027 = vcvt.s32.f32 %v2895
  %v3028 = vcvt.s32.f32 %v2896
  %v3029 = vcvt.s32.f32 %v2897
  %v3030 = vcvt.s32.f32 %v2898
  %v3031 = vcvt.s32.f32 %v2899
  %v3032 = vcvt.s32.f32 %v2900
  %v3033 = vcvt.s32.f32 %v2901
  %v3034 = vcvt.s32.f32 %v2902
  %v3035 = vcvt.s32.f32 %v2903
  %v3036 = vcvt.s32.f32 %v2904
  %v3037 = vcvt.s32.f32 %v2905
  %v3038 = vcvt.s32.f32 %v2906
  %v3039 = vcvt.s32.f32 %v2907
  %v3040 = vcvt.s32.f32 %v2908
  %v3041 = vcvt.s32.f32 %v2909
  %v3042 = vcvt.s32.f32 %v2910
  %v3043 = vcvt.s32.f32 %v2911
  %v3044 = vcvt.s32.f32 %v2912
  %v3045 = vcvt.s32.f32 %v2913
  %v3046 = vcvt.s32.f32 %v2914
  %v3047 = vcvt.s32.f32 %v2915
  %v3048 = vcvt.s32.f32 %v2916
  %v3049 = vcvt.s32.f32 %v2917
  %v3050 = vcvt.s32.f32 %v2918
  %v3051 = vcvt.s32.f32 %v2919
  %v3052 = vcvt.s32.f32 %v2920
  %v3053 = vcvt.s32.f32 %v2921
  %v3054 = vcvt.s32.f32 %v2922
  %v3055 = vcvt.s32.f32 %v2923
  %v3056 = vcvt.s32.f32 %v2924
  %v3057 = vcvt.s32.f32 %v2925
  %v3058 = vcvt.s32.f32 %v2926
  %v3059 = vcvt.s32.f32 %v2927
  %v3060 = vcvt.s32.f32 %v2928
  %v3061 = vcvt.s32.f32 %v2929
  %v3062 = vcvt.s32.f32 %v2930
  %v3063 = vcvt.s32.f32 %v2931
  %v3064 = vcvt.s32.f32 %v2932
  %v3065 = vcvt.s32.f32 %v2933
  %v3066 = vcvt.s32.f32 %v2934
  %v3067 = vcvt.s32.f32 %v2935
  %v3068 = vcvt.s32.f32 %v2936
  %v3069 = vcvt.s32.f32 %v2937
  %v3070 = vcvt.s32.f32 %v2938
  %v3071 = vcvt.s32.f32 %v2939
  %v3072 = vcvt.s32.f32 %v2940
  %v3073 = vcvt.s32.f32 %v2941
  %v3074 = vcvt.s32.f32 %v2942
  %v3075 = vcvt.s32.f32 %v2943
  %v3076 = vcvt.s32.f32 %v2944
  %v3077 = vcvt.s32.f32 %v2945
  %v3078 = vcvt.s32.f32 %v2946
  %v3079 = vcvt.s32.f32 %v2947
  %v3080 = vcvt.s32.f32 %v2948
  %v3081 = vcvt.s32.f32 %v2949
  %v3082 = vcvt.s32.f32 %v2950
  %v3083 = vcvt.s32.f32 %v2951
  %v3084 = vcvt.s32.f32 %v2952
  %v3085 = vcvt.s32.f32 %v2953
  %v3086 = vcvt.s32.f32 %v2954
  %v3087 = vcvt.s32.f32 %v2955
  %v3088 = vcvt.s32.f32 %v2956
  %v3089 = vcvt.s32.f32 %v2957
  %v3090 = vcvt.s32.f32 %v2958
  %v3091 = vcvt.s32.f32 %v2959
  %v3092 = vcvt.s32.f32 %v2960
  %v3093 = vcvt.s32.f32 %v2961
  %v3094 = vcvt.s32.f32 %v2962
  %v3095 = vcvt.s32.f32 %v2963
  %v3096 = vcvt.s32.f32 %v2964
  %v3097 = vcvt.s32.f32 %v2965
  %v3098 = vcvt.s32.f32 %v2966
  %v3099 = vcvt.s32.f32 %v2967
  %v3100 = vcvt.s32.f32 %v2968
  %v3101 = vcvt.s32.f32 %v2969
  %v3102 = vcvt.s32.f32 %v2970
  %v3103 = vcvt.s32.f32 %v2971
  %v3104 = vcvt.s32.f32 %v2972
  %v3105 = vcvt.s32.f32 %v2973
  %v3106 = vcvt.s32.f32 %v2974
  %v3107 = vcvt.s32.f32 %v2975
  %v3108 = vcvt.s32.f32 %v2976
  %v3109 = vcvt.s32.f32 %v2977
  %v3110 = vcvt.s32.f32 %v2978
  %v3111 = vadd.s32 %v564, 256
  %v3112 = vadd.s32 %v564, 384
  %v3113 = vadd.s32 %v564, 512
  %v3114 = vadd.s32 %v564, 640
  %v3115 = vadd.s32 %v564, 768
  %v3116 = vadd.s32 %v564, 896
  %v3117 = vadd.s32 %v564, 1024
  %v3118 = vmul.u32 %v58, 33
  %v3119 = vmul.u32 %v532, 33
  %v3120 = vmul.u32 %v533, 33
  %v3121 = vmul.u32 %v534, 33
  %vm3122 = vcmp.ge.s32.totalorder %v564, %v3118
  %vm3123 = vcmp.ge.s32.totalorder %v728, %v3118
  %vm3124 = vcmp.ge.s32.totalorder %v3111, %v3118
  %vm3125 = vcmp.ge.s32.totalorder %v3112, %v3118
  %vm3126 = vcmp.ge.s32.totalorder %v3113, %v3118
  %vm3127 = vcmp.ge.s32.totalorder %v3114, %v3118
  %vm3128 = vcmp.ge.s32.totalorder %v3115, %v3118
  %vm3129 = vcmp.ge.s32.totalorder %v3116, %v3118
  %vm3130 = vcmp.ge.s32.totalorder %v3117, %v3118
  %vm3131 = vcmp.ge.s32.totalorder %v564, %v3119
  %vm3132 = vcmp.ge.s32.totalorder %v728, %v3119
  %vm3133 = vcmp.ge.s32.totalorder %v3111, %v3119
  %vm3134 = vcmp.ge.s32.totalorder %v3112, %v3119
  %vm3135 = vcmp.ge.s32.totalorder %v3113, %v3119
  %vm3136 = vcmp.ge.s32.totalorder %v3114, %v3119
  %vm3137 = vcmp.ge.s32.totalorder %v3115, %v3119
  %vm3138 = vcmp.ge.s32.totalorder %v3116, %v3119
  %vm3139 = vcmp.ge.s32.totalorder %v3117, %v3119
  %vm3140 = vcmp.ge.s32.totalorder %v564, %v3120
  %vm3141 = vcmp.ge.s32.totalorder %v728, %v3120
  %vm3142 = vcmp.ge.s32.totalorder %v3111, %v3120
  %vm3143 = vcmp.ge.s32.totalorder %v3112, %v3120
  %vm3144 = vcmp.ge.s32.totalorder %v3113, %v3120
  %vm3145 = vcmp.ge.s32.totalorder %v3114, %v3120
  %vm3146 = vcmp.ge.s32.totalorder %v3115, %v3120
  %vm3147 = vcmp.ge.s32.totalorder %v3116, %v3120
  %vm3148 = vcmp.ge.s32.totalorder %v3117, %v3120
  %vm3149 = vcmp.ge.s32.totalorder %v564, %v3121
  %vm3150 = vcmp.ge.s32.totalorder %v728, %v3121
  %vm3151 = vcmp.ge.s32.totalorder %v3111, %v3121
  %vm3152 = vcmp.ge.s32.totalorder %v3112, %v3121
  %vm3153 = vcmp.ge.s32.totalorder %v3113, %v3121
  %vm3154 = vcmp.ge.s32.totalorder %v3114, %v3121
  %vm3155 = vcmp.ge.s32.totalorder %v3115, %v3121
  %vm3156 = vcmp.ge.s32.totalorder %v3116, %v3121
  %vm3157 = vcmp.ge.s32.totalorder %v3117, %v3121
  %v3158 = vadd.s32 %v533, 1
  %v3159 = vadd.s32 %v534, 1
  %v3160 = vmul.u32 %v735, 33
  %v3161 = vmul.u32 %v736, 33
  %v3162 = vmul.u32 %v3158, 33
  %v3163 = vmul.u32 %v3159, 33
  %vm3164 = vcmp.lt.s32.totalorder %v564, %v3160
  %vm3165 = vcmp.lt.s32.totalorder %v728, %v3160
  %vm3166 = vcmp.lt.s32.totalorder %v3111, %v3160
  %vm3167 = vcmp.lt.s32.totalorder %v3112, %v3160
  %vm3168 = vcmp.lt.s32.totalorder %v3113, %v3160
  %vm3169 = vcmp.lt.s32.totalorder %v3114, %v3160
  %vm3170 = vcmp.lt.s32.totalorder %v3115, %v3160
  %vm3171 = vcmp.lt.s32.totalorder %v3116, %v3160
  %vm3172 = vcmp.lt.s32.totalorder %v3117, %v3160
  %vm3173 = vcmp.lt.s32.totalorder %v564, %v3161
  %vm3174 = vcmp.lt.s32.totalorder %v728, %v3161
  %vm3175 = vcmp.lt.s32.totalorder %v3111, %v3161
  %vm3176 = vcmp.lt.s32.totalorder %v3112, %v3161
  %vm3177 = vcmp.lt.s32.totalorder %v3113, %v3161
  %vm3178 = vcmp.lt.s32.totalorder %v3114, %v3161
  %vm3179 = vcmp.lt.s32.totalorder %v3115, %v3161
  %vm3180 = vcmp.lt.s32.totalorder %v3116, %v3161
  %vm3181 = vcmp.lt.s32.totalorder %v3117, %v3161
  %vm3182 = vcmp.lt.s32.totalorder %v564, %v3162
  %vm3183 = vcmp.lt.s32.totalorder %v728, %v3162
  %vm3184 = vcmp.lt.s32.totalorder %v3111, %v3162
  %vm3185 = vcmp.lt.s32.totalorder %v3112, %v3162
  %vm3186 = vcmp.lt.s32.totalorder %v3113, %v3162
  %vm3187 = vcmp.lt.s32.totalorder %v3114, %v3162
  %vm3188 = vcmp.lt.s32.totalorder %v3115, %v3162
  %vm3189 = vcmp.lt.s32.totalorder %v3116, %v3162
  %vm3190 = vcmp.lt.s32.totalorder %v3117, %v3162
  %vm3191 = vcmp.lt.s32.totalorder %v564, %v3163
  %vm3192 = vcmp.lt.s32.totalorder %v728, %v3163
  %vm3193 = vcmp.lt.s32.totalorder %v3111, %v3163
  %vm3194 = vcmp.lt.s32.totalorder %v3112, %v3163
  %vm3195 = vcmp.lt.s32.totalorder %v3113, %v3163
  %vm3196 = vcmp.lt.s32.totalorder %v3114, %v3163
  %vm3197 = vcmp.lt.s32.totalorder %v3115, %v3163
  %vm3198 = vcmp.lt.s32.totalorder %v3116, %v3163
  %vm3199 = vcmp.lt.s32.totalorder %v3117, %v3163
  %vm3200 = vmand %vm3122, %vm3164
  %vm3201 = vmand %vm3123, %vm3165
  %vm3202 = vmand %vm3124, %vm3166
  %vm3203 = vmand %vm3125, %vm3167
  %vm3204 = vmand %vm3126, %vm3168
  %vm3205 = vmand %vm3127, %vm3169
  %vm3206 = vmand %vm3128, %vm3170
  %vm3207 = vmand %vm3129, %vm3171
  %vm3208 = vmand %vm3130, %vm3172
  %vm3209 = vmand %vm3131, %vm3173
  %vm3210 = vmand %vm3132, %vm3174
  %vm3211 = vmand %vm3133, %vm3175
  %vm3212 = vmand %vm3134, %vm3176
  %vm3213 = vmand %vm3135, %vm3177
  %vm3214 = vmand %vm3136, %vm3178
  %vm3215 = vmand %vm3137, %vm3179
  %vm3216 = vmand %vm3138, %vm3180
  %vm3217 = vmand %vm3139, %vm3181
  %vm3218 = vmand %vm3140, %vm3182
  %vm3219 = vmand %vm3141, %vm3183
  %vm3220 = vmand %vm3142, %vm3184
  %vm3221 = vmand %vm3143, %vm3185
  %vm3222 = vmand %vm3144, %vm3186
  %vm3223 = vmand %vm3145, %vm3187
  %vm3224 = vmand %vm3146, %vm3188
  %vm3225 = vmand %vm3147, %vm3189
  %vm3226 = vmand %vm3148, %vm3190
  %vm3227 = vmand %vm3149, %vm3191
  %vm3228 = vmand %vm3150, %vm3192
  %vm3229 = vmand %vm3151, %vm3193
  %vm3230 = vmand %vm3152, %vm3194
  %vm3231 = vmand %vm3153, %vm3195
  %vm3232 = vmand %vm3154, %vm3196
  %vm3233 = vmand %vm3155, %vm3197
  %vm3234 = vmand %vm3156, %vm3198
  %vm3235 = vmand %vm3157, %vm3199
  %v3236 = vsel %vm3200, 1, 0
  %v3237 = vsel %vm3201, 1, 0
  %v3238 = vsel %vm3202, 1, 0
  %v3239 = vsel %vm3203, 1, 0
  %v3240 = vsel %vm3204, 1, 0
  %v3241 = vsel %vm3205, 1, 0
  %v3242 = vsel %vm3206, 1, 0
  %v3243 = vsel %vm3207, 1, 0
  %v3244 = vsel %vm3208, 1, 0
  %v3245 = vsel %vm3209, 1, 0
  %v3246 = vsel %vm3210, 1, 0
  %v3247 = vsel %vm3211, 1, 0
  %v3248 = vsel %vm3212, 1, 0
  %v3249 = vsel %vm3213, 1, 0
  %v3250 = vsel %vm3214, 1, 0
  %v3251 = vsel %vm3215, 1, 0
  %v3252 = vsel %vm3216, 1, 0
  %v3253 = vsel %vm3217, 1, 0
  %v3254 = vsel %vm3218, 1, 0
  %v3255 = vsel %vm3219, 1, 0
  %v3256 = vsel %vm3220, 1, 0
  %v3257 = vsel %vm3221, 1, 0
  %v3258 = vsel %vm3222, 1, 0
  %v3259 = vsel %vm3223, 1, 0
  %v3260 = vsel %vm3224, 1, 0
  %v3261 = vsel %vm3225, 1, 0
  %v3262 = vsel %vm3226, 1, 0
  %v3263 = vsel %vm3227, 1, 0
  %v3264 = vsel %vm3228, 1, 0
  %v3265 = vsel %vm3229, 1, 0
  %v3266 = vsel %vm3230, 1, 0
  %v3267 = vsel %vm3231, 1, 0
  %v3268 = vsel %vm3232, 1, 0
  %v3269 = vsel %vm3233, 1, 0
  %v3270 = vsel %vm3234, 1, 0
  %v3271 = vsel %vm3235, 1, 0
  %v3272 = vcvt.s32.f32 %v3236
  %v3273 = vcvt.s32.f32 %v3237
  %v3274 = vcvt.s32.f32 %v3238
  %v3275 = vcvt.s32.f32 %v3239
  %v3276 = vcvt.s32.f32 %v3240
  %v3277 = vcvt.s32.f32 %v3241
  %v3278 = vcvt.s32.f32 %v3242
  %v3279 = vcvt.s32.f32 %v3243
  %v3280 = vcvt.s32.f32 %v3244
  %v3281 = vcvt.s32.f32 %v3245
  %v3282 = vcvt.s32.f32 %v3246
  %v3283 = vcvt.s32.f32 %v3247
  %v3284 = vcvt.s32.f32 %v3248
  %v3285 = vcvt.s32.f32 %v3249
  %v3286 = vcvt.s32.f32 %v3250
  %v3287 = vcvt.s32.f32 %v3251
  %v3288 = vcvt.s32.f32 %v3252
  %v3289 = vcvt.s32.f32 %v3253
  %v3290 = vcvt.s32.f32 %v3254
  %v3291 = vcvt.s32.f32 %v3255
  %v3292 = vcvt.s32.f32 %v3256
  %v3293 = vcvt.s32.f32 %v3257
  %v3294 = vcvt.s32.f32 %v3258
  %v3295 = vcvt.s32.f32 %v3259
  %v3296 = vcvt.s32.f32 %v3260
  %v3297 = vcvt.s32.f32 %v3261
  %v3298 = vcvt.s32.f32 %v3262
  %v3299 = vcvt.s32.f32 %v3263
  %v3300 = vcvt.s32.f32 %v3264
  %v3301 = vcvt.s32.f32 %v3265
  %v3302 = vcvt.s32.f32 %v3266
  %v3303 = vcvt.s32.f32 %v3267
  %v3304 = vcvt.s32.f32 %v3268
  %v3305 = vcvt.s32.f32 %v3269
  %v3306 = vcvt.s32.f32 %v3270
  %v3307 = vcvt.s32.f32 %v3271
  %s3308 = smul.f32 %s56, 33.0
  %v3309 = vstv %s3308
  %v3310 = vrcp.pop %v3309
  %s3311 = vtos %v3310
  %v3312 = vmul.f32 %v2180, %v62
  %v3313 = vmul.f32 %v2182, %v62
  %v3314 = vmul.f32 %v2221, %v62
  %v3315 = vmul.f32 %v2223, %v62
  %v3316 = vmul.f32 %v2262, %v62
  %v3317 = vmul.f32 %v2264, %v62
  %v3318 = vmul.f32 %v2303, %v62
  %v3319 = vmul.f32 %v2305, %v62
  %v3320 = vmul.f32 %v2344, %v62
  %v3321 = vrot.slane %v3312, 4
  %v3322 = vadd.f32 %v3312, %v3321
  %v3323 = vrot.slane %v3322, 2
  %v3324 = vadd.f32 %v3322, %v3323
  %v3325 = vrot.slane %v3324, 1
  %v3326 = vadd.f32 %v3324, %v3325
  %v3327 = vrot.slane %v3313, 4
  %v3328 = vadd.f32 %v3313, %v3327
  %v3329 = vrot.slane %v3328, 2
  %v3330 = vadd.f32 %v3328, %v3329
  %v3331 = vrot.slane %v3330, 1
  %v3332 = vadd.f32 %v3330, %v3331
  %v3333 = vrot.slane %v3314, 4
  %v3334 = vadd.f32 %v3314, %v3333
  %v3335 = vrot.slane %v3334, 2
  %v3336 = vadd.f32 %v3334, %v3335
  %v3337 = vrot.slane %v3336, 1
  %v3338 = vadd.f32 %v3336, %v3337
  %v3339 = vrot.slane %v3315, 4
  %v3340 = vadd.f32 %v3315, %v3339
  %v3341 = vrot.slane %v3340, 2
  %v3342 = vadd.f32 %v3340, %v3341
  %v3343 = vrot.slane %v3342, 1
  %v3344 = vadd.f32 %v3342, %v3343
  %v3345 = vrot.slane %v3316, 4
  %v3346 = vadd.f32 %v3316, %v3345
  %v3347 = vrot.slane %v3346, 2
  %v3348 = vadd.f32 %v3346, %v3347
  %v3349 = vrot.slane %v3348, 1
  %v3350 = vadd.f32 %v3348, %v3349
  %v3351 = vrot.slane %v3317, 4
  %v3352 = vadd.f32 %v3317, %v3351
  %v3353 = vrot.slane %v3352, 2
  %v3354 = vadd.f32 %v3352, %v3353
  %v3355 = vrot.slane %v3354, 1
  %v3356 = vadd.f32 %v3354, %v3355
  %v3357 = vrot.slane %v3318, 4
  %v3358 = vadd.f32 %v3318, %v3357
  %v3359 = vrot.slane %v3358, 2
  %v3360 = vadd.f32 %v3358, %v3359
  %v3361 = vrot.slane %v3360, 1
  %v3362 = vadd.f32 %v3360, %v3361
  %v3363 = vrot.slane %v3319, 4
  %v3364 = vadd.f32 %v3319, %v3363
  %v3365 = vrot.slane %v3364, 2
  %v3366 = vadd.f32 %v3364, %v3365
  %v3367 = vrot.slane %v3366, 1
  %v3368 = vadd.f32 %v3366, %v3367
  %vm3369 = vcmask 261120
  %v3370 = vsel %vm3369, %v3320, 0.0
  %v3371 = vrot.slane %v3370, 4
  %v3372 = vadd.f32 %v3370, %v3371
  %v3373 = vrot.slane %v3372, 2
  %v3374 = vadd.f32 %v3372, %v3373
  %v3375 = vrot.slane %v3374, 1
  %v3376 = vadd.f32 %v3374, %v3375
  %v3378 = vsel %vm3369, %v3376, 0
  %3380 = vmatprep.subr.mxu0 0.0
  %3381 = vmatpush1.msra.mxu0 %v2979
  %3382 = vmatprep.subr.mxu0 0.0
  %3383 = vmatpush1.msra.mxu0 %v2980
  %3384 = vmatprep.subr.mxu0 0.0
  %3385 = vmatpush1.msra.mxu0 %v2981
  %3386 = vmatprep.subr.mxu0 0.0
  %3387 = vmatpush1.msra.mxu0 %v2982
  %3388 = vmatprep.subr.mxu0 0.0
  %3389 = vmatpush1.msra.mxu0 %v2983
  %3390 = vmatprep.subr.mxu0 0.0
  %3391 = vmatpush1.msra.mxu0 %v2984
  %3392 = vmatprep.subr.mxu0 0.0
  %3393 = vmatpush1.msra.mxu0 %v2985
  %3394 = vmatprep.subr.mxu0 0.0
  %3395 = vmatpush1.msra.mxu0 %v2986
  %3396 = vmatprep.subr.mxu0 0.0
  %3397 = vmatpush1.msra.mxu0 %v2987
  %3398 = vmatprep.subr.mxu0 0.0
  %3399 = vmatpush1.msra.mxu0 %v2988
  %3400 = vmatprep.subr.mxu0 0.0
  %3401 = vmatpush1.msra.mxu0 %v2989
  %3402 = vmatprep.subr.mxu0 0.0
  %3403 = vmatpush1.msra.mxu0 %v2990
  %3404 = vmatprep.subr.mxu0 0.0
  %3405 = vmatpush1.msra.mxu0 %v2991
  %3406 = vmatprep.subr.mxu0 0.0
  %3407 = vmatpush1.msra.mxu0 %v2992
  %3408 = vmatprep.subr.mxu0 0.0
  %3409 = vmatpush1.msra.mxu0 %v2993
  %3410 = vmatprep.subr.mxu0 0.0
  %3411 = vmatpush1.msra.mxu0 %v2994
  %3412 = vmatprep.subr.mxu0 0.0
  %3413 = vmatpush1.msra.mxu0 %v2995
  %3414 = vmatprep.subr.mxu0 0.0
  %3415 = vmatpush1.msra.mxu0 %v2996
  %3416 = vmatprep.subr.mxu0 0.0
  %3417 = vmatpush1.msra.mxu0 %v2997
  %3418 = vmatprep.subr.mxu0 0.0
  %3419 = vmatpush1.msra.mxu0 %v2998
  %3420 = vmatprep.subr.mxu0 0.0
  %3421 = vmatpush1.msra.mxu0 %v2999
  %3422 = vmatprep.subr.mxu0 0.0
  %3423 = vmatpush1.msra.mxu0 %v3000
  %3424 = vmatprep.subr.mxu0 0.0
  %3425 = vmatpush1.msra.mxu0 %v3001
  %3426 = vmatprep.subr.mxu0 0.0
  %3427 = vmatpush1.msra.mxu0 %v3002
  %3428 = vmatprep.subr.mxu0 0.0
  %3429 = vmatpush1.msra.mxu0 %v3003
  %3430 = vmatprep.subr.mxu0 0.0
  %3431 = vmatpush1.msra.mxu0 %v3004
  %3432 = vmatprep.subr.mxu0 0.0
  %3433 = vmatpush1.msra.mxu0 %v3005
  %3434 = vmatprep.subr.mxu0 0.0
  %3435 = vmatpush1.msra.mxu0 %v3006
  %3436 = vmatprep.subr.mxu0 0.0
  %3437 = vmatpush1.msra.mxu0 %v3007
  %3438 = vmatprep.subr.mxu0 0.0
  %3439 = vmatpush1.msra.mxu0 %v3008
  %3440 = vmatprep.subr.mxu0 0.0
  %3441 = vmatpush1.msra.mxu0 %v3009
  %3442 = vmatprep.subr.mxu0 0.0
  %3443 = vmatpush1.msra.mxu0 %v3010
  %3444 = vmatprep.mubr.f32.mxu0 %v3332
  %3445 = vmatmul.mubr.f32.gmra.mrb[0].mxu0 %v3326
  %v3446 = vpop.f32.mrb[0].mxu0
  %v3447 = vadd.f32 0.0, %v3446
  %v3448 = vpop.f32.mrb[0].mxu0
  %3449 = vdwg.mxu0
  %3450 = vmatprep.subr.mxu0 0.0
  %3451 = vmatpush1.msra.mxu0 %v3011
  %3452 = vmatprep.subr.mxu0 0.0
  %3453 = vmatpush1.msra.mxu0 %v3012
  %3454 = vmatprep.subr.mxu0 0.0
  %3455 = vmatpush1.msra.mxu0 %v3013
  %3456 = vmatprep.subr.mxu0 0.0
  %3457 = vmatpush1.msra.mxu0 %v3014
  %3458 = vmatprep.subr.mxu0 0.0
  %3459 = vmatpush1.msra.mxu0 %v3015
  %3460 = vmatprep.subr.mxu0 0.0
  %3461 = vmatpush1.msra.mxu0 %v3016
  %3462 = vmatprep.subr.mxu0 0.0
  %3463 = vmatpush1.msra.mxu0 %v3017
  %3464 = vmatprep.subr.mxu0 0.0
  %3465 = vmatpush1.msra.mxu0 %v3018
  %3466 = vmatprep.subr.mxu0 0.0
  %3467 = vmatpush1.msra.mxu0 %v3019
  %3468 = vmatprep.subr.mxu0 0.0
  %3469 = vmatpush1.msra.mxu0 %v3020
  %3470 = vmatprep.subr.mxu0 0.0
  %3471 = vmatpush1.msra.mxu0 %v3021
  %3472 = vmatprep.subr.mxu0 0.0
  %3473 = vmatpush1.msra.mxu0 %v3022
  %3474 = vmatprep.subr.mxu0 0.0
  %3475 = vmatpush1.msra.mxu0 %v3023
  %3476 = vmatprep.subr.mxu0 0.0
  %3477 = vmatpush1.msra.mxu0 %v3024
  %3478 = vmatprep.subr.mxu0 0.0
  %3479 = vmatpush1.msra.mxu0 %v3025
  %3480 = vmatprep.subr.mxu0 0.0
  %3481 = vmatpush1.msra.mxu0 %v3026
  %3482 = vmatprep.subr.mxu0 0.0
  %3483 = vmatpush1.msra.mxu0 %v3027
  %3484 = vmatprep.subr.mxu0 0.0
  %3485 = vmatpush1.msra.mxu0 %v3028
  %3486 = vmatprep.subr.mxu0 0.0
  %3487 = vmatpush1.msra.mxu0 %v3029
  %3488 = vmatprep.subr.mxu0 0.0
  %3489 = vmatpush1.msra.mxu0 %v3030
  %3490 = vmatprep.subr.mxu0 0.0
  %3491 = vmatpush1.msra.mxu0 %v3031
  %3492 = vmatprep.subr.mxu0 0.0
  %3493 = vmatpush1.msra.mxu0 %v3032
  %3494 = vmatprep.subr.mxu0 0.0
  %3495 = vmatpush1.msra.mxu0 %v3033
  %3496 = vmatprep.subr.mxu0 0.0
  %3497 = vmatpush1.msra.mxu0 %v3034
  %3498 = vmatprep.subr.mxu0 0.0
  %3499 = vmatpush1.msra.mxu0 %v3035
  %3500 = vmatprep.subr.mxu0 0.0
  %3501 = vmatpush1.msra.mxu0 %v3036
  %3502 = vmatprep.subr.mxu0 0.0
  %3503 = vmatpush1.msra.mxu0 %v3037
  %3504 = vmatprep.subr.mxu0 0.0
  %3505 = vmatpush1.msra.mxu0 %v3038
  %3506 = vmatprep.subr.mxu0 0.0
  %3507 = vmatpush1.msra.mxu0 %v3039
  %3508 = vmatprep.subr.mxu0 0.0
  %3509 = vmatpush1.msra.mxu0 %v3040
  %3510 = vmatprep.subr.mxu0 0.0
  %3511 = vmatpush1.msra.mxu0 %v3041
  %3512 = vmatprep.subr.mxu0 0.0
  %3513 = vmatpush1.msra.mxu0 %v3042
  %3514 = vmatprep.mubr.f32.mxu0 %v3344
  %3515 = vmatmul.mubr.f32.gmra.mrb[0].mxu0 %v3338
  %v3516 = vpop.f32.mrb[0].mxu0
  %v3517 = vadd.f32 %v3447, %v3516
  %v3518 = vpop.f32.mrb[0].mxu0
  %3519 = vdwg.mxu0
  %3520 = vmatprep.subr.mxu0 0.0
  %3521 = vmatpush1.msra.mxu0 %v3043
  %3522 = vmatprep.subr.mxu0 0.0
  %3523 = vmatpush1.msra.mxu0 %v3044
  %3524 = vmatprep.subr.mxu0 0.0
  %3525 = vmatpush1.msra.mxu0 %v3045
  %3526 = vmatprep.subr.mxu0 0.0
  %3527 = vmatpush1.msra.mxu0 %v3046
  %3528 = vmatprep.subr.mxu0 0.0
  %3529 = vmatpush1.msra.mxu0 %v3047
  %3530 = vmatprep.subr.mxu0 0.0
  %3531 = vmatpush1.msra.mxu0 %v3048
  %3532 = vmatprep.subr.mxu0 0.0
  %3533 = vmatpush1.msra.mxu0 %v3049
  %3534 = vmatprep.subr.mxu0 0.0
  %3535 = vmatpush1.msra.mxu0 %v3050
  %3536 = vmatprep.subr.mxu0 0.0
  %3537 = vmatpush1.msra.mxu0 %v3051
  %3538 = vmatprep.subr.mxu0 0.0
  %3539 = vmatpush1.msra.mxu0 %v3052
  %3540 = vmatprep.subr.mxu0 0.0
  %3541 = vmatpush1.msra.mxu0 %v3053
  %3542 = vmatprep.subr.mxu0 0.0
  %3543 = vmatpush1.msra.mxu0 %v3054
  %3544 = vmatprep.subr.mxu0 0.0
  %3545 = vmatpush1.msra.mxu0 %v3055
  %3546 = vmatprep.subr.mxu0 0.0
  %3547 = vmatpush1.msra.mxu0 %v3056
  %3548 = vmatprep.subr.mxu0 0.0
  %3549 = vmatpush1.msra.mxu0 %v3057
  %3550 = vmatprep.subr.mxu0 0.0
  %3551 = vmatpush1.msra.mxu0 %v3058
  %3552 = vmatprep.subr.mxu0 0.0
  %3553 = vmatpush1.msra.mxu0 %v3059
  %3554 = vmatprep.subr.mxu0 0.0
  %3555 = vmatpush1.msra.mxu0 %v3060
  %3556 = vmatprep.subr.mxu0 0.0
  %3557 = vmatpush1.msra.mxu0 %v3061
  %3558 = vmatprep.subr.mxu0 0.0
  %3559 = vmatpush1.msra.mxu0 %v3062
  %3560 = vmatprep.subr.mxu0 0.0
  %3561 = vmatpush1.msra.mxu0 %v3063
  %3562 = vmatprep.subr.mxu0 0.0
  %3563 = vmatpush1.msra.mxu0 %v3064
  %3564 = vmatprep.subr.mxu0 0.0
  %3565 = vmatpush1.msra.mxu0 %v3065
  %3566 = vmatprep.subr.mxu0 0.0
  %3567 = vmatpush1.msra.mxu0 %v3066
  %3568 = vmatprep.subr.mxu0 0.0
  %3569 = vmatpush1.msra.mxu0 %v3067
  %3570 = vmatprep.subr.mxu0 0.0
  %3571 = vmatpush1.msra.mxu0 %v3068
  %3572 = vmatprep.subr.mxu0 0.0
  %3573 = vmatpush1.msra.mxu0 %v3069
  %3574 = vmatprep.subr.mxu0 0.0
  %3575 = vmatpush1.msra.mxu0 %v3070
  %3576 = vmatprep.subr.mxu0 0.0
  %3577 = vmatpush1.msra.mxu0 %v3071
  %3578 = vmatprep.subr.mxu0 0.0
  %3579 = vmatpush1.msra.mxu0 %v3072
  %3580 = vmatprep.subr.mxu0 0.0
  %3581 = vmatpush1.msra.mxu0 %v3073
  %3582 = vmatprep.subr.mxu0 0.0
  %3583 = vmatpush1.msra.mxu0 %v3074
  %3584 = vmatprep.mubr.f32.mxu0 %v3356
  %3585 = vmatmul.mubr.f32.gmra.mrb[0].mxu0 %v3350
  %v3586 = vpop.f32.mrb[0].mxu0
  %v3587 = vadd.f32 %v3517, %v3586
  %v3588 = vpop.f32.mrb[0].mxu0
  %3589 = vdwg.mxu0
  %3590 = vmatprep.subr.mxu0 0.0
  %3591 = vmatpush1.msra.mxu0 %v3075
  %3592 = vmatprep.subr.mxu0 0.0
  %3593 = vmatpush1.msra.mxu0 %v3076
  %3594 = vmatprep.subr.mxu0 0.0
  %3595 = vmatpush1.msra.mxu0 %v3077
  %3596 = vmatprep.subr.mxu0 0.0
  %3597 = vmatpush1.msra.mxu0 %v3078
  %3598 = vmatprep.subr.mxu0 0.0
  %3599 = vmatpush1.msra.mxu0 %v3079
  %3600 = vmatprep.subr.mxu0 0.0
  %3601 = vmatpush1.msra.mxu0 %v3080
  %3602 = vmatprep.subr.mxu0 0.0
  %3603 = vmatpush1.msra.mxu0 %v3081
  %3604 = vmatprep.subr.mxu0 0.0
  %3605 = vmatpush1.msra.mxu0 %v3082
  %3606 = vmatprep.subr.mxu0 0.0
  %3607 = vmatpush1.msra.mxu0 %v3083
  %3608 = vmatprep.subr.mxu0 0.0
  %3609 = vmatpush1.msra.mxu0 %v3084
  %3610 = vmatprep.subr.mxu0 0.0
  %3611 = vmatpush1.msra.mxu0 %v3085
  %3612 = vmatprep.subr.mxu0 0.0
  %3613 = vmatpush1.msra.mxu0 %v3086
  %3614 = vmatprep.subr.mxu0 0.0
  %3615 = vmatpush1.msra.mxu0 %v3087
  %3616 = vmatprep.subr.mxu0 0.0
  %3617 = vmatpush1.msra.mxu0 %v3088
  %3618 = vmatprep.subr.mxu0 0.0
  %3619 = vmatpush1.msra.mxu0 %v3089
  %3620 = vmatprep.subr.mxu0 0.0
  %3621 = vmatpush1.msra.mxu0 %v3090
  %3622 = vmatprep.subr.mxu0 0.0
  %3623 = vmatpush1.msra.mxu0 %v3091
  %3624 = vmatprep.subr.mxu0 0.0
  %3625 = vmatpush1.msra.mxu0 %v3092
  %3626 = vmatprep.subr.mxu0 0.0
  %3627 = vmatpush1.msra.mxu0 %v3093
  %3628 = vmatprep.subr.mxu0 0.0
  %3629 = vmatpush1.msra.mxu0 %v3094
  %3630 = vmatprep.subr.mxu0 0.0
  %3631 = vmatpush1.msra.mxu0 %v3095
  %3632 = vmatprep.subr.mxu0 0.0
  %3633 = vmatpush1.msra.mxu0 %v3096
  %3634 = vmatprep.subr.mxu0 0.0
  %3635 = vmatpush1.msra.mxu0 %v3097
  %3636 = vmatprep.subr.mxu0 0.0
  %3637 = vmatpush1.msra.mxu0 %v3098
  %3638 = vmatprep.subr.mxu0 0.0
  %3639 = vmatpush1.msra.mxu0 %v3099
  %3640 = vmatprep.subr.mxu0 0.0
  %3641 = vmatpush1.msra.mxu0 %v3100
  %3642 = vmatprep.subr.mxu0 0.0
  %3643 = vmatpush1.msra.mxu0 %v3101
  %3644 = vmatprep.subr.mxu0 0.0
  %3645 = vmatpush1.msra.mxu0 %v3102
  %3646 = vmatprep.subr.mxu0 0.0
  %3647 = vmatpush1.msra.mxu0 %v3103
  %3648 = vmatprep.subr.mxu0 0.0
  %3649 = vmatpush1.msra.mxu0 %v3104
  %3650 = vmatprep.subr.mxu0 0.0
  %3651 = vmatpush1.msra.mxu0 %v3105
  %3652 = vmatprep.subr.mxu0 0.0
  %3653 = vmatpush1.msra.mxu0 %v3106
  %3654 = vmatprep.mubr.f32.mxu0 %v3368
  %3655 = vmatmul.mubr.f32.gmra.mrb[0].mxu0 %v3362
  %v3656 = vpop.f32.mrb[0].mxu0
  %v3657 = vadd.f32 %v3587, %v3656
  %v3658 = vpop.f32.mrb[0].mxu0
  %3659 = vdwg.mxu0
  %3660 = vmatprep.subr.mxu0 0.0
  %3661 = vmatpush1.msra.mxu0 %v3107
  %3662 = vmatprep.subr.mxu0 0.0
  %3663 = vmatpush1.msra.mxu0 %v3108
  %3664 = vmatprep.subr.mxu0 0.0
  %3665 = vmatpush1.msra.mxu0 %v3109
  %3666 = vmatprep.subr.mxu0 0.0
  %3667 = vmatpush1.msra.mxu0 %v3110
  %3668 = vmatprep.subr.mxu0 0.0
  %3669 = vmatpush1.msra.mxu0 0.0
  %3670 = vmatprep.subr.mxu0 0.0
  %3671 = vmatpush1.msra.mxu0 0.0
  %3672 = vmatprep.subr.mxu0 0.0
  %3673 = vmatpush1.msra.mxu0 0.0
  %3674 = vmatprep.subr.mxu0 0.0
  %3675 = vmatpush1.msra.mxu0 0.0
  %3676 = vmatprep.subr.mxu0 0.0
  %3677 = vmatpush1.msra.mxu0 0.0
  %3678 = vmatprep.subr.mxu0 0.0
  %3679 = vmatpush1.msra.mxu0 0.0
  %3680 = vmatprep.subr.mxu0 0.0
  %3681 = vmatpush1.msra.mxu0 0.0
  %3682 = vmatprep.subr.mxu0 0.0
  %3683 = vmatpush1.msra.mxu0 0.0
  %3684 = vmatprep.subr.mxu0 0.0
  %3685 = vmatpush1.msra.mxu0 0.0
  %3686 = vmatprep.subr.mxu0 0.0
  %3687 = vmatpush1.msra.mxu0 0.0
  %3688 = vmatprep.subr.mxu0 0.0
  %3689 = vmatpush1.msra.mxu0 0.0
  %3690 = vmatprep.subr.mxu0 0.0
  %3691 = vmatpush1.msra.mxu0 0.0
  %3692 = vmatprep.subr.mxu0 0.0
  %3693 = vmatpush1.msra.mxu0 0.0
  %3694 = vmatprep.subr.mxu0 0.0
  %3695 = vmatpush1.msra.mxu0 0.0
  %3696 = vmatprep.subr.mxu0 0.0
  %3697 = vmatpush1.msra.mxu0 0.0
  %3698 = vmatprep.subr.mxu0 0.0
  %3699 = vmatpush1.msra.mxu0 0.0
  %3700 = vmatprep.subr.mxu0 0.0
  %3701 = vmatpush1.msra.mxu0 0.0
  %3702 = vmatprep.subr.mxu0 0.0
  %3703 = vmatpush1.msra.mxu0 0.0
  %3704 = vmatprep.subr.mxu0 0.0
  %3705 = vmatpush1.msra.mxu0 0.0
  %3706 = vmatprep.subr.mxu0 0.0
  %3707 = vmatpush1.msra.mxu0 0.0
  %3708 = vmatprep.subr.mxu0 0.0
  %3709 = vmatpush1.msra.mxu0 0.0
  %3710 = vmatprep.subr.mxu0 0.0
  %3711 = vmatpush1.msra.mxu0 0.0
  %3712 = vmatprep.subr.mxu0 0.0
  %3713 = vmatpush1.msra.mxu0 0.0
  %3714 = vmatprep.subr.mxu0 0.0
  %3715 = vmatpush1.msra.mxu0 0.0
  %3716 = vmatprep.subr.mxu0 0.0
  %3717 = vmatpush1.msra.mxu0 0.0
  %3718 = vmatprep.subr.mxu0 0.0
  %3719 = vmatpush1.msra.mxu0 0.0
  %3720 = vmatprep.subr.mxu0 0.0
  %3721 = vmatpush1.msra.mxu0 0.0
  %3722 = vmatprep.subr.mxu0 0.0
  %3723 = vmatpush1.msra.mxu0 0.0
  %3724 = vmatprep.mubr.f32.mxu0 0.0
  %3725 = vmatmul.mubr.f32.gmra.mrb[0].mxu0 %v3378
  %v3726 = vpop.f32.mrb[0].mxu0
  %v3727 = vadd.f32 %v3657, %v3726
  %v3728 = vpop.f32.mrb[0].mxu0
  %3729 = vdwg.mxu0
  %v3730 = vstv %s3311
  %v3731 = vmul.f32 %v3727, %v3730
  %v3733 = vsel %vm3369, %v3731, 0
  %3735 = vmatprep.subr.mxu0 %v3273
  %3736 = vmatpush1.msra.mxu0 %v3272
  %3737 = vmatprep.subr.mxu0 %v3282
  %3738 = vmatpush1.msra.mxu0 %v3281
  %3739 = vmatprep.subr.mxu0 %v3291
  %3740 = vmatpush1.msra.mxu0 %v3290
  %3741 = vmatprep.subr.mxu0 %v3300
  %3742 = vmatpush1.msra.mxu0 %v3299
  %3743 = vmatprep.subr.mxu0 0.0
  %3744 = vmatpush1.msra.mxu0 0.0
  %3745 = vmatprep.subr.mxu0 0.0
  %3746 = vmatpush1.msra.mxu0 0.0
  %3747 = vmatprep.subr.mxu0 0.0
  %3748 = vmatpush1.msra.mxu0 0.0
  %3749 = vmatprep.subr.mxu0 0.0
  %3750 = vmatpush1.msra.mxu0 0.0
  %3751 = vmatprep.subr.mxu0 0.0
  %3752 = vmatpush1.msra.mxu0 0.0
  %3753 = vmatprep.subr.mxu0 0.0
  %3754 = vmatpush1.msra.mxu0 0.0
  %3755 = vmatprep.subr.mxu0 0.0
  %3756 = vmatpush1.msra.mxu0 0.0
  %3757 = vmatprep.subr.mxu0 0.0
  %3758 = vmatpush1.msra.mxu0 0.0
  %3759 = vmatprep.subr.mxu0 0.0
  %3760 = vmatpush1.msra.mxu0 0.0
  %3761 = vmatprep.subr.mxu0 0.0
  %3762 = vmatpush1.msra.mxu0 0.0
  %3763 = vmatprep.subr.mxu0 0.0
  %3764 = vmatpush1.msra.mxu0 0.0
  %3765 = vmatprep.subr.mxu0 0.0
  %3766 = vmatpush1.msra.mxu0 0.0
  %3767 = vmatprep.subr.mxu0 0.0
  %3768 = vmatpush1.msra.mxu0 0.0
  %3769 = vmatprep.subr.mxu0 0.0
  %3770 = vmatpush1.msra.mxu0 0.0
  %3771 = vmatprep.subr.mxu0 0.0
  %3772 = vmatpush1.msra.mxu0 0.0
  %3773 = vmatprep.subr.mxu0 0.0
  %3774 = vmatpush1.msra.mxu0 0.0
  %3775 = vmatprep.subr.mxu0 0.0
  %3776 = vmatpush1.msra.mxu0 0.0
  %3777 = vmatprep.subr.mxu0 0.0
  %3778 = vmatpush1.msra.mxu0 0.0
  %3779 = vmatprep.subr.mxu0 0.0
  %3780 = vmatpush1.msra.mxu0 0.0
  %3781 = vmatprep.subr.mxu0 0.0
  %3782 = vmatpush1.msra.mxu0 0.0
  %3783 = vmatprep.subr.mxu0 0.0
  %3784 = vmatpush1.msra.mxu0 0.0
  %3785 = vmatprep.subr.mxu0 0.0
  %3786 = vmatpush1.msra.mxu0 0.0
  %3787 = vmatprep.subr.mxu0 0.0
  %3788 = vmatpush1.msra.mxu0 0.0
  %3789 = vmatprep.subr.mxu0 0.0
  %3790 = vmatpush1.msra.mxu0 0.0
  %3791 = vmatprep.subr.mxu0 0.0
  %3792 = vmatpush1.msra.mxu0 0.0
  %3793 = vmatprep.subr.mxu0 0.0
  %3794 = vmatpush1.msra.mxu0 0.0
  %3795 = vmatprep.subr.mxu0 0.0
  %3796 = vmatpush1.msra.mxu0 0.0
  %3797 = vmatprep.subr.mxu0 0.0
  %3798 = vmatpush1.msra.mxu0 0.0
  %3799 = vmatprep.mubr.f32.mxu0 0.0
  %3800 = vmatmul.mubr.f32.gmra.mrb[0].mxu0 %v3733
  %v3801 = vpop.f32.mrb[0].mxu0
  %v3802 = vadd.f32 0.0, %v3801
  %v3803 = vpop.f32.mrb[0].mxu0
  %v3804 = vadd.f32 0.0, %v3803
  %3805 = vdwg.mxu0
  %3806 = vmatprep.subr.mxu0 %v3275
  %3807 = vmatpush1.msra.mxu0 %v3274
  %3808 = vmatprep.subr.mxu0 %v3284
  %3809 = vmatpush1.msra.mxu0 %v3283
  %3810 = vmatprep.subr.mxu0 %v3293
  %3811 = vmatpush1.msra.mxu0 %v3292
  %3812 = vmatprep.subr.mxu0 %v3302
  %3813 = vmatpush1.msra.mxu0 %v3301
  %3814 = vmatprep.subr.mxu0 0.0
  %3815 = vmatpush1.msra.mxu0 0.0
  %3816 = vmatprep.subr.mxu0 0.0
  %3817 = vmatpush1.msra.mxu0 0.0
  %3818 = vmatprep.subr.mxu0 0.0
  %3819 = vmatpush1.msra.mxu0 0.0
  %3820 = vmatprep.subr.mxu0 0.0
  %3821 = vmatpush1.msra.mxu0 0.0
  %3822 = vmatprep.subr.mxu0 0.0
  %3823 = vmatpush1.msra.mxu0 0.0
  %3824 = vmatprep.subr.mxu0 0.0
  %3825 = vmatpush1.msra.mxu0 0.0
  %3826 = vmatprep.subr.mxu0 0.0
  %3827 = vmatpush1.msra.mxu0 0.0
  %3828 = vmatprep.subr.mxu0 0.0
  %3829 = vmatpush1.msra.mxu0 0.0
  %3830 = vmatprep.subr.mxu0 0.0
  %3831 = vmatpush1.msra.mxu0 0.0
  %3832 = vmatprep.subr.mxu0 0.0
  %3833 = vmatpush1.msra.mxu0 0.0
  %3834 = vmatprep.subr.mxu0 0.0
  %3835 = vmatpush1.msra.mxu0 0.0
  %3836 = vmatprep.subr.mxu0 0.0
  %3837 = vmatpush1.msra.mxu0 0.0
  %3838 = vmatprep.subr.mxu0 0.0
  %3839 = vmatpush1.msra.mxu0 0.0
  %3840 = vmatprep.subr.mxu0 0.0
  %3841 = vmatpush1.msra.mxu0 0.0
  %3842 = vmatprep.subr.mxu0 0.0
  %3843 = vmatpush1.msra.mxu0 0.0
  %3844 = vmatprep.subr.mxu0 0.0
  %3845 = vmatpush1.msra.mxu0 0.0
  %3846 = vmatprep.subr.mxu0 0.0
  %3847 = vmatpush1.msra.mxu0 0.0
  %3848 = vmatprep.subr.mxu0 0.0
  %3849 = vmatpush1.msra.mxu0 0.0
  %3850 = vmatprep.subr.mxu0 0.0
  %3851 = vmatpush1.msra.mxu0 0.0
  %3852 = vmatprep.subr.mxu0 0.0
  %3853 = vmatpush1.msra.mxu0 0.0
  %3854 = vmatprep.subr.mxu0 0.0
  %3855 = vmatpush1.msra.mxu0 0.0
  %3856 = vmatprep.subr.mxu0 0.0
  %3857 = vmatpush1.msra.mxu0 0.0
  %3858 = vmatprep.subr.mxu0 0.0
  %3859 = vmatpush1.msra.mxu0 0.0
  %3860 = vmatprep.subr.mxu0 0.0
  %3861 = vmatpush1.msra.mxu0 0.0
  %3862 = vmatprep.subr.mxu0 0.0
  %3863 = vmatpush1.msra.mxu0 0.0
  %3864 = vmatprep.subr.mxu0 0.0
  %3865 = vmatpush1.msra.mxu0 0.0
  %3866 = vmatprep.subr.mxu0 0.0
  %3867 = vmatpush1.msra.mxu0 0.0
  %3868 = vmatprep.subr.mxu0 0.0
  %3869 = vmatpush1.msra.mxu0 0.0
  %3870 = vmatprep.mubr.f32.mxu0 0.0
  %3871 = vmatmul.mubr.f32.gmra.mrb[0].mxu0 %v3733
  %v3872 = vpop.f32.mrb[0].mxu0
  %v3873 = vadd.f32 0.0, %v3872
  %v3874 = vpop.f32.mrb[0].mxu0
  %v3875 = vadd.f32 0.0, %v3874
  %3876 = vdwg.mxu0
  %3877 = vmatprep.subr.mxu0 %v3277
  %3878 = vmatpush1.msra.mxu0 %v3276
  %3879 = vmatprep.subr.mxu0 %v3286
  %3880 = vmatpush1.msra.mxu0 %v3285
  %3881 = vmatprep.subr.mxu0 %v3295
  %3882 = vmatpush1.msra.mxu0 %v3294
  %3883 = vmatprep.subr.mxu0 %v3304
  %3884 = vmatpush1.msra.mxu0 %v3303
  %3885 = vmatprep.subr.mxu0 0.0
  %3886 = vmatpush1.msra.mxu0 0.0
  %3887 = vmatprep.subr.mxu0 0.0
  %3888 = vmatpush1.msra.mxu0 0.0
  %3889 = vmatprep.subr.mxu0 0.0
  %3890 = vmatpush1.msra.mxu0 0.0
  %3891 = vmatprep.subr.mxu0 0.0
  %3892 = vmatpush1.msra.mxu0 0.0
  %3893 = vmatprep.subr.mxu0 0.0
  %3894 = vmatpush1.msra.mxu0 0.0
  %3895 = vmatprep.subr.mxu0 0.0
  %3896 = vmatpush1.msra.mxu0 0.0
  %3897 = vmatprep.subr.mxu0 0.0
  %3898 = vmatpush1.msra.mxu0 0.0
  %3899 = vmatprep.subr.mxu0 0.0
  %3900 = vmatpush1.msra.mxu0 0.0
  %3901 = vmatprep.subr.mxu0 0.0
  %3902 = vmatpush1.msra.mxu0 0.0
  %3903 = vmatprep.subr.mxu0 0.0
  %3904 = vmatpush1.msra.mxu0 0.0
  %3905 = vmatprep.subr.mxu0 0.0
  %3906 = vmatpush1.msra.mxu0 0.0
  %3907 = vmatprep.subr.mxu0 0.0
  %3908 = vmatpush1.msra.mxu0 0.0
  %3909 = vmatprep.subr.mxu0 0.0
  %3910 = vmatpush1.msra.mxu0 0.0
  %3911 = vmatprep.subr.mxu0 0.0
  %3912 = vmatpush1.msra.mxu0 0.0
  %3913 = vmatprep.subr.mxu0 0.0
  %3914 = vmatpush1.msra.mxu0 0.0
  %3915 = vmatprep.subr.mxu0 0.0
  %3916 = vmatpush1.msra.mxu0 0.0
  %3917 = vmatprep.subr.mxu0 0.0
  %3918 = vmatpush1.msra.mxu0 0.0
  %3919 = vmatprep.subr.mxu0 0.0
  %3920 = vmatpush1.msra.mxu0 0.0
  %3921 = vmatprep.subr.mxu0 0.0
  %3922 = vmatpush1.msra.mxu0 0.0
  %3923 = vmatprep.subr.mxu0 0.0
  %3924 = vmatpush1.msra.mxu0 0.0
  %3925 = vmatprep.subr.mxu0 0.0
  %3926 = vmatpush1.msra.mxu0 0.0
  %3927 = vmatprep.subr.mxu0 0.0
  %3928 = vmatpush1.msra.mxu0 0.0
  %3929 = vmatprep.subr.mxu0 0.0
  %3930 = vmatpush1.msra.mxu0 0.0
  %3931 = vmatprep.subr.mxu0 0.0
  %3932 = vmatpush1.msra.mxu0 0.0
  %3933 = vmatprep.subr.mxu0 0.0
  %3934 = vmatpush1.msra.mxu0 0.0
  %3935 = vmatprep.subr.mxu0 0.0
  %3936 = vmatpush1.msra.mxu0 0.0
  %3937 = vmatprep.subr.mxu0 0.0
  %3938 = vmatpush1.msra.mxu0 0.0
  %3939 = vmatprep.subr.mxu0 0.0
  %3940 = vmatpush1.msra.mxu0 0.0
  %3941 = vmatprep.mubr.f32.mxu0 0.0
  %3942 = vmatmul.mubr.f32.gmra.mrb[0].mxu0 %v3733
  %v3943 = vpop.f32.mrb[0].mxu0
  %v3944 = vadd.f32 0.0, %v3943
  %v3945 = vpop.f32.mrb[0].mxu0
  %v3946 = vadd.f32 0.0, %v3945
  %3947 = vdwg.mxu0
  %3948 = vmatprep.subr.mxu0 %v3279
  %3949 = vmatpush1.msra.mxu0 %v3278
  %3950 = vmatprep.subr.mxu0 %v3288
  %3951 = vmatpush1.msra.mxu0 %v3287
  %3952 = vmatprep.subr.mxu0 %v3297
  %3953 = vmatpush1.msra.mxu0 %v3296
  %3954 = vmatprep.subr.mxu0 %v3306
  %3955 = vmatpush1.msra.mxu0 %v3305
  %3956 = vmatprep.subr.mxu0 0.0
  %3957 = vmatpush1.msra.mxu0 0.0
  %3958 = vmatprep.subr.mxu0 0.0
  %3959 = vmatpush1.msra.mxu0 0.0
  %3960 = vmatprep.subr.mxu0 0.0
  %3961 = vmatpush1.msra.mxu0 0.0
  %3962 = vmatprep.subr.mxu0 0.0
  %3963 = vmatpush1.msra.mxu0 0.0
  %3964 = vmatprep.subr.mxu0 0.0
  %3965 = vmatpush1.msra.mxu0 0.0
  %3966 = vmatprep.subr.mxu0 0.0
  %3967 = vmatpush1.msra.mxu0 0.0
  %3968 = vmatprep.subr.mxu0 0.0
  %3969 = vmatpush1.msra.mxu0 0.0
  %3970 = vmatprep.subr.mxu0 0.0
  %3971 = vmatpush1.msra.mxu0 0.0
  %3972 = vmatprep.subr.mxu0 0.0
  %3973 = vmatpush1.msra.mxu0 0.0
  %3974 = vmatprep.subr.mxu0 0.0
  %3975 = vmatpush1.msra.mxu0 0.0
  %3976 = vmatprep.subr.mxu0 0.0
  %3977 = vmatpush1.msra.mxu0 0.0
  %3978 = vmatprep.subr.mxu0 0.0
  %3979 = vmatpush1.msra.mxu0 0.0
  %3980 = vmatprep.subr.mxu0 0.0
  %3981 = vmatpush1.msra.mxu0 0.0
  %3982 = vmatprep.subr.mxu0 0.0
  %3983 = vmatpush1.msra.mxu0 0.0
  %3984 = vmatprep.subr.mxu0 0.0
  %3985 = vmatpush1.msra.mxu0 0.0
  %3986 = vmatprep.subr.mxu0 0.0
  %3987 = vmatpush1.msra.mxu0 0.0
  %3988 = vmatprep.subr.mxu0 0.0
  %3989 = vmatpush1.msra.mxu0 0.0
  %3990 = vmatprep.subr.mxu0 0.0
  %3991 = vmatpush1.msra.mxu0 0.0
  %3992 = vmatprep.subr.mxu0 0.0
  %3993 = vmatpush1.msra.mxu0 0.0
  %3994 = vmatprep.subr.mxu0 0.0
  %3995 = vmatpush1.msra.mxu0 0.0
  %3996 = vmatprep.subr.mxu0 0.0
  %3997 = vmatpush1.msra.mxu0 0.0
  %3998 = vmatprep.subr.mxu0 0.0
  %3999 = vmatpush1.msra.mxu0 0.0
  %4000 = vmatprep.subr.mxu0 0.0
  %4001 = vmatpush1.msra.mxu0 0.0
  %4002 = vmatprep.subr.mxu0 0.0
  %4003 = vmatpush1.msra.mxu0 0.0
  %4004 = vmatprep.subr.mxu0 0.0
  %4005 = vmatpush1.msra.mxu0 0.0
  %4006 = vmatprep.subr.mxu0 0.0
  %4007 = vmatpush1.msra.mxu0 0.0
  %4008 = vmatprep.subr.mxu0 0.0
  %4009 = vmatpush1.msra.mxu0 0.0
  %4010 = vmatprep.subr.mxu0 0.0
  %4011 = vmatpush1.msra.mxu0 0.0
  %4012 = vmatprep.mubr.f32.mxu0 0.0
  %4013 = vmatmul.mubr.f32.gmra.mrb[0].mxu0 %v3733
  %v4014 = vpop.f32.mrb[0].mxu0
  %v4015 = vadd.f32 0.0, %v4014
  %v4016 = vpop.f32.mrb[0].mxu0
  %v4017 = vadd.f32 0.0, %v4016
  %4018 = vdwg.mxu0
  %4019 = vmatprep.subr.mxu0 0.0
  %4020 = vmatpush1.msra.mxu0 %v3280
  %4021 = vmatprep.subr.mxu0 0.0
  %4022 = vmatpush1.msra.mxu0 %v3289
  %4023 = vmatprep.subr.mxu0 0.0
  %4024 = vmatpush1.msra.mxu0 %v3298
  %4025 = vmatprep.subr.mxu0 0.0
  %4026 = vmatpush1.msra.mxu0 %v3307
  %4027 = vmatprep.subr.mxu0 0.0
  %4028 = vmatpush1.msra.mxu0 0.0
  %4029 = vmatprep.subr.mxu0 0.0
  %4030 = vmatpush1.msra.mxu0 0.0
  %4031 = vmatprep.subr.mxu0 0.0
  %4032 = vmatpush1.msra.mxu0 0.0
  %4033 = vmatprep.subr.mxu0 0.0
  %4034 = vmatpush1.msra.mxu0 0.0
  %4035 = vmatprep.subr.mxu0 0.0
  %4036 = vmatpush1.msra.mxu0 0.0
  %4037 = vmatprep.subr.mxu0 0.0
  %4038 = vmatpush1.msra.mxu0 0.0
  %4039 = vmatprep.subr.mxu0 0.0
  %4040 = vmatpush1.msra.mxu0 0.0
  %4041 = vmatprep.subr.mxu0 0.0
  %4042 = vmatpush1.msra.mxu0 0.0
  %4043 = vmatprep.subr.mxu0 0.0
  %4044 = vmatpush1.msra.mxu0 0.0
  %4045 = vmatprep.subr.mxu0 0.0
  %4046 = vmatpush1.msra.mxu0 0.0
  %4047 = vmatprep.subr.mxu0 0.0
  %4048 = vmatpush1.msra.mxu0 0.0
  %4049 = vmatprep.subr.mxu0 0.0
  %4050 = vmatpush1.msra.mxu0 0.0
  %4051 = vmatprep.subr.mxu0 0.0
  %4052 = vmatpush1.msra.mxu0 0.0
  %4053 = vmatprep.subr.mxu0 0.0
  %4054 = vmatpush1.msra.mxu0 0.0
  %4055 = vmatprep.subr.mxu0 0.0
  %4056 = vmatpush1.msra.mxu0 0.0
  %4057 = vmatprep.subr.mxu0 0.0
  %4058 = vmatpush1.msra.mxu0 0.0
  %4059 = vmatprep.subr.mxu0 0.0
  %4060 = vmatpush1.msra.mxu0 0.0
  %4061 = vmatprep.subr.mxu0 0.0
  %4062 = vmatpush1.msra.mxu0 0.0
  %4063 = vmatprep.subr.mxu0 0.0
  %4064 = vmatpush1.msra.mxu0 0.0
  %4065 = vmatprep.subr.mxu0 0.0
  %4066 = vmatpush1.msra.mxu0 0.0
  %4067 = vmatprep.subr.mxu0 0.0
  %4068 = vmatpush1.msra.mxu0 0.0
  %4069 = vmatprep.subr.mxu0 0.0
  %4070 = vmatpush1.msra.mxu0 0.0
  %4071 = vmatprep.subr.mxu0 0.0
  %4072 = vmatpush1.msra.mxu0 0.0
  %4073 = vmatprep.subr.mxu0 0.0
  %4074 = vmatpush1.msra.mxu0 0.0
  %4075 = vmatprep.subr.mxu0 0.0
  %4076 = vmatpush1.msra.mxu0 0.0
  %4077 = vmatprep.subr.mxu0 0.0
  %4078 = vmatpush1.msra.mxu0 0.0
  %4079 = vmatprep.subr.mxu0 0.0
  %4080 = vmatpush1.msra.mxu0 0.0
  %4081 = vmatprep.subr.mxu0 0.0
  %4082 = vmatpush1.msra.mxu0 0.0
  %4083 = vmatprep.mubr.f32.mxu0 0.0
  %4084 = vmatmul.mubr.f32.gmra.mrb[0].mxu0 %v3733
  %v4085 = vpop.f32.mrb[0].mxu0
  %v4086 = vadd.f32 0.0, %v4085
  %v4087 = vpop.f32.mrb[0].mxu0
  %4088 = vdwg.mxu0
  %v4089 = vlaneseq
  %v4090 = vshrl.u32 %v4089, 7
  %v4091 = vsub.s32 0, %v4090
  %v4092 = vrot.slane %v3802, %v4091
  %v4093 = vlaneseq
  %v4094 = vshrl.u32 %v4093, 7
  %v4095 = vsub.s32 0, %v4094
  %v4096 = vrot.slane %v3804, %v4095
  %v4097 = vlaneseq
  %v4098 = vshrl.u32 %v4097, 7
  %v4099 = vsub.s32 0, %v4098
  %v4100 = vrot.slane %v3873, %v4099
  %v4101 = vlaneseq
  %v4102 = vshrl.u32 %v4101, 7
  %v4103 = vsub.s32 0, %v4102
  %v4104 = vrot.slane %v3875, %v4103
  %v4105 = vlaneseq
  %v4106 = vshrl.u32 %v4105, 7
  %v4107 = vsub.s32 0, %v4106
  %v4108 = vrot.slane %v3944, %v4107
  %v4109 = vlaneseq
  %v4110 = vshrl.u32 %v4109, 7
  %v4111 = vsub.s32 0, %v4110
  %v4112 = vrot.slane %v3946, %v4111
  %v4113 = vlaneseq
  %v4114 = vshrl.u32 %v4113, 7
  %v4115 = vsub.s32 0, %v4114
  %v4116 = vrot.slane %v4015, %v4115
  %v4117 = vlaneseq
  %v4118 = vshrl.u32 %v4117, 7
  %v4119 = vsub.s32 0, %v4118
  %v4120 = vrot.slane %v4017, %v4119
  %v4121 = vlaneseq
  %v4122 = vshrl.u32 %v4121, 7
  %v4123 = vsub.s32 0, %v4122
  %v4124 = vrot.slane %v4086, %v4123
  %v4125 = vsub.f32 %v2180, %v4092
  %v4126 = vsub.f32 %v2182, %v4096
  %v4127 = vsub.f32 %v2221, %v4100
  %v4128 = vsub.f32 %v2223, %v4104
  %v4129 = vsub.f32 %v2262, %v4108
  %v4130 = vsub.f32 %v2264, %v4112
  %v4131 = vsub.f32 %v2303, %v4116
  %v4132 = vsub.f32 %v2305, %v4120
  %v4133 = vsub.f32 %v2344, %v4124
  %v4134 = vmul.f32 %v4125, %v62
  %v4135 = vmul.f32 %v4126, %v62
  %v4136 = vmul.f32 %v4127, %v62
  %v4137 = vmul.f32 %v4128, %v62
  %v4138 = vmul.f32 %v4129, %v62
  %v4139 = vmul.f32 %v4130, %v62
  %v4140 = vmul.f32 %v4131, %v62
  %v4141 = vmul.f32 %v4132, %v62
  %v4142 = vmul.f32 %v4133, %v62
  %v4143 = vmul.f32 %v4134, %v4134
  %v4144 = vmul.f32 %v4135, %v4135
  %v4145 = vmul.f32 %v4136, %v4136
  %v4146 = vmul.f32 %v4137, %v4137
  %v4147 = vmul.f32 %v4138, %v4138
  %v4148 = vmul.f32 %v4139, %v4139
  %v4149 = vmul.f32 %v4140, %v4140
  %v4150 = vmul.f32 %v4141, %v4141
  %v4151 = vmul.f32 %v4142, %v4142
  %v4152 = vrot.slane %v4143, 4
  %v4153 = vadd.f32 %v4143, %v4152
  %v4154 = vrot.slane %v4153, 2
  %v4155 = vadd.f32 %v4153, %v4154
  %v4156 = vrot.slane %v4155, 1
  %v4157 = vadd.f32 %v4155, %v4156
  %v4158 = vrot.slane %v4144, 4
  %v4159 = vadd.f32 %v4144, %v4158
  %v4160 = vrot.slane %v4159, 2
  %v4161 = vadd.f32 %v4159, %v4160
  %v4162 = vrot.slane %v4161, 1
  %v4163 = vadd.f32 %v4161, %v4162
  %v4164 = vrot.slane %v4145, 4
  %v4165 = vadd.f32 %v4145, %v4164
  %v4166 = vrot.slane %v4165, 2
  %v4167 = vadd.f32 %v4165, %v4166
  %v4168 = vrot.slane %v4167, 1
  %v4169 = vadd.f32 %v4167, %v4168
  %v4170 = vrot.slane %v4146, 4
  %v4171 = vadd.f32 %v4146, %v4170
  %v4172 = vrot.slane %v4171, 2
  %v4173 = vadd.f32 %v4171, %v4172
  %v4174 = vrot.slane %v4173, 1
  %v4175 = vadd.f32 %v4173, %v4174
  %v4176 = vrot.slane %v4147, 4
  %v4177 = vadd.f32 %v4147, %v4176
  %v4178 = vrot.slane %v4177, 2
  %v4179 = vadd.f32 %v4177, %v4178
  %v4180 = vrot.slane %v4179, 1
  %v4181 = vadd.f32 %v4179, %v4180
  %v4182 = vrot.slane %v4148, 4
  %v4183 = vadd.f32 %v4148, %v4182
  %v4184 = vrot.slane %v4183, 2
  %v4185 = vadd.f32 %v4183, %v4184
  %v4186 = vrot.slane %v4185, 1
  %v4187 = vadd.f32 %v4185, %v4186
  %v4188 = vrot.slane %v4149, 4
  %v4189 = vadd.f32 %v4149, %v4188
  %v4190 = vrot.slane %v4189, 2
  %v4191 = vadd.f32 %v4189, %v4190
  %v4192 = vrot.slane %v4191, 1
  %v4193 = vadd.f32 %v4191, %v4192
  %v4194 = vrot.slane %v4150, 4
  %v4195 = vadd.f32 %v4150, %v4194
  %v4196 = vrot.slane %v4195, 2
  %v4197 = vadd.f32 %v4195, %v4196
  %v4198 = vrot.slane %v4197, 1
  %v4199 = vadd.f32 %v4197, %v4198
  %v4200 = vsel %vm3369, %v4151, 0.0
  %v4201 = vrot.slane %v4200, 4
  %v4202 = vadd.f32 %v4200, %v4201
  %v4203 = vrot.slane %v4202, 2
  %v4204 = vadd.f32 %v4202, %v4203
  %v4205 = vrot.slane %v4204, 1
  %v4206 = vadd.f32 %v4204, %v4205
  %v4208 = vsel %vm3369, %v4206, 0
  %4210 = vmatprep.subr.mxu0 0.0
  %4211 = vmatpush1.msra.mxu0 %v2979
  %4212 = vmatprep.subr.mxu0 0.0
  %4213 = vmatpush1.msra.mxu0 %v2980
  %4214 = vmatprep.subr.mxu0 0.0
  %4215 = vmatpush1.msra.mxu0 %v2981
  %4216 = vmatprep.subr.mxu0 0.0
  %4217 = vmatpush1.msra.mxu0 %v2982
  %4218 = vmatprep.subr.mxu0 0.0
  %4219 = vmatpush1.msra.mxu0 %v2983
  %4220 = vmatprep.subr.mxu0 0.0
  %4221 = vmatpush1.msra.mxu0 %v2984
  %4222 = vmatprep.subr.mxu0 0.0
  %4223 = vmatpush1.msra.mxu0 %v2985
  %4224 = vmatprep.subr.mxu0 0.0
  %4225 = vmatpush1.msra.mxu0 %v2986
  %4226 = vmatprep.subr.mxu0 0.0
  %4227 = vmatpush1.msra.mxu0 %v2987
  %4228 = vmatprep.subr.mxu0 0.0
  %4229 = vmatpush1.msra.mxu0 %v2988
  %4230 = vmatprep.subr.mxu0 0.0
  %4231 = vmatpush1.msra.mxu0 %v2989
  %4232 = vmatprep.subr.mxu0 0.0
  %4233 = vmatpush1.msra.mxu0 %v2990
  %4234 = vmatprep.subr.mxu0 0.0
  %4235 = vmatpush1.msra.mxu0 %v2991
  %4236 = vmatprep.subr.mxu0 0.0
  %4237 = vmatpush1.msra.mxu0 %v2992
  %4238 = vmatprep.subr.mxu0 0.0
  %4239 = vmatpush1.msra.mxu0 %v2993
  %4240 = vmatprep.subr.mxu0 0.0
  %4241 = vmatpush1.msra.mxu0 %v2994
  %4242 = vmatprep.subr.mxu0 0.0
  %4243 = vmatpush1.msra.mxu0 %v2995
  %4244 = vmatprep.subr.mxu0 0.0
  %4245 = vmatpush1.msra.mxu0 %v2996
  %4246 = vmatprep.subr.mxu0 0.0
  %4247 = vmatpush1.msra.mxu0 %v2997
  %4248 = vmatprep.subr.mxu0 0.0
  %4249 = vmatpush1.msra.mxu0 %v2998
  %4250 = vmatprep.subr.mxu0 0.0
  %4251 = vmatpush1.msra.mxu0 %v2999
  %4252 = vmatprep.subr.mxu0 0.0
  %4253 = vmatpush1.msra.mxu0 %v3000
  %4254 = vmatprep.subr.mxu0 0.0
  %4255 = vmatpush1.msra.mxu0 %v3001
  %4256 = vmatprep.subr.mxu0 0.0
  %4257 = vmatpush1.msra.mxu0 %v3002
  %4258 = vmatprep.subr.mxu0 0.0
  %4259 = vmatpush1.msra.mxu0 %v3003
  %4260 = vmatprep.subr.mxu0 0.0
  %4261 = vmatpush1.msra.mxu0 %v3004
  %4262 = vmatprep.subr.mxu0 0.0
  %4263 = vmatpush1.msra.mxu0 %v3005
  %4264 = vmatprep.subr.mxu0 0.0
  %4265 = vmatpush1.msra.mxu0 %v3006
  %4266 = vmatprep.subr.mxu0 0.0
  %4267 = vmatpush1.msra.mxu0 %v3007
  %4268 = vmatprep.subr.mxu0 0.0
  %4269 = vmatpush1.msra.mxu0 %v3008
  %4270 = vmatprep.subr.mxu0 0.0
  %4271 = vmatpush1.msra.mxu0 %v3009
  %4272 = vmatprep.subr.mxu0 0.0
  %4273 = vmatpush1.msra.mxu0 %v3010
  %4274 = vmatprep.mubr.f32.mxu0 %v4163
  %4275 = vmatmul.mubr.f32.gmra.mrb[0].mxu0 %v4157
  %v4276 = vpop.f32.mrb[0].mxu0
  %v4277 = vadd.f32 0.0, %v4276
  %v4278 = vpop.f32.mrb[0].mxu0
  %4279 = vdwg.mxu0
  %4280 = vmatprep.subr.mxu0 0.0
  %4281 = vmatpush1.msra.mxu0 %v3011
  %4282 = vmatprep.subr.mxu0 0.0
  %4283 = vmatpush1.msra.mxu0 %v3012
  %4284 = vmatprep.subr.mxu0 0.0
  %4285 = vmatpush1.msra.mxu0 %v3013
  %4286 = vmatprep.subr.mxu0 0.0
  %4287 = vmatpush1.msra.mxu0 %v3014
  %4288 = vmatprep.subr.mxu0 0.0
  %4289 = vmatpush1.msra.mxu0 %v3015
  %4290 = vmatprep.subr.mxu0 0.0
  %4291 = vmatpush1.msra.mxu0 %v3016
  %4292 = vmatprep.subr.mxu0 0.0
  %4293 = vmatpush1.msra.mxu0 %v3017
  %4294 = vmatprep.subr.mxu0 0.0
  %4295 = vmatpush1.msra.mxu0 %v3018
  %4296 = vmatprep.subr.mxu0 0.0
  %4297 = vmatpush1.msra.mxu0 %v3019
  %4298 = vmatprep.subr.mxu0 0.0
  %4299 = vmatpush1.msra.mxu0 %v3020
  %4300 = vmatprep.subr.mxu0 0.0
  %4301 = vmatpush1.msra.mxu0 %v3021
  %4302 = vmatprep.subr.mxu0 0.0
  %4303 = vmatpush1.msra.mxu0 %v3022
  %4304 = vmatprep.subr.mxu0 0.0
  %4305 = vmatpush1.msra.mxu0 %v3023
  %4306 = vmatprep.subr.mxu0 0.0
  %4307 = vmatpush1.msra.mxu0 %v3024
  %4308 = vmatprep.subr.mxu0 0.0
  %4309 = vmatpush1.msra.mxu0 %v3025
  %4310 = vmatprep.subr.mxu0 0.0
  %4311 = vmatpush1.msra.mxu0 %v3026
  %4312 = vmatprep.subr.mxu0 0.0
  %4313 = vmatpush1.msra.mxu0 %v3027
  %4314 = vmatprep.subr.mxu0 0.0
  %4315 = vmatpush1.msra.mxu0 %v3028
  %4316 = vmatprep.subr.mxu0 0.0
  %4317 = vmatpush1.msra.mxu0 %v3029
  %4318 = vmatprep.subr.mxu0 0.0
  %4319 = vmatpush1.msra.mxu0 %v3030
  %4320 = vmatprep.subr.mxu0 0.0
  %4321 = vmatpush1.msra.mxu0 %v3031
  %4322 = vmatprep.subr.mxu0 0.0
  %4323 = vmatpush1.msra.mxu0 %v3032
  %4324 = vmatprep.subr.mxu0 0.0
  %4325 = vmatpush1.msra.mxu0 %v3033
  %4326 = vmatprep.subr.mxu0 0.0
  %4327 = vmatpush1.msra.mxu0 %v3034
  %4328 = vmatprep.subr.mxu0 0.0
  %4329 = vmatpush1.msra.mxu0 %v3035
  %4330 = vmatprep.subr.mxu0 0.0
  %4331 = vmatpush1.msra.mxu0 %v3036
  %4332 = vmatprep.subr.mxu0 0.0
  %4333 = vmatpush1.msra.mxu0 %v3037
  %4334 = vmatprep.subr.mxu0 0.0
  %4335 = vmatpush1.msra.mxu0 %v3038
  %4336 = vmatprep.subr.mxu0 0.0
  %4337 = vmatpush1.msra.mxu0 %v3039
  %4338 = vmatprep.subr.mxu0 0.0
  %4339 = vmatpush1.msra.mxu0 %v3040
  %4340 = vmatprep.subr.mxu0 0.0
  %4341 = vmatpush1.msra.mxu0 %v3041
  %4342 = vmatprep.subr.mxu0 0.0
  %4343 = vmatpush1.msra.mxu0 %v3042
  %4344 = vmatprep.mubr.f32.mxu0 %v4175
  %4345 = vmatmul.mubr.f32.gmra.mrb[0].mxu0 %v4169
  %v4346 = vpop.f32.mrb[0].mxu0
  %v4347 = vadd.f32 %v4277, %v4346
  %v4348 = vpop.f32.mrb[0].mxu0
  %4349 = vdwg.mxu0
  %4350 = vmatprep.subr.mxu0 0.0
  %4351 = vmatpush1.msra.mxu0 %v3043
  %4352 = vmatprep.subr.mxu0 0.0
  %4353 = vmatpush1.msra.mxu0 %v3044
  %4354 = vmatprep.subr.mxu0 0.0
  %4355 = vmatpush1.msra.mxu0 %v3045
  %4356 = vmatprep.subr.mxu0 0.0
  %4357 = vmatpush1.msra.mxu0 %v3046
  %4358 = vmatprep.subr.mxu0 0.0
  %4359 = vmatpush1.msra.mxu0 %v3047
  %4360 = vmatprep.subr.mxu0 0.0
  %4361 = vmatpush1.msra.mxu0 %v3048
  %4362 = vmatprep.subr.mxu0 0.0
  %4363 = vmatpush1.msra.mxu0 %v3049
  %4364 = vmatprep.subr.mxu0 0.0
  %4365 = vmatpush1.msra.mxu0 %v3050
  %4366 = vmatprep.subr.mxu0 0.0
  %4367 = vmatpush1.msra.mxu0 %v3051
  %4368 = vmatprep.subr.mxu0 0.0
  %4369 = vmatpush1.msra.mxu0 %v3052
  %4370 = vmatprep.subr.mxu0 0.0
  %4371 = vmatpush1.msra.mxu0 %v3053
  %4372 = vmatprep.subr.mxu0 0.0
  %4373 = vmatpush1.msra.mxu0 %v3054
  %4374 = vmatprep.subr.mxu0 0.0
  %4375 = vmatpush1.msra.mxu0 %v3055
  %4376 = vmatprep.subr.mxu0 0.0
  %4377 = vmatpush1.msra.mxu0 %v3056
  %4378 = vmatprep.subr.mxu0 0.0
  %4379 = vmatpush1.msra.mxu0 %v3057
  %4380 = vmatprep.subr.mxu0 0.0
  %4381 = vmatpush1.msra.mxu0 %v3058
  %4382 = vmatprep.subr.mxu0 0.0
  %4383 = vmatpush1.msra.mxu0 %v3059
  %4384 = vmatprep.subr.mxu0 0.0
  %4385 = vmatpush1.msra.mxu0 %v3060
  %4386 = vmatprep.subr.mxu0 0.0
  %4387 = vmatpush1.msra.mxu0 %v3061
  %4388 = vmatprep.subr.mxu0 0.0
  %4389 = vmatpush1.msra.mxu0 %v3062
  %4390 = vmatprep.subr.mxu0 0.0
  %4391 = vmatpush1.msra.mxu0 %v3063
  %4392 = vmatprep.subr.mxu0 0.0
  %4393 = vmatpush1.msra.mxu0 %v3064
  %4394 = vmatprep.subr.mxu0 0.0
  %4395 = vmatpush1.msra.mxu0 %v3065
  %4396 = vmatprep.subr.mxu0 0.0
  %4397 = vmatpush1.msra.mxu0 %v3066
  %4398 = vmatprep.subr.mxu0 0.0
  %4399 = vmatpush1.msra.mxu0 %v3067
  %4400 = vmatprep.subr.mxu0 0.0
  %4401 = vmatpush1.msra.mxu0 %v3068
  %4402 = vmatprep.subr.mxu0 0.0
  %4403 = vmatpush1.msra.mxu0 %v3069
  %4404 = vmatprep.subr.mxu0 0.0
  %4405 = vmatpush1.msra.mxu0 %v3070
  %4406 = vmatprep.subr.mxu0 0.0
  %4407 = vmatpush1.msra.mxu0 %v3071
  %4408 = vmatprep.subr.mxu0 0.0
  %4409 = vmatpush1.msra.mxu0 %v3072
  %4410 = vmatprep.subr.mxu0 0.0
  %4411 = vmatpush1.msra.mxu0 %v3073
  %4412 = vmatprep.subr.mxu0 0.0
  %4413 = vmatpush1.msra.mxu0 %v3074
  %4414 = vmatprep.mubr.f32.mxu0 %v4187
  %4415 = vmatmul.mubr.f32.gmra.mrb[0].mxu0 %v4181
  %v4416 = vpop.f32.mrb[0].mxu0
  %v4417 = vadd.f32 %v4347, %v4416
  %v4418 = vpop.f32.mrb[0].mxu0
  %4419 = vdwg.mxu0
  %4420 = vmatprep.subr.mxu0 0.0
  %4421 = vmatpush1.msra.mxu0 %v3075
  %4422 = vmatprep.subr.mxu0 0.0
  %4423 = vmatpush1.msra.mxu0 %v3076
  %4424 = vmatprep.subr.mxu0 0.0
  %4425 = vmatpush1.msra.mxu0 %v3077
  %4426 = vmatprep.subr.mxu0 0.0
  %4427 = vmatpush1.msra.mxu0 %v3078
  %4428 = vmatprep.subr.mxu0 0.0
  %4429 = vmatpush1.msra.mxu0 %v3079
  %4430 = vmatprep.subr.mxu0 0.0
  %4431 = vmatpush1.msra.mxu0 %v3080
  %4432 = vmatprep.subr.mxu0 0.0
  %4433 = vmatpush1.msra.mxu0 %v3081
  %4434 = vmatprep.subr.mxu0 0.0
  %4435 = vmatpush1.msra.mxu0 %v3082
  %4436 = vmatprep.subr.mxu0 0.0
  %4437 = vmatpush1.msra.mxu0 %v3083
  %4438 = vmatprep.subr.mxu0 0.0
  %4439 = vmatpush1.msra.mxu0 %v3084
  %4440 = vmatprep.subr.mxu0 0.0
  %4441 = vmatpush1.msra.mxu0 %v3085
  %4442 = vmatprep.subr.mxu0 0.0
  %4443 = vmatpush1.msra.mxu0 %v3086
  %4444 = vmatprep.subr.mxu0 0.0
  %4445 = vmatpush1.msra.mxu0 %v3087
  %4446 = vmatprep.subr.mxu0 0.0
  %4447 = vmatpush1.msra.mxu0 %v3088
  %4448 = vmatprep.subr.mxu0 0.0
  %4449 = vmatpush1.msra.mxu0 %v3089
  %4450 = vmatprep.subr.mxu0 0.0
  %4451 = vmatpush1.msra.mxu0 %v3090
  %4452 = vmatprep.subr.mxu0 0.0
  %4453 = vmatpush1.msra.mxu0 %v3091
  %4454 = vmatprep.subr.mxu0 0.0
  %4455 = vmatpush1.msra.mxu0 %v3092
  %4456 = vmatprep.subr.mxu0 0.0
  %4457 = vmatpush1.msra.mxu0 %v3093
  %4458 = vmatprep.subr.mxu0 0.0
  %4459 = vmatpush1.msra.mxu0 %v3094
  %4460 = vmatprep.subr.mxu0 0.0
  %4461 = vmatpush1.msra.mxu0 %v3095
  %4462 = vmatprep.subr.mxu0 0.0
  %4463 = vmatpush1.msra.mxu0 %v3096
  %4464 = vmatprep.subr.mxu0 0.0
  %4465 = vmatpush1.msra.mxu0 %v3097
  %4466 = vmatprep.subr.mxu0 0.0
  %4467 = vmatpush1.msra.mxu0 %v3098
  %4468 = vmatprep.subr.mxu0 0.0
  %4469 = vmatpush1.msra.mxu0 %v3099
  %4470 = vmatprep.subr.mxu0 0.0
  %4471 = vmatpush1.msra.mxu0 %v3100
  %4472 = vmatprep.subr.mxu0 0.0
  %4473 = vmatpush1.msra.mxu0 %v3101
  %4474 = vmatprep.subr.mxu0 0.0
  %4475 = vmatpush1.msra.mxu0 %v3102
  %4476 = vmatprep.subr.mxu0 0.0
  %4477 = vmatpush1.msra.mxu0 %v3103
  %4478 = vmatprep.subr.mxu0 0.0
  %4479 = vmatpush1.msra.mxu0 %v3104
  %4480 = vmatprep.subr.mxu0 0.0
  %4481 = vmatpush1.msra.mxu0 %v3105
  %4482 = vmatprep.subr.mxu0 0.0
  %4483 = vmatpush1.msra.mxu0 %v3106
  %4484 = vmatprep.mubr.f32.mxu0 %v4199
  %4485 = vmatmul.mubr.f32.gmra.mrb[0].mxu0 %v4193
  %v4486 = vpop.f32.mrb[0].mxu0
  %v4487 = vadd.f32 %v4417, %v4486
  %v4488 = vpop.f32.mrb[0].mxu0
  %4489 = vdwg.mxu0
  %4490 = vmatprep.subr.mxu0 0.0
  %4491 = vmatpush1.msra.mxu0 %v3107
  %4492 = vmatprep.subr.mxu0 0.0
  %4493 = vmatpush1.msra.mxu0 %v3108
  %4494 = vmatprep.subr.mxu0 0.0
  %4495 = vmatpush1.msra.mxu0 %v3109
  %4496 = vmatprep.subr.mxu0 0.0
  %4497 = vmatpush1.msra.mxu0 %v3110
  %4498 = vmatprep.subr.mxu0 0.0
  %4499 = vmatpush1.msra.mxu0 0.0
  %4500 = vmatprep.subr.mxu0 0.0
  %4501 = vmatpush1.msra.mxu0 0.0
  %4502 = vmatprep.subr.mxu0 0.0
  %4503 = vmatpush1.msra.mxu0 0.0
  %4504 = vmatprep.subr.mxu0 0.0
  %4505 = vmatpush1.msra.mxu0 0.0
  %4506 = vmatprep.subr.mxu0 0.0
  %4507 = vmatpush1.msra.mxu0 0.0
  %4508 = vmatprep.subr.mxu0 0.0
  %4509 = vmatpush1.msra.mxu0 0.0
  %4510 = vmatprep.subr.mxu0 0.0
  %4511 = vmatpush1.msra.mxu0 0.0
  %4512 = vmatprep.subr.mxu0 0.0
  %4513 = vmatpush1.msra.mxu0 0.0
  %4514 = vmatprep.subr.mxu0 0.0
  %4515 = vmatpush1.msra.mxu0 0.0
  %4516 = vmatprep.subr.mxu0 0.0
  %4517 = vmatpush1.msra.mxu0 0.0
  %4518 = vmatprep.subr.mxu0 0.0
  %4519 = vmatpush1.msra.mxu0 0.0
  %4520 = vmatprep.subr.mxu0 0.0
  %4521 = vmatpush1.msra.mxu0 0.0
  %4522 = vmatprep.subr.mxu0 0.0
  %4523 = vmatpush1.msra.mxu0 0.0
  %4524 = vmatprep.subr.mxu0 0.0
  %4525 = vmatpush1.msra.mxu0 0.0
  %4526 = vmatprep.subr.mxu0 0.0
  %4527 = vmatpush1.msra.mxu0 0.0
  %4528 = vmatprep.subr.mxu0 0.0
  %4529 = vmatpush1.msra.mxu0 0.0
  %4530 = vmatprep.subr.mxu0 0.0
  %4531 = vmatpush1.msra.mxu0 0.0
  %4532 = vmatprep.subr.mxu0 0.0
  %4533 = vmatpush1.msra.mxu0 0.0
  %4534 = vmatprep.subr.mxu0 0.0
  %4535 = vmatpush1.msra.mxu0 0.0
  %4536 = vmatprep.subr.mxu0 0.0
  %4537 = vmatpush1.msra.mxu0 0.0
  %4538 = vmatprep.subr.mxu0 0.0
  %4539 = vmatpush1.msra.mxu0 0.0
  %4540 = vmatprep.subr.mxu0 0.0
  %4541 = vmatpush1.msra.mxu0 0.0
  %4542 = vmatprep.subr.mxu0 0.0
  %4543 = vmatpush1.msra.mxu0 0.0
  %4544 = vmatprep.subr.mxu0 0.0
  %4545 = vmatpush1.msra.mxu0 0.0
  %4546 = vmatprep.subr.mxu0 0.0
  %4547 = vmatpush1.msra.mxu0 0.0
  %4548 = vmatprep.subr.mxu0 0.0
  %4549 = vmatpush1.msra.mxu0 0.0
  %4550 = vmatprep.subr.mxu0 0.0
  %4551 = vmatpush1.msra.mxu0 0.0
  %4552 = vmatprep.subr.mxu0 0.0
  %4553 = vmatpush1.msra.mxu0 0.0
  %4554 = vmatprep.mubr.f32.mxu0 0.0
  %4555 = vmatmul.mubr.f32.gmra.mrb[0].mxu0 %v4208
  %v4556 = vpop.f32.mrb[0].mxu0
  %v4557 = vadd.f32 %v4487, %v4556
  %v4558 = vpop.f32.mrb[0].mxu0
  %4559 = vdwg.mxu0
  %v4560 = vmul.f32 %v4557, %v3730
  %v4561 = vld [vmem:[%s12] sm:$0x1]
  %v4562 = vadd.f32 %v4560, 1e-05
  %v4563 = vrsqrt.pop %v4562
  %v4564 = vmul.f32 %v4561, %v4563
  %v4565 = vld [vmem:[%s13] sm:$0x1]
  %v4566 = vmul.f32 %v3731, %v4564
  %v4567 = vsub.f32 %v4565, %v4566
  %v4569 = vsel %vm3369, %v4564, 0
  %4571 = vmatprep.subr.mxu0 %v3273
  %4572 = vmatpush1.msra.mxu0 %v3272
  %4573 = vmatprep.subr.mxu0 %v3282
  %4574 = vmatpush1.msra.mxu0 %v3281
  %4575 = vmatprep.subr.mxu0 %v3291
  %4576 = vmatpush1.msra.mxu0 %v3290
  %4577 = vmatprep.subr.mxu0 %v3300
  %4578 = vmatpush1.msra.mxu0 %v3299
  %4579 = vmatprep.subr.mxu0 0.0
  %4580 = vmatpush1.msra.mxu0 0.0
  %4581 = vmatprep.subr.mxu0 0.0
  %4582 = vmatpush1.msra.mxu0 0.0
  %4583 = vmatprep.subr.mxu0 0.0
  %4584 = vmatpush1.msra.mxu0 0.0
  %4585 = vmatprep.subr.mxu0 0.0
  %4586 = vmatpush1.msra.mxu0 0.0
  %4587 = vmatprep.subr.mxu0 0.0
  %4588 = vmatpush1.msra.mxu0 0.0
  %4589 = vmatprep.subr.mxu0 0.0
  %4590 = vmatpush1.msra.mxu0 0.0
  %4591 = vmatprep.subr.mxu0 0.0
  %4592 = vmatpush1.msra.mxu0 0.0
  %4593 = vmatprep.subr.mxu0 0.0
  %4594 = vmatpush1.msra.mxu0 0.0
  %4595 = vmatprep.subr.mxu0 0.0
  %4596 = vmatpush1.msra.mxu0 0.0
  %4597 = vmatprep.subr.mxu0 0.0
  %4598 = vmatpush1.msra.mxu0 0.0
  %4599 = vmatprep.subr.mxu0 0.0
  %4600 = vmatpush1.msra.mxu0 0.0
  %4601 = vmatprep.subr.mxu0 0.0
  %4602 = vmatpush1.msra.mxu0 0.0
  %4603 = vmatprep.subr.mxu0 0.0
  %4604 = vmatpush1.msra.mxu0 0.0
  %4605 = vmatprep.subr.mxu0 0.0
  %4606 = vmatpush1.msra.mxu0 0.0
  %4607 = vmatprep.subr.mxu0 0.0
  %4608 = vmatpush1.msra.mxu0 0.0
  %4609 = vmatprep.subr.mxu0 0.0
  %4610 = vmatpush1.msra.mxu0 0.0
  %4611 = vmatprep.subr.mxu0 0.0
  %4612 = vmatpush1.msra.mxu0 0.0
  %4613 = vmatprep.subr.mxu0 0.0
  %4614 = vmatpush1.msra.mxu0 0.0
  %4615 = vmatprep.subr.mxu0 0.0
  %4616 = vmatpush1.msra.mxu0 0.0
  %4617 = vmatprep.subr.mxu0 0.0
  %4618 = vmatpush1.msra.mxu0 0.0
  %4619 = vmatprep.subr.mxu0 0.0
  %4620 = vmatpush1.msra.mxu0 0.0
  %4621 = vmatprep.subr.mxu0 0.0
  %4622 = vmatpush1.msra.mxu0 0.0
  %4623 = vmatprep.subr.mxu0 0.0
  %4624 = vmatpush1.msra.mxu0 0.0
  %4625 = vmatprep.subr.mxu0 0.0
  %4626 = vmatpush1.msra.mxu0 0.0
  %4627 = vmatprep.subr.mxu0 0.0
  %4628 = vmatpush1.msra.mxu0 0.0
  %4629 = vmatprep.subr.mxu0 0.0
  %4630 = vmatpush1.msra.mxu0 0.0
  %4631 = vmatprep.subr.mxu0 0.0
  %4632 = vmatpush1.msra.mxu0 0.0
  %4633 = vmatprep.subr.mxu0 0.0
  %4634 = vmatpush1.msra.mxu0 0.0
  %4635 = vmatprep.mubr.f32.mxu0 0.0
  %4636 = vmatmul.mubr.f32.gmra.mrb[0].mxu0 %v4569
  %v4637 = vpop.f32.mrb[0].mxu0
  %v4638 = vadd.f32 0.0, %v4637
  %v4639 = vpop.f32.mrb[0].mxu0
  %v4640 = vadd.f32 0.0, %v4639
  %4641 = vdwg.mxu0
  %4642 = vmatprep.subr.mxu0 %v3275
  %4643 = vmatpush1.msra.mxu0 %v3274
  %4644 = vmatprep.subr.mxu0 %v3284
  %4645 = vmatpush1.msra.mxu0 %v3283
  %4646 = vmatprep.subr.mxu0 %v3293
  %4647 = vmatpush1.msra.mxu0 %v3292
  %4648 = vmatprep.subr.mxu0 %v3302
  %4649 = vmatpush1.msra.mxu0 %v3301
  %4650 = vmatprep.subr.mxu0 0.0
  %4651 = vmatpush1.msra.mxu0 0.0
  %4652 = vmatprep.subr.mxu0 0.0
  %4653 = vmatpush1.msra.mxu0 0.0
  %4654 = vmatprep.subr.mxu0 0.0
  %4655 = vmatpush1.msra.mxu0 0.0
  %4656 = vmatprep.subr.mxu0 0.0
  %4657 = vmatpush1.msra.mxu0 0.0
  %4658 = vmatprep.subr.mxu0 0.0
  %4659 = vmatpush1.msra.mxu0 0.0
  %4660 = vmatprep.subr.mxu0 0.0
  %4661 = vmatpush1.msra.mxu0 0.0
  %4662 = vmatprep.subr.mxu0 0.0
  %4663 = vmatpush1.msra.mxu0 0.0
  %4664 = vmatprep.subr.mxu0 0.0
  %4665 = vmatpush1.msra.mxu0 0.0
  %4666 = vmatprep.subr.mxu0 0.0
  %4667 = vmatpush1.msra.mxu0 0.0
  %4668 = vmatprep.subr.mxu0 0.0
  %4669 = vmatpush1.msra.mxu0 0.0
  %4670 = vmatprep.subr.mxu0 0.0
  %4671 = vmatpush1.msra.mxu0 0.0
  %4672 = vmatprep.subr.mxu0 0.0
  %4673 = vmatpush1.msra.mxu0 0.0
  %4674 = vmatprep.subr.mxu0 0.0
  %4675 = vmatpush1.msra.mxu0 0.0
  %4676 = vmatprep.subr.mxu0 0.0
  %4677 = vmatpush1.msra.mxu0 0.0
  %4678 = vmatprep.subr.mxu0 0.0
  %4679 = vmatpush1.msra.mxu0 0.0
  %4680 = vmatprep.subr.mxu0 0.0
  %4681 = vmatpush1.msra.mxu0 0.0
  %4682 = vmatprep.subr.mxu0 0.0
  %4683 = vmatpush1.msra.mxu0 0.0
  %4684 = vmatprep.subr.mxu0 0.0
  %4685 = vmatpush1.msra.mxu0 0.0
  %4686 = vmatprep.subr.mxu0 0.0
  %4687 = vmatpush1.msra.mxu0 0.0
  %4688 = vmatprep.subr.mxu0 0.0
  %4689 = vmatpush1.msra.mxu0 0.0
  %4690 = vmatprep.subr.mxu0 0.0
  %4691 = vmatpush1.msra.mxu0 0.0
  %4692 = vmatprep.subr.mxu0 0.0
  %4693 = vmatpush1.msra.mxu0 0.0
  %4694 = vmatprep.subr.mxu0 0.0
  %4695 = vmatpush1.msra.mxu0 0.0
  %4696 = vmatprep.subr.mxu0 0.0
  %4697 = vmatpush1.msra.mxu0 0.0
  %4698 = vmatprep.subr.mxu0 0.0
  %4699 = vmatpush1.msra.mxu0 0.0
  %4700 = vmatprep.subr.mxu0 0.0
  %4701 = vmatpush1.msra.mxu0 0.0
  %4702 = vmatprep.subr.mxu0 0.0
  %4703 = vmatpush1.msra.mxu0 0.0
  %4704 = vmatprep.subr.mxu0 0.0
  %4705 = vmatpush1.msra.mxu0 0.0
  %4706 = vmatprep.mubr.f32.mxu0 0.0
  %4707 = vmatmul.mubr.f32.gmra.mrb[0].mxu0 %v4569
  %v4708 = vpop.f32.mrb[0].mxu0
  %v4709 = vadd.f32 0.0, %v4708
  %v4710 = vpop.f32.mrb[0].mxu0
  %v4711 = vadd.f32 0.0, %v4710
  %4712 = vdwg.mxu0
  %4713 = vmatprep.subr.mxu0 %v3277
  %4714 = vmatpush1.msra.mxu0 %v3276
  %4715 = vmatprep.subr.mxu0 %v3286
  %4716 = vmatpush1.msra.mxu0 %v3285
  %4717 = vmatprep.subr.mxu0 %v3295
  %4718 = vmatpush1.msra.mxu0 %v3294
  %4719 = vmatprep.subr.mxu0 %v3304
  %4720 = vmatpush1.msra.mxu0 %v3303
  %4721 = vmatprep.subr.mxu0 0.0
  %4722 = vmatpush1.msra.mxu0 0.0
  %4723 = vmatprep.subr.mxu0 0.0
  %4724 = vmatpush1.msra.mxu0 0.0
  %4725 = vmatprep.subr.mxu0 0.0
  %4726 = vmatpush1.msra.mxu0 0.0
  %4727 = vmatprep.subr.mxu0 0.0
  %4728 = vmatpush1.msra.mxu0 0.0
  %4729 = vmatprep.subr.mxu0 0.0
  %4730 = vmatpush1.msra.mxu0 0.0
  %4731 = vmatprep.subr.mxu0 0.0
  %4732 = vmatpush1.msra.mxu0 0.0
  %4733 = vmatprep.subr.mxu0 0.0
  %4734 = vmatpush1.msra.mxu0 0.0
  %4735 = vmatprep.subr.mxu0 0.0
  %4736 = vmatpush1.msra.mxu0 0.0
  %4737 = vmatprep.subr.mxu0 0.0
  %4738 = vmatpush1.msra.mxu0 0.0
  %4739 = vmatprep.subr.mxu0 0.0
  %4740 = vmatpush1.msra.mxu0 0.0
  %4741 = vmatprep.subr.mxu0 0.0
  %4742 = vmatpush1.msra.mxu0 0.0
  %4743 = vmatprep.subr.mxu0 0.0
  %4744 = vmatpush1.msra.mxu0 0.0
  %4745 = vmatprep.subr.mxu0 0.0
  %4746 = vmatpush1.msra.mxu0 0.0
  %4747 = vmatprep.subr.mxu0 0.0
  %4748 = vmatpush1.msra.mxu0 0.0
  %4749 = vmatprep.subr.mxu0 0.0
  %4750 = vmatpush1.msra.mxu0 0.0
  %4751 = vmatprep.subr.mxu0 0.0
  %4752 = vmatpush1.msra.mxu0 0.0
  %4753 = vmatprep.subr.mxu0 0.0
  %4754 = vmatpush1.msra.mxu0 0.0
  %4755 = vmatprep.subr.mxu0 0.0
  %4756 = vmatpush1.msra.mxu0 0.0
  %4757 = vmatprep.subr.mxu0 0.0
  %4758 = vmatpush1.msra.mxu0 0.0
  %4759 = vmatprep.subr.mxu0 0.0
  %4760 = vmatpush1.msra.mxu0 0.0
  %4761 = vmatprep.subr.mxu0 0.0
  %4762 = vmatpush1.msra.mxu0 0.0
  %4763 = vmatprep.subr.mxu0 0.0
  %4764 = vmatpush1.msra.mxu0 0.0
  %4765 = vmatprep.subr.mxu0 0.0
  %4766 = vmatpush1.msra.mxu0 0.0
  %4767 = vmatprep.subr.mxu0 0.0
  %4768 = vmatpush1.msra.mxu0 0.0
  %4769 = vmatprep.subr.mxu0 0.0
  %4770 = vmatpush1.msra.mxu0 0.0
  %4771 = vmatprep.subr.mxu0 0.0
  %4772 = vmatpush1.msra.mxu0 0.0
  %4773 = vmatprep.subr.mxu0 0.0
  %4774 = vmatpush1.msra.mxu0 0.0
  %4775 = vmatprep.subr.mxu0 0.0
  %4776 = vmatpush1.msra.mxu0 0.0
  %4777 = vmatprep.mubr.f32.mxu0 0.0
  %4778 = vmatmul.mubr.f32.gmra.mrb[0].mxu0 %v4569
  %v4779 = vpop.f32.mrb[0].mxu0
  %v4780 = vadd.f32 0.0, %v4779
  %v4781 = vpop.f32.mrb[0].mxu0
  %v4782 = vadd.f32 0.0, %v4781
  %4783 = vdwg.mxu0
  %4784 = vmatprep.subr.mxu0 %v3279
  %4785 = vmatpush1.msra.mxu0 %v3278
  %4786 = vmatprep.subr.mxu0 %v3288
  %4787 = vmatpush1.msra.mxu0 %v3287
  %4788 = vmatprep.subr.mxu0 %v3297
  %4789 = vmatpush1.msra.mxu0 %v3296
  %4790 = vmatprep.subr.mxu0 %v3306
  %4791 = vmatpush1.msra.mxu0 %v3305
  %4792 = vmatprep.subr.mxu0 0.0
  %4793 = vmatpush1.msra.mxu0 0.0
  %4794 = vmatprep.subr.mxu0 0.0
  %4795 = vmatpush1.msra.mxu0 0.0
  %4796 = vmatprep.subr.mxu0 0.0
  %4797 = vmatpush1.msra.mxu0 0.0
  %4798 = vmatprep.subr.mxu0 0.0
  %4799 = vmatpush1.msra.mxu0 0.0
  %4800 = vmatprep.subr.mxu0 0.0
  %4801 = vmatpush1.msra.mxu0 0.0
  %4802 = vmatprep.subr.mxu0 0.0
  %4803 = vmatpush1.msra.mxu0 0.0
  %4804 = vmatprep.subr.mxu0 0.0
  %4805 = vmatpush1.msra.mxu0 0.0
  %4806 = vmatprep.subr.mxu0 0.0
  %4807 = vmatpush1.msra.mxu0 0.0
  %4808 = vmatprep.subr.mxu0 0.0
  %4809 = vmatpush1.msra.mxu0 0.0
  %4810 = vmatprep.subr.mxu0 0.0
  %4811 = vmatpush1.msra.mxu0 0.0
  %4812 = vmatprep.subr.mxu0 0.0
  %4813 = vmatpush1.msra.mxu0 0.0
  %4814 = vmatprep.subr.mxu0 0.0
  %4815 = vmatpush1.msra.mxu0 0.0
  %4816 = vmatprep.subr.mxu0 0.0
  %4817 = vmatpush1.msra.mxu0 0.0
  %4818 = vmatprep.subr.mxu0 0.0
  %4819 = vmatpush1.msra.mxu0 0.0
  %4820 = vmatprep.subr.mxu0 0.0
  %4821 = vmatpush1.msra.mxu0 0.0
  %4822 = vmatprep.subr.mxu0 0.0
  %4823 = vmatpush1.msra.mxu0 0.0
  %4824 = vmatprep.subr.mxu0 0.0
  %4825 = vmatpush1.msra.mxu0 0.0
  %4826 = vmatprep.subr.mxu0 0.0
  %4827 = vmatpush1.msra.mxu0 0.0
  %4828 = vmatprep.subr.mxu0 0.0
  %4829 = vmatpush1.msra.mxu0 0.0
  %4830 = vmatprep.subr.mxu0 0.0
  %4831 = vmatpush1.msra.mxu0 0.0
  %4832 = vmatprep.subr.mxu0 0.0
  %4833 = vmatpush1.msra.mxu0 0.0
  %4834 = vmatprep.subr.mxu0 0.0
  %4835 = vmatpush1.msra.mxu0 0.0
  %4836 = vmatprep.subr.mxu0 0.0
  %4837 = vmatpush1.msra.mxu0 0.0
  %4838 = vmatprep.subr.mxu0 0.0
  %4839 = vmatpush1.msra.mxu0 0.0
  %4840 = vmatprep.subr.mxu0 0.0
  %4841 = vmatpush1.msra.mxu0 0.0
  %4842 = vmatprep.subr.mxu0 0.0
  %4843 = vmatpush1.msra.mxu0 0.0
  %4844 = vmatprep.subr.mxu0 0.0
  %4845 = vmatpush1.msra.mxu0 0.0
  %4846 = vmatprep.subr.mxu0 0.0
  %4847 = vmatpush1.msra.mxu0 0.0
  %4848 = vmatprep.mubr.f32.mxu0 0.0
  %4849 = vmatmul.mubr.f32.gmra.mrb[0].mxu0 %v4569
  %v4850 = vpop.f32.mrb[0].mxu0
  %v4851 = vadd.f32 0.0, %v4850
  %v4852 = vpop.f32.mrb[0].mxu0
  %v4853 = vadd.f32 0.0, %v4852
  %4854 = vdwg.mxu0
  %4855 = vmatprep.subr.mxu0 0.0
  %4856 = vmatpush1.msra.mxu0 %v3280
  %4857 = vmatprep.subr.mxu0 0.0
  %4858 = vmatpush1.msra.mxu0 %v3289
  %4859 = vmatprep.subr.mxu0 0.0
  %4860 = vmatpush1.msra.mxu0 %v3298
  %4861 = vmatprep.subr.mxu0 0.0
  %4862 = vmatpush1.msra.mxu0 %v3307
  %4863 = vmatprep.subr.mxu0 0.0
  %4864 = vmatpush1.msra.mxu0 0.0
  %4865 = vmatprep.subr.mxu0 0.0
  %4866 = vmatpush1.msra.mxu0 0.0
  %4867 = vmatprep.subr.mxu0 0.0
  %4868 = vmatpush1.msra.mxu0 0.0
  %4869 = vmatprep.subr.mxu0 0.0
  %4870 = vmatpush1.msra.mxu0 0.0
  %4871 = vmatprep.subr.mxu0 0.0
  %4872 = vmatpush1.msra.mxu0 0.0
  %4873 = vmatprep.subr.mxu0 0.0
  %4874 = vmatpush1.msra.mxu0 0.0
  %4875 = vmatprep.subr.mxu0 0.0
  %4876 = vmatpush1.msra.mxu0 0.0
  %4877 = vmatprep.subr.mxu0 0.0
  %4878 = vmatpush1.msra.mxu0 0.0
  %4879 = vmatprep.subr.mxu0 0.0
  %4880 = vmatpush1.msra.mxu0 0.0
  %4881 = vmatprep.subr.mxu0 0.0
  %4882 = vmatpush1.msra.mxu0 0.0
  %4883 = vmatprep.subr.mxu0 0.0
  %4884 = vmatpush1.msra.mxu0 0.0
  %4885 = vmatprep.subr.mxu0 0.0
  %4886 = vmatpush1.msra.mxu0 0.0
  %4887 = vmatprep.subr.mxu0 0.0
  %4888 = vmatpush1.msra.mxu0 0.0
  %4889 = vmatprep.subr.mxu0 0.0
  %4890 = vmatpush1.msra.mxu0 0.0
  %4891 = vmatprep.subr.mxu0 0.0
  %4892 = vmatpush1.msra.mxu0 0.0
  %4893 = vmatprep.subr.mxu0 0.0
  %4894 = vmatpush1.msra.mxu0 0.0
  %4895 = vmatprep.subr.mxu0 0.0
  %4896 = vmatpush1.msra.mxu0 0.0
  %4897 = vmatprep.subr.mxu0 0.0
  %4898 = vmatpush1.msra.mxu0 0.0
  %4899 = vmatprep.subr.mxu0 0.0
  %4900 = vmatpush1.msra.mxu0 0.0
  %4901 = vmatprep.subr.mxu0 0.0
  %4902 = vmatpush1.msra.mxu0 0.0
  %4903 = vmatprep.subr.mxu0 0.0
  %4904 = vmatpush1.msra.mxu0 0.0
  %4905 = vmatprep.subr.mxu0 0.0
  %4906 = vmatpush1.msra.mxu0 0.0
  %4907 = vmatprep.subr.mxu0 0.0
  %4908 = vmatpush1.msra.mxu0 0.0
  %4909 = vmatprep.subr.mxu0 0.0
  %4910 = vmatpush1.msra.mxu0 0.0
  %4911 = vmatprep.subr.mxu0 0.0
  %4912 = vmatpush1.msra.mxu0 0.0
  %4913 = vmatprep.subr.mxu0 0.0
  %4914 = vmatpush1.msra.mxu0 0.0
  %4915 = vmatprep.subr.mxu0 0.0
  %4916 = vmatpush1.msra.mxu0 0.0
  %4917 = vmatprep.subr.mxu0 0.0
  %4918 = vmatpush1.msra.mxu0 0.0
  %4919 = vmatprep.mubr.f32.mxu0 0.0
  %4920 = vmatmul.mubr.f32.gmra.mrb[0].mxu0 %v4569
  %v4921 = vpop.f32.mrb[0].mxu0
  %v4922 = vadd.f32 0.0, %v4921
  %v4923 = vpop.f32.mrb[0].mxu0
  %4924 = vdwg.mxu0
  %v4925 = vlaneseq
  %v4926 = vshrl.u32 %v4925, 7
  %v4927 = vsub.s32 0, %v4926
  %v4928 = vrot.slane %v4638, %v4927
  %v4929 = vlaneseq
  %v4930 = vshrl.u32 %v4929, 7
  %v4931 = vsub.s32 0, %v4930
  %v4932 = vrot.slane %v4640, %v4931
  %v4933 = vlaneseq
  %v4934 = vshrl.u32 %v4933, 7
  %v4935 = vsub.s32 0, %v4934
  %v4936 = vrot.slane %v4709, %v4935
  %v4937 = vlaneseq
  %v4938 = vshrl.u32 %v4937, 7
  %v4939 = vsub.s32 0, %v4938
  %v4940 = vrot.slane %v4711, %v4939
  %v4941 = vlaneseq
  %v4942 = vshrl.u32 %v4941, 7
  %v4943 = vsub.s32 0, %v4942
  %v4944 = vrot.slane %v4780, %v4943
  %v4945 = vlaneseq
  %v4946 = vshrl.u32 %v4945, 7
  %v4947 = vsub.s32 0, %v4946
  %v4948 = vrot.slane %v4782, %v4947
  %v4949 = vlaneseq
  %v4950 = vshrl.u32 %v4949, 7
  %v4951 = vsub.s32 0, %v4950
  %v4952 = vrot.slane %v4851, %v4951
  %v4953 = vlaneseq
  %v4954 = vshrl.u32 %v4953, 7
  %v4955 = vsub.s32 0, %v4954
  %v4956 = vrot.slane %v4853, %v4955
  %v4957 = vlaneseq
  %v4958 = vshrl.u32 %v4957, 7
  %v4959 = vsub.s32 0, %v4958
  %v4960 = vrot.slane %v4922, %v4959
  %v4961 = vmul.f32 %v2180, %v4928
  %v4962 = vmul.f32 %v2182, %v4932
  %v4963 = vmul.f32 %v2221, %v4936
  %v4964 = vmul.f32 %v2223, %v4940
  %v4965 = vmul.f32 %v2262, %v4944
  %v4966 = vmul.f32 %v2264, %v4948
  %v4967 = vmul.f32 %v2303, %v4952
  %v4968 = vmul.f32 %v2305, %v4956
  %v4969 = vmul.f32 %v2344, %v4960
  %v4971 = vsel %vm3369, %v4567, 0
  %4973 = vmatprep.subr.mxu0 %v3273
  %4974 = vmatpush1.msra.mxu0 %v3272
  %4975 = vmatprep.subr.mxu0 %v3282
  %4976 = vmatpush1.msra.mxu0 %v3281
  %4977 = vmatprep.subr.mxu0 %v3291
  %4978 = vmatpush1.msra.mxu0 %v3290
  %4979 = vmatprep.subr.mxu0 %v3300
  %4980 = vmatpush1.msra.mxu0 %v3299
  %4981 = vmatprep.subr.mxu0 0.0
  %4982 = vmatpush1.msra.mxu0 0.0
  %4983 = vmatprep.subr.mxu0 0.0
  %4984 = vmatpush1.msra.mxu0 0.0
  %4985 = vmatprep.subr.mxu0 0.0
  %4986 = vmatpush1.msra.mxu0 0.0
  %4987 = vmatprep.subr.mxu0 0.0
  %4988 = vmatpush1.msra.mxu0 0.0
  %4989 = vmatprep.subr.mxu0 0.0
  %4990 = vmatpush1.msra.mxu0 0.0
  %4991 = vmatprep.subr.mxu0 0.0
  %4992 = vmatpush1.msra.mxu0 0.0
  %4993 = vmatprep.subr.mxu0 0.0
  %4994 = vmatpush1.msra.mxu0 0.0
  %4995 = vmatprep.subr.mxu0 0.0
  %4996 = vmatpush1.msra.mxu0 0.0
  %4997 = vmatprep.subr.mxu0 0.0
  %4998 = vmatpush1.msra.mxu0 0.0
  %4999 = vmatprep.subr.mxu0 0.0
  %5000 = vmatpush1.msra.mxu0 0.0
  %5001 = vmatprep.subr.mxu0 0.0
  %5002 = vmatpush1.msra.mxu0 0.0
  %5003 = vmatprep.subr.mxu0 0.0
  %5004 = vmatpush1.msra.mxu0 0.0
  %5005 = vmatprep.subr.mxu0 0.0
  %5006 = vmatpush1.msra.mxu0 0.0
  %5007 = vmatprep.subr.mxu0 0.0
  %5008 = vmatpush1.msra.mxu0 0.0
  %5009 = vmatprep.subr.mxu0 0.0
  %5010 = vmatpush1.msra.mxu0 0.0
  %5011 = vmatprep.subr.mxu0 0.0
  %5012 = vmatpush1.msra.mxu0 0.0
  %5013 = vmatprep.subr.mxu0 0.0
  %5014 = vmatpush1.msra.mxu0 0.0
  %5015 = vmatprep.subr.mxu0 0.0
  %5016 = vmatpush1.msra.mxu0 0.0
  %5017 = vmatprep.subr.mxu0 0.0
  %5018 = vmatpush1.msra.mxu0 0.0
  %5019 = vmatprep.subr.mxu0 0.0
  %5020 = vmatpush1.msra.mxu0 0.0
  %5021 = vmatprep.subr.mxu0 0.0
  %5022 = vmatpush1.msra.mxu0 0.0
  %5023 = vmatprep.subr.mxu0 0.0
  %5024 = vmatpush1.msra.mxu0 0.0
  %5025 = vmatprep.subr.mxu0 0.0
  %5026 = vmatpush1.msra.mxu0 0.0
  %5027 = vmatprep.subr.mxu0 0.0
  %5028 = vmatpush1.msra.mxu0 0.0
  %5029 = vmatprep.subr.mxu0 0.0
  %5030 = vmatpush1.msra.mxu0 0.0
  %5031 = vmatprep.subr.mxu0 0.0
  %5032 = vmatpush1.msra.mxu0 0.0
  %5033 = vmatprep.subr.mxu0 0.0
  %5034 = vmatpush1.msra.mxu0 0.0
  %5035 = vmatprep.subr.mxu0 0.0
  %5036 = vmatpush1.msra.mxu0 0.0
  %5037 = vmatprep.mubr.f32.mxu0 0.0
  %5038 = vmatmul.mubr.f32.gmra.mrb[0].mxu0 %v4971
  %v5039 = vpop.f32.mrb[0].mxu0
  %v5040 = vadd.f32 0.0, %v5039
  %v5041 = vpop.f32.mrb[0].mxu0
  %v5042 = vadd.f32 0.0, %v5041
  %5043 = vdwg.mxu0
  %5044 = vmatprep.subr.mxu0 %v3275
  %5045 = vmatpush1.msra.mxu0 %v3274
  %5046 = vmatprep.subr.mxu0 %v3284
  %5047 = vmatpush1.msra.mxu0 %v3283
  %5048 = vmatprep.subr.mxu0 %v3293
  %5049 = vmatpush1.msra.mxu0 %v3292
  %5050 = vmatprep.subr.mxu0 %v3302
  %5051 = vmatpush1.msra.mxu0 %v3301
  %5052 = vmatprep.subr.mxu0 0.0
  %5053 = vmatpush1.msra.mxu0 0.0
  %5054 = vmatprep.subr.mxu0 0.0
  %5055 = vmatpush1.msra.mxu0 0.0
  %5056 = vmatprep.subr.mxu0 0.0
  %5057 = vmatpush1.msra.mxu0 0.0
  %5058 = vmatprep.subr.mxu0 0.0
  %5059 = vmatpush1.msra.mxu0 0.0
  %5060 = vmatprep.subr.mxu0 0.0
  %5061 = vmatpush1.msra.mxu0 0.0
  %5062 = vmatprep.subr.mxu0 0.0
  %5063 = vmatpush1.msra.mxu0 0.0
  %5064 = vmatprep.subr.mxu0 0.0
  %5065 = vmatpush1.msra.mxu0 0.0
  %5066 = vmatprep.subr.mxu0 0.0
  %5067 = vmatpush1.msra.mxu0 0.0
  %5068 = vmatprep.subr.mxu0 0.0
  %5069 = vmatpush1.msra.mxu0 0.0
  %5070 = vmatprep.subr.mxu0 0.0
  %5071 = vmatpush1.msra.mxu0 0.0
  %5072 = vmatprep.subr.mxu0 0.0
  %5073 = vmatpush1.msra.mxu0 0.0
  %5074 = vmatprep.subr.mxu0 0.0
  %5075 = vmatpush1.msra.mxu0 0.0
  %5076 = vmatprep.subr.mxu0 0.0
  %5077 = vmatpush1.msra.mxu0 0.0
  %5078 = vmatprep.subr.mxu0 0.0
  %5079 = vmatpush1.msra.mxu0 0.0
  %5080 = vmatprep.subr.mxu0 0.0
  %5081 = vmatpush1.msra.mxu0 0.0
  %5082 = vmatprep.subr.mxu0 0.0
  %5083 = vmatpush1.msra.mxu0 0.0
  %5084 = vmatprep.subr.mxu0 0.0
  %5085 = vmatpush1.msra.mxu0 0.0
  %5086 = vmatprep.subr.mxu0 0.0
  %5087 = vmatpush1.msra.mxu0 0.0
  %5088 = vmatprep.subr.mxu0 0.0
  %5089 = vmatpush1.msra.mxu0 0.0
  %5090 = vmatprep.subr.mxu0 0.0
  %5091 = vmatpush1.msra.mxu0 0.0
  %5092 = vmatprep.subr.mxu0 0.0
  %5093 = vmatpush1.msra.mxu0 0.0
  %5094 = vmatprep.subr.mxu0 0.0
  %5095 = vmatpush1.msra.mxu0 0.0
  %5096 = vmatprep.subr.mxu0 0.0
  %5097 = vmatpush1.msra.mxu0 0.0
  %5098 = vmatprep.subr.mxu0 0.0
  %5099 = vmatpush1.msra.mxu0 0.0
  %5100 = vmatprep.subr.mxu0 0.0
  %5101 = vmatpush1.msra.mxu0 0.0
  %5102 = vmatprep.subr.mxu0 0.0
  %5103 = vmatpush1.msra.mxu0 0.0
  %5104 = vmatprep.subr.mxu0 0.0
  %5105 = vmatpush1.msra.mxu0 0.0
  %5106 = vmatprep.subr.mxu0 0.0
  %5107 = vmatpush1.msra.mxu0 0.0
  %5108 = vmatprep.mubr.f32.mxu0 0.0
  %5109 = vmatmul.mubr.f32.gmra.mrb[0].mxu0 %v4971
  %v5110 = vpop.f32.mrb[0].mxu0
  %v5111 = vadd.f32 0.0, %v5110
  %v5112 = vpop.f32.mrb[0].mxu0
  %v5113 = vadd.f32 0.0, %v5112
  %5114 = vdwg.mxu0
  %5115 = vmatprep.subr.mxu0 %v3277
  %5116 = vmatpush1.msra.mxu0 %v3276
  %5117 = vmatprep.subr.mxu0 %v3286
  %5118 = vmatpush1.msra.mxu0 %v3285
  %5119 = vmatprep.subr.mxu0 %v3295
  %5120 = vmatpush1.msra.mxu0 %v3294
  %5121 = vmatprep.subr.mxu0 %v3304
  %5122 = vmatpush1.msra.mxu0 %v3303
  %5123 = vmatprep.subr.mxu0 0.0
  %5124 = vmatpush1.msra.mxu0 0.0
  %5125 = vmatprep.subr.mxu0 0.0
  %5126 = vmatpush1.msra.mxu0 0.0
  %5127 = vmatprep.subr.mxu0 0.0
  %5128 = vmatpush1.msra.mxu0 0.0
  %5129 = vmatprep.subr.mxu0 0.0
  %5130 = vmatpush1.msra.mxu0 0.0
  %5131 = vmatprep.subr.mxu0 0.0
  %5132 = vmatpush1.msra.mxu0 0.0
  %5133 = vmatprep.subr.mxu0 0.0
  %5134 = vmatpush1.msra.mxu0 0.0
  %5135 = vmatprep.subr.mxu0 0.0
  %5136 = vmatpush1.msra.mxu0 0.0
  %5137 = vmatprep.subr.mxu0 0.0
  %5138 = vmatpush1.msra.mxu0 0.0
  %5139 = vmatprep.subr.mxu0 0.0
  %5140 = vmatpush1.msra.mxu0 0.0
  %5141 = vmatprep.subr.mxu0 0.0
  %5142 = vmatpush1.msra.mxu0 0.0
  %5143 = vmatprep.subr.mxu0 0.0
  %5144 = vmatpush1.msra.mxu0 0.0
  %5145 = vmatprep.subr.mxu0 0.0
  %5146 = vmatpush1.msra.mxu0 0.0
  %5147 = vmatprep.subr.mxu0 0.0
  %5148 = vmatpush1.msra.mxu0 0.0
  %5149 = vmatprep.subr.mxu0 0.0
  %5150 = vmatpush1.msra.mxu0 0.0
  %5151 = vmatprep.subr.mxu0 0.0
  %5152 = vmatpush1.msra.mxu0 0.0
  %5153 = vmatprep.subr.mxu0 0.0
  %5154 = vmatpush1.msra.mxu0 0.0
  %5155 = vmatprep.subr.mxu0 0.0
  %5156 = vmatpush1.msra.mxu0 0.0
  %5157 = vmatprep.subr.mxu0 0.0
  %5158 = vmatpush1.msra.mxu0 0.0
  %5159 = vmatprep.subr.mxu0 0.0
  %5160 = vmatpush1.msra.mxu0 0.0
  %5161 = vmatprep.subr.mxu0 0.0
  %5162 = vmatpush1.msra.mxu0 0.0
  %5163 = vmatprep.subr.mxu0 0.0
  %5164 = vmatpush1.msra.mxu0 0.0
  %5165 = vmatprep.subr.mxu0 0.0
  %5166 = vmatpush1.msra.mxu0 0.0
  %5167 = vmatprep.subr.mxu0 0.0
  %5168 = vmatpush1.msra.mxu0 0.0
  %5169 = vmatprep.subr.mxu0 0.0
  %5170 = vmatpush1.msra.mxu0 0.0
  %5171 = vmatprep.subr.mxu0 0.0
  %5172 = vmatpush1.msra.mxu0 0.0
  %5173 = vmatprep.subr.mxu0 0.0
  %5174 = vmatpush1.msra.mxu0 0.0
  %5175 = vmatprep.subr.mxu0 0.0
  %5176 = vmatpush1.msra.mxu0 0.0
  %5177 = vmatprep.subr.mxu0 0.0
  %5178 = vmatpush1.msra.mxu0 0.0
  %5179 = vmatprep.mubr.f32.mxu0 0.0
  %5180 = vmatmul.mubr.f32.gmra.mrb[0].mxu0 %v4971
  %v5181 = vpop.f32.mrb[0].mxu0
  %v5182 = vadd.f32 0.0, %v5181
  %v5183 = vpop.f32.mrb[0].mxu0
  %v5184 = vadd.f32 0.0, %v5183
  %5185 = vdwg.mxu0
  %5186 = vmatprep.subr.mxu0 %v3279
  %5187 = vmatpush1.msra.mxu0 %v3278
  %5188 = vmatprep.subr.mxu0 %v3288
  %5189 = vmatpush1.msra.mxu0 %v3287
  %5190 = vmatprep.subr.mxu0 %v3297
  %5191 = vmatpush1.msra.mxu0 %v3296
  %5192 = vmatprep.subr.mxu0 %v3306
  %5193 = vmatpush1.msra.mxu0 %v3305
  %5194 = vmatprep.subr.mxu0 0.0
  %5195 = vmatpush1.msra.mxu0 0.0
  %5196 = vmatprep.subr.mxu0 0.0
  %5197 = vmatpush1.msra.mxu0 0.0
  %5198 = vmatprep.subr.mxu0 0.0
  %5199 = vmatpush1.msra.mxu0 0.0
  %5200 = vmatprep.subr.mxu0 0.0
  %5201 = vmatpush1.msra.mxu0 0.0
  %5202 = vmatprep.subr.mxu0 0.0
  %5203 = vmatpush1.msra.mxu0 0.0
  %5204 = vmatprep.subr.mxu0 0.0
  %5205 = vmatpush1.msra.mxu0 0.0
  %5206 = vmatprep.subr.mxu0 0.0
  %5207 = vmatpush1.msra.mxu0 0.0
  %5208 = vmatprep.subr.mxu0 0.0
  %5209 = vmatpush1.msra.mxu0 0.0
  %5210 = vmatprep.subr.mxu0 0.0
  %5211 = vmatpush1.msra.mxu0 0.0
  %5212 = vmatprep.subr.mxu0 0.0
  %5213 = vmatpush1.msra.mxu0 0.0
  %5214 = vmatprep.subr.mxu0 0.0
  %5215 = vmatpush1.msra.mxu0 0.0
  %5216 = vmatprep.subr.mxu0 0.0
  %5217 = vmatpush1.msra.mxu0 0.0
  %5218 = vmatprep.subr.mxu0 0.0
  %5219 = vmatpush1.msra.mxu0 0.0
  %5220 = vmatprep.subr.mxu0 0.0
  %5221 = vmatpush1.msra.mxu0 0.0
  %5222 = vmatprep.subr.mxu0 0.0
  %5223 = vmatpush1.msra.mxu0 0.0
  %5224 = vmatprep.subr.mxu0 0.0
  %5225 = vmatpush1.msra.mxu0 0.0
  %5226 = vmatprep.subr.mxu0 0.0
  %5227 = vmatpush1.msra.mxu0 0.0
  %5228 = vmatprep.subr.mxu0 0.0
  %5229 = vmatpush1.msra.mxu0 0.0
  %5230 = vmatprep.subr.mxu0 0.0
  %5231 = vmatpush1.msra.mxu0 0.0
  %5232 = vmatprep.subr.mxu0 0.0
  %5233 = vmatpush1.msra.mxu0 0.0
  %5234 = vmatprep.subr.mxu0 0.0
  %5235 = vmatpush1.msra.mxu0 0.0
  %5236 = vmatprep.subr.mxu0 0.0
  %5237 = vmatpush1.msra.mxu0 0.0
  %5238 = vmatprep.subr.mxu0 0.0
  %5239 = vmatpush1.msra.mxu0 0.0
  %5240 = vmatprep.subr.mxu0 0.0
  %5241 = vmatpush1.msra.mxu0 0.0
  %5242 = vmatprep.subr.mxu0 0.0
  %5243 = vmatpush1.msra.mxu0 0.0
  %5244 = vmatprep.subr.mxu0 0.0
  %5245 = vmatpush1.msra.mxu0 0.0
  %5246 = vmatprep.subr.mxu0 0.0
  %5247 = vmatpush1.msra.mxu0 0.0
  %5248 = vmatprep.subr.mxu0 0.0
  %5249 = vmatpush1.msra.mxu0 0.0
  %5250 = vmatprep.mubr.f32.mxu0 0.0
  %5251 = vmatmul.mubr.f32.gmra.mrb[0].mxu0 %v4971
  %v5252 = vpop.f32.mrb[0].mxu0
  %v5253 = vadd.f32 0.0, %v5252
  %v5254 = vpop.f32.mrb[0].mxu0
  %v5255 = vadd.f32 0.0, %v5254
  %5256 = vdwg.mxu0
  %5257 = vmatprep.subr.mxu0 0.0
  %5258 = vmatpush1.msra.mxu0 %v3280
  %5259 = vmatprep.subr.mxu0 0.0
  %5260 = vmatpush1.msra.mxu0 %v3289
  %5261 = vmatprep.subr.mxu0 0.0
  %5262 = vmatpush1.msra.mxu0 %v3298
  %5263 = vmatprep.subr.mxu0 0.0
  %5264 = vmatpush1.msra.mxu0 %v3307
  %5265 = vmatprep.subr.mxu0 0.0
  %5266 = vmatpush1.msra.mxu0 0.0
  %5267 = vmatprep.subr.mxu0 0.0
  %5268 = vmatpush1.msra.mxu0 0.0
  %5269 = vmatprep.subr.mxu0 0.0
  %5270 = vmatpush1.msra.mxu0 0.0
  %5271 = vmatprep.subr.mxu0 0.0
  %5272 = vmatpush1.msra.mxu0 0.0
  %5273 = vmatprep.subr.mxu0 0.0
  %5274 = vmatpush1.msra.mxu0 0.0
  %5275 = vmatprep.subr.mxu0 0.0
  %5276 = vmatpush1.msra.mxu0 0.0
  %5277 = vmatprep.subr.mxu0 0.0
  %5278 = vmatpush1.msra.mxu0 0.0
  %5279 = vmatprep.subr.mxu0 0.0
  %5280 = vmatpush1.msra.mxu0 0.0
  %5281 = vmatprep.subr.mxu0 0.0
  %5282 = vmatpush1.msra.mxu0 0.0
  %5283 = vmatprep.subr.mxu0 0.0
  %5284 = vmatpush1.msra.mxu0 0.0
  %5285 = vmatprep.subr.mxu0 0.0
  %5286 = vmatpush1.msra.mxu0 0.0
  %5287 = vmatprep.subr.mxu0 0.0
  %5288 = vmatpush1.msra.mxu0 0.0
  %5289 = vmatprep.subr.mxu0 0.0
  %5290 = vmatpush1.msra.mxu0 0.0
  %5291 = vmatprep.subr.mxu0 0.0
  %5292 = vmatpush1.msra.mxu0 0.0
  %5293 = vmatprep.subr.mxu0 0.0
  %5294 = vmatpush1.msra.mxu0 0.0
  %5295 = vmatprep.subr.mxu0 0.0
  %5296 = vmatpush1.msra.mxu0 0.0
  %5297 = vmatprep.subr.mxu0 0.0
  %5298 = vmatpush1.msra.mxu0 0.0
  %5299 = vmatprep.subr.mxu0 0.0
  %5300 = vmatpush1.msra.mxu0 0.0
  %5301 = vmatprep.subr.mxu0 0.0
  %5302 = vmatpush1.msra.mxu0 0.0
  %5303 = vmatprep.subr.mxu0 0.0
  %5304 = vmatpush1.msra.mxu0 0.0
  %5305 = vmatprep.subr.mxu0 0.0
  %5306 = vmatpush1.msra.mxu0 0.0
  %5307 = vmatprep.subr.mxu0 0.0
  %5308 = vmatpush1.msra.mxu0 0.0
  %5309 = vmatprep.subr.mxu0 0.0
  %5310 = vmatpush1.msra.mxu0 0.0
  %5311 = vmatprep.subr.mxu0 0.0
  %5312 = vmatpush1.msra.mxu0 0.0
  %5313 = vmatprep.subr.mxu0 0.0
  %5314 = vmatpush1.msra.mxu0 0.0
  %5315 = vmatprep.subr.mxu0 0.0
  %5316 = vmatpush1.msra.mxu0 0.0
  %5317 = vmatprep.subr.mxu0 0.0
  %5318 = vmatpush1.msra.mxu0 0.0
  %5319 = vmatprep.subr.mxu0 0.0
  %5320 = vmatpush1.msra.mxu0 0.0
  %5321 = vmatprep.mubr.f32.mxu0 0.0
  %5322 = vmatmul.mubr.f32.gmra.mrb[0].mxu0 %v4971
  %v5323 = vpop.f32.mrb[0].mxu0
  %v5324 = vadd.f32 0.0, %v5323
  %v5325 = vpop.f32.mrb[0].mxu0
  %5326 = vdwg.mxu0
  %v5327 = vlaneseq
  %v5328 = vshrl.u32 %v5327, 7
  %v5329 = vsub.s32 0, %v5328
  %v5330 = vrot.slane %v5040, %v5329
  %v5331 = vlaneseq
  %v5332 = vshrl.u32 %v5331, 7
  %v5333 = vsub.s32 0, %v5332
  %v5334 = vrot.slane %v5042, %v5333
  %v5335 = vlaneseq
  %v5336 = vshrl.u32 %v5335, 7
  %v5337 = vsub.s32 0, %v5336
  %v5338 = vrot.slane %v5111, %v5337
  %v5339 = vlaneseq
  %v5340 = vshrl.u32 %v5339, 7
  %v5341 = vsub.s32 0, %v5340
  %v5342 = vrot.slane %v5113, %v5341
  %v5343 = vlaneseq
  %v5344 = vshrl.u32 %v5343, 7
  %v5345 = vsub.s32 0, %v5344
  %v5346 = vrot.slane %v5182, %v5345
  %v5347 = vlaneseq
  %v5348 = vshrl.u32 %v5347, 7
  %v5349 = vsub.s32 0, %v5348
  %v5350 = vrot.slane %v5184, %v5349
  %v5351 = vlaneseq
  %v5352 = vshrl.u32 %v5351, 7
  %v5353 = vsub.s32 0, %v5352
  %v5354 = vrot.slane %v5253, %v5353
  %v5355 = vlaneseq
  %v5356 = vshrl.u32 %v5355, 7
  %v5357 = vsub.s32 0, %v5356
  %v5358 = vrot.slane %v5255, %v5357
  %v5359 = vlaneseq
  %v5360 = vshrl.u32 %v5359, 7
  %v5361 = vsub.s32 0, %v5360
  %v5362 = vrot.slane %v5324, %v5361
  %v5363 = vadd.f32 %v4961, %v5330
  %v5364 = vadd.f32 %v4962, %v5334
  %v5365 = vadd.f32 %v4963, %v5338
  %v5366 = vadd.f32 %v4964, %v5342
  %v5367 = vadd.f32 %v4965, %v5346
  %v5368 = vadd.f32 %v4966, %v5350
  %v5369 = vadd.f32 %v4967, %v5354
  %v5370 = vadd.f32 %v4968, %v5358
  %v5371 = vadd.f32 %v4969, %v5362
  %vm5372 = vcmp.gt.f32.partialorder %v5363, 0.0
  %vm5373 = vcmp.gt.f32.partialorder %v5364, 0.0
  %vm5374 = vcmp.gt.f32.partialorder %v5365, 0.0
  %vm5375 = vcmp.gt.f32.partialorder %v5366, 0.0
  %vm5376 = vcmp.gt.f32.partialorder %v5367, 0.0
  %vm5377 = vcmp.gt.f32.partialorder %v5368, 0.0
  %vm5378 = vcmp.gt.f32.partialorder %v5369, 0.0
  %vm5379 = vcmp.gt.f32.partialorder %v5370, 0.0
  %vm5380 = vcmp.gt.f32.partialorder %v5371, 0.0
  %v5381 = vmul.f32 %v5363, 0.01
  %v5382 = vmul.f32 %v5364, 0.01
  %v5383 = vmul.f32 %v5365, 0.01
  %v5384 = vmul.f32 %v5366, 0.01
  %v5385 = vmul.f32 %v5367, 0.01
  %v5386 = vmul.f32 %v5368, 0.01
  %v5387 = vmul.f32 %v5369, 0.01
  %v5388 = vmul.f32 %v5370, 0.01
  %v5389 = vmul.f32 %v5371, 0.01
  %v5390 = vsel %vm5372, %v5363, %v5381
  %v5391 = vsel %vm5373, %v5364, %v5382
  %v5392 = vsel %vm5374, %v5365, %v5383
  %v5393 = vsel %vm5375, %v5366, %v5384
  %v5394 = vsel %vm5376, %v5367, %v5385
  %v5395 = vsel %vm5377, %v5368, %v5386
  %v5396 = vsel %vm5378, %v5369, %v5387
  %v5397 = vsel %vm5379, %v5370, %v5388
  %v5398 = vsel %vm5380, %v5371, %v5389
  %v5399 = vpack.c.bf16 %v5390, %v5390
  %v5400 = vpack.c.bf16 %v5391, %v5391
  %v5401 = vpack.c.bf16 %v5392, %v5392
  %v5402 = vpack.c.bf16 %v5393, %v5393
  %v5403 = vpack.c.bf16 %v5394, %v5394
  %v5404 = vpack.c.bf16 %v5395, %v5395
  %v5405 = vpack.c.bf16 %v5396, %v5396
  %v5406 = vpack.c.bf16 %v5397, %v5397
  %v5407 = vpack.c.bf16 %v5398, %v5398
  %v5408 = vld [vmem:[%s14] sm:$0xff]
  %v5409 = vld [vmem:[%s14 + $0x8] sm:$0xff]
  %v5410 = vld [vmem:[%s14 + $0x10] sm:$0xff]
  %v5411 = vld [vmem:[%s14 + $0x18] sm:$0xff]
  %v5412 = vld [vmem:[%s14 + $0x20] sm:$0xff]
  %v5413 = vld [vmem:[%s14 + $0x28] sm:$0xff]
  %v5414 = vld [vmem:[%s14 + $0x30] sm:$0xff]
  %v5415 = vld [vmem:[%s14 + $0x38] sm:$0xff]
  %v5416 = vld [vmem:[%s14 + $0x40] sm:$0xff]
  %v5417 = vld [vmem:[%s14 + $0x48] sm:$0xff]
  %v5418 = vld [vmem:[%s14 + $0x50] sm:$0xff]
  %v5419 = vld [vmem:[%s14 + $0x58] sm:$0xff]
  %v5420 = vld [vmem:[%s14 + $0x60] sm:$0xff]
  %v5421 = vld [vmem:[%s14 + $0x68] sm:$0xff]
  %v5422 = vld [vmem:[%s14 + $0x70] sm:$0xff]
  %v5423 = vld [vmem:[%s14 + $0x78] sm:$0xff]
  %v5424 = vld [vmem:[%s14 + $0x80] sm:$0xff]
  %v5425 = vld [vmem:[%s14 + $0x88] sm:$0xff]
  %v5426 = vld [vmem:[%s14 + $0x90] sm:$0xff]
  %v5427 = vld [vmem:[%s14 + $0x98] sm:$0xff]
  %v5428 = vld [vmem:[%s14 + $0xa0] sm:$0xff]
  %v5429 = vld [vmem:[%s14 + $0xa8] sm:$0xff]
  %v5430 = vld [vmem:[%s14 + $0xb0] sm:$0xff]
  %v5431 = vld [vmem:[%s14 + $0xb8] sm:$0xff]
  %v5432 = vld [vmem:[%s14 + $0xc0] sm:$0xff]
  %v5433 = vld [vmem:[%s14 + $0xc8] sm:$0xff]
  %v5434 = vld [vmem:[%s14 + $0xd0] sm:$0xff]
  %v5435 = vld [vmem:[%s14 + $0xd8] sm:$0xff]
  %v5436 = vld [vmem:[%s14 + $0xe0] sm:$0xff]
  %v5437 = vld [vmem:[%s14 + $0xe8] sm:$0xff]
  %v5438 = vld [vmem:[%s14 + $0xf0] sm:$0xff]
  %v5439 = vld [vmem:[%s14 + $0xf8] sm:$0xff]
  %v5440 = vld [vmem:[%s14 + $0x100] sm:$0xff]
  %v5441 = vld [vmem:[%s14 + $0x108] sm:$0xff]
  %v5442 = vld [vmem:[%s14 + $0x110] sm:$0xff]
  %v5443 = vld [vmem:[%s14 + $0x118] sm:$0xff]
  %v5444 = vld [vmem:[%s14 + $0x120] sm:$0xff]
  %v5445 = vld [vmem:[%s14 + $0x128] sm:$0xff]
  %v5446 = vld [vmem:[%s14 + $0x130] sm:$0xff]
  %v5447 = vld [vmem:[%s14 + $0x138] sm:$0xff]
  %v5448 = vld [vmem:[%s14 + $0x140] sm:$0xff]
  %v5449 = vld [vmem:[%s14 + $0x148] sm:$0xff]
  %v5450 = vld [vmem:[%s14 + $0x150] sm:$0xff]
  %v5451 = vld [vmem:[%s14 + $0x158] sm:$0xff]
  %v5452 = vld [vmem:[%s14 + $0x160] sm:$0xff]
  %v5453 = vld [vmem:[%s14 + $0x168] sm:$0xff]
  %v5454 = vld [vmem:[%s14 + $0x170] sm:$0xff]
  %v5455 = vld [vmem:[%s14 + $0x178] sm:$0xff]
  %v5456 = vld [vmem:[%s14 + $0x180] sm:$0xff]
  %v5457 = vld [vmem:[%s14 + $0x188] sm:$0xff]
  %v5458 = vld [vmem:[%s14 + $0x190] sm:$0xff]
  %v5459 = vld [vmem:[%s14 + $0x198] sm:$0xff]
  %v5460 = vld [vmem:[%s14 + $0x1a0] sm:$0xff]
  %v5461 = vld [vmem:[%s14 + $0x1a8] sm:$0xff]
  %v5462 = vld [vmem:[%s14 + $0x1b0] sm:$0xff]
  %v5463 = vld [vmem:[%s14 + $0x1b8] sm:$0xff]
  %v5464 = vld [vmem:[%s14 + $0x1c0] sm:$0xff]
  %v5465 = vld [vmem:[%s14 + $0x1c8] sm:$0xff]
  %v5466 = vld [vmem:[%s14 + $0x1d0] sm:$0xff]
  %v5467 = vld [vmem:[%s14 + $0x1d8] sm:$0xff]
  %v5468 = vld [vmem:[%s14 + $0x1e0] sm:$0xff]
  %v5469 = vld [vmem:[%s14 + $0x1e8] sm:$0xff]
  %v5470 = vld [vmem:[%s14 + $0x1f0] sm:$0xff]
  %v5471 = vld [vmem:[%s14 + $0x1f8] sm:$0xff]
  %v5472 = vld [vmem:[%s14 + $0x200] sm:$0xff]
  %v5473 = vld [vmem:[%s14 + $0x208] sm:$0xff]
  %v5474 = vld [vmem:[%s14 + $0x210] sm:$0xff]
  %v5475 = vld [vmem:[%s14 + $0x218] sm:$0xff]
  %v5476 = vld [vmem:[%s14 + $0x220] sm:$0xff]
  %v5477 = vld [vmem:[%s14 + $0x228] sm:$0xff]
  %v5478 = vld [vmem:[%s14 + $0x230] sm:$0xff]
  %v5479 = vld [vmem:[%s14 + $0x238] sm:$0xff]
  %v5480 = vld [vmem:[%s14 + $0x240] sm:$0xff]
  %v5481 = vld [vmem:[%s14 + $0x248] sm:$0xff]
  %v5482 = vld [vmem:[%s14 + $0x250] sm:$0xff]
  %v5483 = vld [vmem:[%s14 + $0x258] sm:$0xff]
  %v5484 = vld [vmem:[%s14 + $0x260] sm:$0xff]
  %v5485 = vld [vmem:[%s14 + $0x268] sm:$0xff]
  %v5486 = vld [vmem:[%s14 + $0x270] sm:$0xff]
  %v5487 = vld [vmem:[%s14 + $0x278] sm:$0xff]
  %v5488 = vld [vmem:[%s14 + $0x280] sm:$0xff]
  %v5489 = vld [vmem:[%s14 + $0x288] sm:$0xff]
  %v5490 = vld [vmem:[%s14 + $0x290] sm:$0xff]
  %v5491 = vld [vmem:[%s14 + $0x298] sm:$0xff]
  %v5492 = vld [vmem:[%s14 + $0x2a0] sm:$0xff]
  %v5493 = vld [vmem:[%s14 + $0x2a8] sm:$0xff]
  %v5494 = vld [vmem:[%s14 + $0x2b0] sm:$0xff]
  %v5495 = vld [vmem:[%s14 + $0x2b8] sm:$0xff]
  %v5496 = vld [vmem:[%s14 + $0x2c0] sm:$0xff]
  %v5497 = vld [vmem:[%s14 + $0x2c8] sm:$0xff]
  %v5498 = vld [vmem:[%s14 + $0x2d0] sm:$0xff]
  %v5499 = vld [vmem:[%s14 + $0x2d8] sm:$0xff]
  %v5500 = vld [vmem:[%s14 + $0x2e0] sm:$0xff]
  %v5501 = vld [vmem:[%s14 + $0x2e8] sm:$0xff]
  %v5502 = vld [vmem:[%s14 + $0x2f0] sm:$0xff]
  %v5503 = vld [vmem:[%s14 + $0x2f8] sm:$0xff]
  %v5504 = vld [vmem:[%s14 + $0x300] sm:$0xff]
  %v5505 = vld [vmem:[%s14 + $0x308] sm:$0xff]
  %v5506 = vld [vmem:[%s14 + $0x310] sm:$0xff]
  %v5507 = vld [vmem:[%s14 + $0x318] sm:$0xff]
  %v5508 = vld [vmem:[%s14 + $0x320] sm:$0xff]
  %v5509 = vld [vmem:[%s14 + $0x328] sm:$0xff]
  %v5510 = vld [vmem:[%s14 + $0x330] sm:$0xff]
  %v5511 = vld [vmem:[%s14 + $0x338] sm:$0xff]
  %v5512 = vld [vmem:[%s14 + $0x340] sm:$0xff]
  %v5513 = vld [vmem:[%s14 + $0x348] sm:$0xff]
  %v5514 = vld [vmem:[%s14 + $0x350] sm:$0xff]
  %v5515 = vld [vmem:[%s14 + $0x358] sm:$0xff]
  %v5516 = vld [vmem:[%s14 + $0x360] sm:$0xff]
  %v5517 = vld [vmem:[%s14 + $0x368] sm:$0xff]
  %v5518 = vld [vmem:[%s14 + $0x370] sm:$0xff]
  %v5519 = vld [vmem:[%s14 + $0x378] sm:$0xff]
  %v5520 = vld [vmem:[%s14 + $0x380] sm:$0xff]
  %v5521 = vld [vmem:[%s14 + $0x388] sm:$0xff]
  %v5522 = vld [vmem:[%s14 + $0x390] sm:$0xff]
  %v5523 = vld [vmem:[%s14 + $0x398] sm:$0xff]
  %v5524 = vld [vmem:[%s14 + $0x3a0] sm:$0xff]
  %v5525 = vld [vmem:[%s14 + $0x3a8] sm:$0xff]
  %v5526 = vld [vmem:[%s14 + $0x3b0] sm:$0xff]
  %v5527 = vld [vmem:[%s14 + $0x3b8] sm:$0xff]
  %v5528 = vld [vmem:[%s14 + $0x3c0] sm:$0xff]
  %v5529 = vld [vmem:[%s14 + $0x3c8] sm:$0xff]
  %v5530 = vld [vmem:[%s14 + $0x3d0] sm:$0xff]
  %v5531 = vld [vmem:[%s14 + $0x3d8] sm:$0xff]
  %v5532 = vld [vmem:[%s14 + $0x3e0] sm:$0xff]
  %v5533 = vld [vmem:[%s14 + $0x3e8] sm:$0xff]
  %v5534 = vld [vmem:[%s14 + $0x3f0] sm:$0xff]
  %v5535 = vld [vmem:[%s14 + $0x3f8] sm:$0xff]
  %v5536 = vld [vmem:[%s14 + $0x400] sm:$0xff]
  %v5537 = vld [vmem:[%s14 + $0x408] sm:$0xff]
  %v5538 = vld [vmem:[%s14 + $0x410] sm:$0xff]
  %v5539 = vld [vmem:[%s14 + $0x418] sm:$0xff]
  %v5540 = vld [vmem:[%s15] sm:$0x3]
  %v5542 = vlaneseq
  %v5543 = vshrl.u32 %v5542, 7
  %v5544 = vsub.s32 0, %v5543
  %v5545 = vrot.slane %v5540, %v5544
  %v5546 = vlaneseq
  %v5547 = vshrl.u32 %v5546, 7
  %v5548 = vsub.s32 1, %v5547
  %v5549 = vrot.slane %v5540, %v5548
  %v5684 = vunpack.c.l.b16 %v5408
  %v5685 = vunpack.c.h.b16 %v5408
  %v5686 = vunpack.c.l.b16 %v5409
  %v5687 = vunpack.c.h.b16 %v5409
  %v5688 = vunpack.c.l.b16 %v5410
  %v5689 = vunpack.c.h.b16 %v5410
  %v5690 = vunpack.c.l.b16 %v5411
  %v5691 = vunpack.c.h.b16 %v5411
  %v5692 = vunpack.c.l.b16 %v5412
  %v5693 = vunpack.c.h.b16 %v5412
  %v5694 = vunpack.c.l.b16 %v5413
  %v5695 = vunpack.c.h.b16 %v5413
  %v5696 = vunpack.c.l.b16 %v5414
  %v5697 = vunpack.c.h.b16 %v5414
  %v5698 = vunpack.c.l.b16 %v5415
  %v5699 = vunpack.c.h.b16 %v5415
  %v5700 = vunpack.c.l.b16 %v5416
  %v5701 = vunpack.c.h.b16 %v5416
  %v5702 = vunpack.c.l.b16 %v5417
  %v5703 = vunpack.c.h.b16 %v5417
  %v5704 = vunpack.c.l.b16 %v5418
  %v5705 = vunpack.c.h.b16 %v5418
  %v5706 = vunpack.c.l.b16 %v5419
  %v5707 = vunpack.c.h.b16 %v5419
  %v5708 = vunpack.c.l.b16 %v5420
  %v5709 = vunpack.c.h.b16 %v5420
  %v5710 = vunpack.c.l.b16 %v5421
  %v5711 = vunpack.c.h.b16 %v5421
  %v5712 = vunpack.c.l.b16 %v5422
  %v5713 = vunpack.c.h.b16 %v5422
  %v5714 = vunpack.c.l.b16 %v5423
  %v5715 = vunpack.c.h.b16 %v5423
  %v5716 = vunpack.c.l.b16 %v5424
  %v5717 = vunpack.c.h.b16 %v5424
  %v5718 = vunpack.c.l.b16 %v5425
  %v5719 = vunpack.c.h.b16 %v5425
  %v5720 = vunpack.c.l.b16 %v5426
  %v5721 = vunpack.c.h.b16 %v5426
  %v5722 = vunpack.c.l.b16 %v5427
  %v5723 = vunpack.c.h.b16 %v5427
  %v5724 = vunpack.c.l.b16 %v5428
  %v5725 = vunpack.c.h.b16 %v5428
  %v5726 = vunpack.c.l.b16 %v5429
  %v5727 = vunpack.c.h.b16 %v5429
  %v5728 = vunpack.c.l.b16 %v5430
  %v5729 = vunpack.c.h.b16 %v5430
  %v5730 = vunpack.c.l.b16 %v5431
  %v5731 = vunpack.c.h.b16 %v5431
  %v5732 = vunpack.c.l.b16 %v5432
  %v5733 = vunpack.c.h.b16 %v5432
  %v5734 = vunpack.c.l.b16 %v5433
  %v5735 = vunpack.c.h.b16 %v5433
  %v5736 = vunpack.c.l.b16 %v5434
  %v5737 = vunpack.c.h.b16 %v5434
  %v5738 = vunpack.c.l.b16 %v5435
  %v5739 = vunpack.c.h.b16 %v5435
  %v5740 = vunpack.c.l.b16 %v5436
  %v5741 = vunpack.c.h.b16 %v5436
  %v5742 = vunpack.c.l.b16 %v5437
  %v5743 = vunpack.c.h.b16 %v5437
  %v5744 = vunpack.c.l.b16 %v5438
  %v5745 = vunpack.c.h.b16 %v5438
  %v5746 = vunpack.c.l.b16 %v5439
  %v5747 = vunpack.c.h.b16 %v5439
  %v5748 = vunpack.c.l.b16 %v5440
  %v5749 = vunpack.c.h.b16 %v5440
  %v5750 = vunpack.c.l.b16 %v5441
  %v5751 = vunpack.c.h.b16 %v5441
  %v5752 = vunpack.c.l.b16 %v5442
  %v5753 = vunpack.c.h.b16 %v5442
  %v5754 = vunpack.c.l.b16 %v5443
  %v5755 = vunpack.c.h.b16 %v5443
  %v5756 = vunpack.c.l.b16 %v5444
  %v5757 = vunpack.c.h.b16 %v5444
  %v5758 = vunpack.c.l.b16 %v5445
  %v5759 = vunpack.c.h.b16 %v5445
  %v5760 = vunpack.c.l.b16 %v5446
  %v5761 = vunpack.c.h.b16 %v5446
  %v5762 = vunpack.c.l.b16 %v5447
  %v5763 = vunpack.c.h.b16 %v5447
  %v5764 = vunpack.c.l.b16 %v5448
  %v5765 = vunpack.c.h.b16 %v5448
  %v5766 = vunpack.c.l.b16 %v5449
  %v5767 = vunpack.c.h.b16 %v5449
  %v5768 = vunpack.c.l.b16 %v5450
  %v5769 = vunpack.c.h.b16 %v5450
  %v5770 = vunpack.c.l.b16 %v5451
  %v5771 = vunpack.c.h.b16 %v5451
  %v5772 = vunpack.c.l.b16 %v5452
  %v5773 = vunpack.c.h.b16 %v5452
  %v5774 = vunpack.c.l.b16 %v5453
  %v5775 = vunpack.c.h.b16 %v5453
  %v5776 = vunpack.c.l.b16 %v5454
  %v5777 = vunpack.c.h.b16 %v5454
  %v5778 = vunpack.c.l.b16 %v5455
  %v5779 = vunpack.c.h.b16 %v5455
  %v5780 = vunpack.c.l.b16 %v5456
  %v5781 = vunpack.c.h.b16 %v5456
  %v5782 = vunpack.c.l.b16 %v5457
  %v5783 = vunpack.c.h.b16 %v5457
  %v5784 = vunpack.c.l.b16 %v5458
  %v5785 = vunpack.c.h.b16 %v5458
  %v5786 = vunpack.c.l.b16 %v5459
  %v5787 = vunpack.c.h.b16 %v5459
  %v5788 = vunpack.c.l.b16 %v5460
  %v5789 = vunpack.c.h.b16 %v5460
  %v5790 = vunpack.c.l.b16 %v5461
  %v5791 = vunpack.c.h.b16 %v5461
  %v5792 = vunpack.c.l.b16 %v5462
  %v5793 = vunpack.c.h.b16 %v5462
  %v5794 = vunpack.c.l.b16 %v5463
  %v5795 = vunpack.c.h.b16 %v5463
  %v5796 = vunpack.c.l.b16 %v5464
  %v5797 = vunpack.c.h.b16 %v5464
  %v5798 = vunpack.c.l.b16 %v5465
  %v5799 = vunpack.c.h.b16 %v5465
  %v5800 = vunpack.c.l.b16 %v5466
  %v5801 = vunpack.c.h.b16 %v5466
  %v5802 = vunpack.c.l.b16 %v5467
  %v5803 = vunpack.c.h.b16 %v5467
  %v5804 = vunpack.c.l.b16 %v5468
  %v5805 = vunpack.c.h.b16 %v5468
  %v5806 = vunpack.c.l.b16 %v5469
  %v5807 = vunpack.c.h.b16 %v5469
  %v5808 = vunpack.c.l.b16 %v5470
  %v5809 = vunpack.c.h.b16 %v5470
  %v5810 = vunpack.c.l.b16 %v5471
  %v5811 = vunpack.c.h.b16 %v5471
  %v5812 = vunpack.c.l.b16 %v5472
  %v5813 = vunpack.c.h.b16 %v5472
  %v5814 = vunpack.c.l.b16 %v5473
  %v5815 = vunpack.c.h.b16 %v5473
  %v5816 = vunpack.c.l.b16 %v5474
  %v5817 = vunpack.c.h.b16 %v5474
  %v5818 = vunpack.c.l.b16 %v5475
  %v5819 = vunpack.c.h.b16 %v5475
  %v5820 = vunpack.c.l.b16 %v5476
  %v5821 = vunpack.c.h.b16 %v5476
  %v5822 = vunpack.c.l.b16 %v5477
  %v5823 = vunpack.c.h.b16 %v5477
  %v5824 = vunpack.c.l.b16 %v5478
  %v5825 = vunpack.c.h.b16 %v5478
  %v5826 = vunpack.c.l.b16 %v5479
  %v5827 = vunpack.c.h.b16 %v5479
  %v5828 = vunpack.c.l.b16 %v5480
  %v5829 = vunpack.c.h.b16 %v5480
  %v5830 = vunpack.c.l.b16 %v5481
  %v5831 = vunpack.c.h.b16 %v5481
  %v5832 = vunpack.c.l.b16 %v5482
  %v5833 = vunpack.c.h.b16 %v5482
  %v5834 = vunpack.c.l.b16 %v5483
  %v5835 = vunpack.c.h.b16 %v5483
  %v5836 = vunpack.c.l.b16 %v5484
  %v5837 = vunpack.c.h.b16 %v5484
  %v5838 = vunpack.c.l.b16 %v5485
  %v5839 = vunpack.c.h.b16 %v5485
  %v5840 = vunpack.c.l.b16 %v5486
  %v5841 = vunpack.c.h.b16 %v5486
  %v5842 = vunpack.c.l.b16 %v5487
  %v5843 = vunpack.c.h.b16 %v5487
  %v5844 = vunpack.c.l.b16 %v5488
  %v5845 = vunpack.c.h.b16 %v5488
  %v5846 = vunpack.c.l.b16 %v5489
  %v5847 = vunpack.c.h.b16 %v5489
  %v5848 = vunpack.c.l.b16 %v5490
  %v5849 = vunpack.c.h.b16 %v5490
  %v5850 = vunpack.c.l.b16 %v5491
  %v5851 = vunpack.c.h.b16 %v5491
  %v5852 = vunpack.c.l.b16 %v5492
  %v5853 = vunpack.c.h.b16 %v5492
  %v5854 = vunpack.c.l.b16 %v5493
  %v5855 = vunpack.c.h.b16 %v5493
  %v5856 = vunpack.c.l.b16 %v5494
  %v5857 = vunpack.c.h.b16 %v5494
  %v5858 = vunpack.c.l.b16 %v5495
  %v5859 = vunpack.c.h.b16 %v5495
  %v5860 = vunpack.c.l.b16 %v5496
  %v5861 = vunpack.c.h.b16 %v5496
  %v5862 = vunpack.c.l.b16 %v5497
  %v5863 = vunpack.c.h.b16 %v5497
  %v5864 = vunpack.c.l.b16 %v5498
  %v5865 = vunpack.c.h.b16 %v5498
  %v5866 = vunpack.c.l.b16 %v5499
  %v5867 = vunpack.c.h.b16 %v5499
  %v5868 = vunpack.c.l.b16 %v5500
  %v5869 = vunpack.c.h.b16 %v5500
  %v5870 = vunpack.c.l.b16 %v5501
  %v5871 = vunpack.c.h.b16 %v5501
  %v5872 = vunpack.c.l.b16 %v5502
  %v5873 = vunpack.c.h.b16 %v5502
  %v5874 = vunpack.c.l.b16 %v5503
  %v5875 = vunpack.c.h.b16 %v5503
  %v5876 = vunpack.c.l.b16 %v5504
  %v5877 = vunpack.c.h.b16 %v5504
  %v5878 = vunpack.c.l.b16 %v5505
  %v5879 = vunpack.c.h.b16 %v5505
  %v5880 = vunpack.c.l.b16 %v5506
  %v5881 = vunpack.c.h.b16 %v5506
  %v5882 = vunpack.c.l.b16 %v5507
  %v5883 = vunpack.c.h.b16 %v5507
  %v5884 = vunpack.c.l.b16 %v5508
  %v5885 = vunpack.c.h.b16 %v5508
  %v5886 = vunpack.c.l.b16 %v5509
  %v5887 = vunpack.c.h.b16 %v5509
  %v5888 = vunpack.c.l.b16 %v5510
  %v5889 = vunpack.c.h.b16 %v5510
  %v5890 = vunpack.c.l.b16 %v5511
  %v5891 = vunpack.c.h.b16 %v5511
  %v5892 = vunpack.c.l.b16 %v5512
  %v5893 = vunpack.c.h.b16 %v5512
  %v5894 = vunpack.c.l.b16 %v5513
  %v5895 = vunpack.c.h.b16 %v5513
  %v5896 = vunpack.c.l.b16 %v5514
  %v5897 = vunpack.c.h.b16 %v5514
  %v5898 = vunpack.c.l.b16 %v5515
  %v5899 = vunpack.c.h.b16 %v5515
  %v5900 = vunpack.c.l.b16 %v5516
  %v5901 = vunpack.c.h.b16 %v5516
  %v5902 = vunpack.c.l.b16 %v5517
  %v5903 = vunpack.c.h.b16 %v5517
  %v5904 = vunpack.c.l.b16 %v5518
  %v5905 = vunpack.c.h.b16 %v5518
  %v5906 = vunpack.c.l.b16 %v5519
  %v5907 = vunpack.c.h.b16 %v5519
  %v5908 = vunpack.c.l.b16 %v5520
  %v5909 = vunpack.c.h.b16 %v5520
  %v5910 = vunpack.c.l.b16 %v5521
  %v5911 = vunpack.c.h.b16 %v5521
  %v5912 = vunpack.c.l.b16 %v5522
  %v5913 = vunpack.c.h.b16 %v5522
  %v5914 = vunpack.c.l.b16 %v5523
  %v5915 = vunpack.c.h.b16 %v5523
  %v5916 = vunpack.c.l.b16 %v5524
  %v5917 = vunpack.c.h.b16 %v5524
  %v5918 = vunpack.c.l.b16 %v5525
  %v5919 = vunpack.c.h.b16 %v5525
  %v5920 = vunpack.c.l.b16 %v5526
  %v5921 = vunpack.c.h.b16 %v5526
  %v5922 = vunpack.c.l.b16 %v5527
  %v5923 = vunpack.c.h.b16 %v5527
  %v5924 = vunpack.c.l.b16 %v5528
  %v5925 = vunpack.c.h.b16 %v5528
  %v5926 = vunpack.c.l.b16 %v5529
  %v5927 = vunpack.c.h.b16 %v5529
  %v5928 = vunpack.c.l.b16 %v5530
  %v5929 = vunpack.c.h.b16 %v5530
  %v5930 = vunpack.c.l.b16 %v5531
  %v5931 = vunpack.c.h.b16 %v5531
  %v5932 = vunpack.c.l.b16 %v5532
  %v5933 = vunpack.c.h.b16 %v5532
  %v5934 = vunpack.c.l.b16 %v5533
  %v5935 = vunpack.c.h.b16 %v5533
  %v5936 = vunpack.c.l.b16 %v5534
  %v5937 = vunpack.c.h.b16 %v5534
  %v5938 = vunpack.c.l.b16 %v5535
  %v5939 = vunpack.c.h.b16 %v5535
  %v5940 = vunpack.c.l.b16 %v5536
  %v5941 = vunpack.c.h.b16 %v5536
  %v5942 = vunpack.c.l.b16 %v5537
  %v5943 = vunpack.c.h.b16 %v5537
  %v5944 = vunpack.c.l.b16 %v5538
  %v5945 = vunpack.c.h.b16 %v5538
  %v5946 = vunpack.c.l.b16 %v5539
  %v5947 = vunpack.c.h.b16 %v5539
  %v5948 = vpack.c.b16 %v5686, %v5684
  %v5949 = vpack.c.b16 %v5687, %v5685
  %v5950 = vpack.c.b16 %v5690, %v5688
  %v5951 = vpack.c.b16 %v5691, %v5689
  %v5952 = vpack.c.b16 %v5694, %v5692
  %v5953 = vpack.c.b16 %v5695, %v5693
  %v5954 = vpack.c.b16 %v5698, %v5696
  %v5955 = vpack.c.b16 %v5699, %v5697
  %v5956 = vpack.c.b16 %v5702, %v5700
  %v5957 = vpack.c.b16 %v5703, %v5701
  %v5958 = vpack.c.b16 %v5706, %v5704
  %v5959 = vpack.c.b16 %v5707, %v5705
  %v5960 = vpack.c.b16 %v5710, %v5708
  %v5961 = vpack.c.b16 %v5711, %v5709
  %v5962 = vpack.c.b16 %v5714, %v5712
  %v5963 = vpack.c.b16 %v5715, %v5713
  %v5964 = vpack.c.b16 %v5718, %v5716
  %v5965 = vpack.c.b16 %v5719, %v5717
  %v5966 = vpack.c.b16 %v5722, %v5720
  %v5967 = vpack.c.b16 %v5723, %v5721
  %v5968 = vpack.c.b16 %v5726, %v5724
  %v5969 = vpack.c.b16 %v5727, %v5725
  %v5970 = vpack.c.b16 %v5730, %v5728
  %v5971 = vpack.c.b16 %v5731, %v5729
  %v5972 = vpack.c.b16 %v5734, %v5732
  %v5973 = vpack.c.b16 %v5735, %v5733
  %v5974 = vpack.c.b16 %v5738, %v5736
  %v5975 = vpack.c.b16 %v5739, %v5737
  %v5976 = vpack.c.b16 %v5742, %v5740
  %v5977 = vpack.c.b16 %v5743, %v5741
  %v5978 = vpack.c.b16 %v5746, %v5744
  %v5979 = vpack.c.b16 %v5747, %v5745
  %v5980 = vpack.c.b16 %v5750, %v5748
  %v5981 = vpack.c.b16 %v5751, %v5749
  %v5982 = vpack.c.b16 %v5754, %v5752
  %v5983 = vpack.c.b16 %v5755, %v5753
  %v5984 = vpack.c.b16 %v5758, %v5756
  %v5985 = vpack.c.b16 %v5759, %v5757
  %v5986 = vpack.c.b16 %v5762, %v5760
  %v5987 = vpack.c.b16 %v5763, %v5761
  %v5988 = vpack.c.b16 %v5766, %v5764
  %v5989 = vpack.c.b16 %v5767, %v5765
  %v5990 = vpack.c.b16 %v5770, %v5768
  %v5991 = vpack.c.b16 %v5771, %v5769
  %v5992 = vpack.c.b16 %v5774, %v5772
  %v5993 = vpack.c.b16 %v5775, %v5773
  %v5994 = vpack.c.b16 %v5778, %v5776
  %v5995 = vpack.c.b16 %v5779, %v5777
  %v5996 = vpack.c.b16 %v5782, %v5780
  %v5997 = vpack.c.b16 %v5783, %v5781
  %v5998 = vpack.c.b16 %v5786, %v5784
  %v5999 = vpack.c.b16 %v5787, %v5785
  %v6000 = vpack.c.b16 %v5790, %v5788
  %v6001 = vpack.c.b16 %v5791, %v5789
  %v6002 = vpack.c.b16 %v5794, %v5792
  %v6003 = vpack.c.b16 %v5795, %v5793
  %v6004 = vpack.c.b16 %v5798, %v5796
  %v6005 = vpack.c.b16 %v5799, %v5797
  %v6006 = vpack.c.b16 %v5802, %v5800
  %v6007 = vpack.c.b16 %v5803, %v5801
  %v6008 = vpack.c.b16 %v5806, %v5804
  %v6009 = vpack.c.b16 %v5807, %v5805
  %v6010 = vpack.c.b16 %v5810, %v5808
  %v6011 = vpack.c.b16 %v5811, %v5809
  %v6012 = vpack.c.b16 %v5814, %v5812
  %v6013 = vpack.c.b16 %v5815, %v5813
  %v6014 = vpack.c.b16 %v5818, %v5816
  %v6015 = vpack.c.b16 %v5819, %v5817
  %v6016 = vpack.c.b16 %v5822, %v5820
  %v6017 = vpack.c.b16 %v5823, %v5821
  %v6018 = vpack.c.b16 %v5826, %v5824
  %v6019 = vpack.c.b16 %v5827, %v5825
  %v6020 = vpack.c.b16 %v5830, %v5828
  %v6021 = vpack.c.b16 %v5831, %v5829
  %v6022 = vpack.c.b16 %v5834, %v5832
  %v6023 = vpack.c.b16 %v5835, %v5833
  %v6024 = vpack.c.b16 %v5838, %v5836
  %v6025 = vpack.c.b16 %v5839, %v5837
  %v6026 = vpack.c.b16 %v5842, %v5840
  %v6027 = vpack.c.b16 %v5843, %v5841
  %v6028 = vpack.c.b16 %v5846, %v5844
  %v6029 = vpack.c.b16 %v5847, %v5845
  %v6030 = vpack.c.b16 %v5850, %v5848
  %v6031 = vpack.c.b16 %v5851, %v5849
  %v6032 = vpack.c.b16 %v5854, %v5852
  %v6033 = vpack.c.b16 %v5855, %v5853
  %v6034 = vpack.c.b16 %v5858, %v5856
  %v6035 = vpack.c.b16 %v5859, %v5857
  %v6036 = vpack.c.b16 %v5862, %v5860
  %v6037 = vpack.c.b16 %v5863, %v5861
  %v6038 = vpack.c.b16 %v5866, %v5864
  %v6039 = vpack.c.b16 %v5867, %v5865
  %v6040 = vpack.c.b16 %v5870, %v5868
  %v6041 = vpack.c.b16 %v5871, %v5869
  %v6042 = vpack.c.b16 %v5874, %v5872
  %v6043 = vpack.c.b16 %v5875, %v5873
  %v6044 = vpack.c.b16 %v5878, %v5876
  %v6045 = vpack.c.b16 %v5879, %v5877
  %v6046 = vpack.c.b16 %v5882, %v5880
  %v6047 = vpack.c.b16 %v5883, %v5881
  %v6048 = vpack.c.b16 %v5886, %v5884
  %v6049 = vpack.c.b16 %v5887, %v5885
  %v6050 = vpack.c.b16 %v5890, %v5888
  %v6051 = vpack.c.b16 %v5891, %v5889
  %v6052 = vpack.c.b16 %v5894, %v5892
  %v6053 = vpack.c.b16 %v5895, %v5893
  %v6054 = vpack.c.b16 %v5898, %v5896
  %v6055 = vpack.c.b16 %v5899, %v5897
  %v6056 = vpack.c.b16 %v5902, %v5900
  %v6057 = vpack.c.b16 %v5903, %v5901
  %v6058 = vpack.c.b16 %v5906, %v5904
  %v6059 = vpack.c.b16 %v5907, %v5905
  %v6060 = vpack.c.b16 %v5910, %v5908
  %v6061 = vpack.c.b16 %v5911, %v5909
  %v6062 = vpack.c.b16 %v5914, %v5912
  %v6063 = vpack.c.b16 %v5915, %v5913
  %v6064 = vpack.c.b16 %v5918, %v5916
  %v6065 = vpack.c.b16 %v5919, %v5917
  %v6066 = vpack.c.b16 %v5922, %v5920
  %v6067 = vpack.c.b16 %v5923, %v5921
  %v6068 = vpack.c.b16 %v5926, %v5924
  %v6069 = vpack.c.b16 %v5927, %v5925
  %v6070 = vpack.c.b16 %v5930, %v5928
  %v6071 = vpack.c.b16 %v5931, %v5929
  %v6072 = vpack.c.b16 %v5934, %v5932
  %v6073 = vpack.c.b16 %v5935, %v5933
  %v6074 = vpack.c.b16 %v5938, %v5936
  %v6075 = vpack.c.b16 %v5939, %v5937
  %v6076 = vpack.c.b16 %v5942, %v5940
  %v6077 = vpack.c.b16 %v5943, %v5941
  %v6078 = vpack.c.b16 %v5946, %v5944
  %v6079 = vpack.c.b16 %v5947, %v5945
  %v6213 = vsel %vm3369, %v5407, 0
  %6215 = vmatprep.subr.bf16.mxu0 %v5949
  %6216 = vmatpush1.bf16.msra.mxu0 %v5948
  %6217 = vmatprep.subr.bf16.mxu0 %v5951
  %6218 = vmatpush1.bf16.msra.mxu0 %v5950
  %6219 = vmatprep.subr.bf16.mxu0 %v5953
  %6220 = vmatpush1.bf16.msra.mxu0 %v5952
  %6221 = vmatprep.subr.bf16.mxu0 %v5955
  %6222 = vmatpush1.bf16.msra.mxu0 %v5954
  %6223 = vmatprep.subr.bf16.mxu0 %v5957
  %6224 = vmatpush1.bf16.msra.mxu0 %v5956
  %6225 = vmatprep.subr.bf16.mxu0 %v5959
  %6226 = vmatpush1.bf16.msra.mxu0 %v5958
  %6227 = vmatprep.subr.bf16.mxu0 %v5961
  %6228 = vmatpush1.bf16.msra.mxu0 %v5960
  %6229 = vmatprep.subr.bf16.mxu0 %v5963
  %6230 = vmatpush1.bf16.msra.mxu0 %v5962
  %6231 = vmatprep.subr.bf16.mxu0 %v5965
  %6232 = vmatpush1.bf16.msra.mxu0 %v5964
  %6233 = vmatprep.subr.bf16.mxu0 %v5967
  %6234 = vmatpush1.bf16.msra.mxu0 %v5966
  %6235 = vmatprep.subr.bf16.mxu0 %v5969
  %6236 = vmatpush1.bf16.msra.mxu0 %v5968
  %6237 = vmatprep.subr.bf16.mxu0 %v5971
  %6238 = vmatpush1.bf16.msra.mxu0 %v5970
  %6239 = vmatprep.subr.bf16.mxu0 %v5973
  %6240 = vmatpush1.bf16.msra.mxu0 %v5972
  %6241 = vmatprep.subr.bf16.mxu0 %v5975
  %6242 = vmatpush1.bf16.msra.mxu0 %v5974
  %6243 = vmatprep.subr.bf16.mxu0 %v5977
  %6244 = vmatpush1.bf16.msra.mxu0 %v5976
  %6245 = vmatprep.subr.bf16.mxu0 %v5979
  %6246 = vmatpush1.bf16.msra.mxu0 %v5978
  %6247 = vmatprep.mubr.bf16.mxu0 %v5400
  %6248 = vmatmul.mubr.bf16.gmra.mrb[0].mxu0 %v5399
  %v6249 = vpop.f32.mrb[0].mxu0
  %v6250 = vadd.f32 %v5545, %v6249
  %v6251 = vpop.f32.mrb[0].mxu0
  %v6252 = vadd.f32 %v5549, %v6251
  %v6253 = vpop.f32.mrb[0].mxu0
  %v6254 = vpop.f32.mrb[0].mxu0
  %6255 = vdwg.mxu0
  %6256 = vmatprep.subr.bf16.mxu0 %v5981
  %6257 = vmatpush1.bf16.msra.mxu0 %v5980
  %6258 = vmatprep.subr.bf16.mxu0 %v5983
  %6259 = vmatpush1.bf16.msra.mxu0 %v5982
  %6260 = vmatprep.subr.bf16.mxu0 %v5985
  %6261 = vmatpush1.bf16.msra.mxu0 %v5984
  %6262 = vmatprep.subr.bf16.mxu0 %v5987
  %6263 = vmatpush1.bf16.msra.mxu0 %v5986
  %6264 = vmatprep.subr.bf16.mxu0 %v5989
  %6265 = vmatpush1.bf16.msra.mxu0 %v5988
  %6266 = vmatprep.subr.bf16.mxu0 %v5991
  %6267 = vmatpush1.bf16.msra.mxu0 %v5990
  %6268 = vmatprep.subr.bf16.mxu0 %v5993
  %6269 = vmatpush1.bf16.msra.mxu0 %v5992
  %6270 = vmatprep.subr.bf16.mxu0 %v5995
  %6271 = vmatpush1.bf16.msra.mxu0 %v5994
  %6272 = vmatprep.subr.bf16.mxu0 %v5997
  %6273 = vmatpush1.bf16.msra.mxu0 %v5996
  %6274 = vmatprep.subr.bf16.mxu0 %v5999
  %6275 = vmatpush1.bf16.msra.mxu0 %v5998
  %6276 = vmatprep.subr.bf16.mxu0 %v6001
  %6277 = vmatpush1.bf16.msra.mxu0 %v6000
  %6278 = vmatprep.subr.bf16.mxu0 %v6003
  %6279 = vmatpush1.bf16.msra.mxu0 %v6002
  %6280 = vmatprep.subr.bf16.mxu0 %v6005
  %6281 = vmatpush1.bf16.msra.mxu0 %v6004
  %6282 = vmatprep.subr.bf16.mxu0 %v6007
  %6283 = vmatpush1.bf16.msra.mxu0 %v6006
  %6284 = vmatprep.subr.bf16.mxu0 %v6009
  %6285 = vmatpush1.bf16.msra.mxu0 %v6008
  %6286 = vmatprep.subr.bf16.mxu0 %v6011
  %6287 = vmatpush1.bf16.msra.mxu0 %v6010
  %6288 = vmatprep.mubr.bf16.mxu0 %v5402
  %6289 = vmatmul.mubr.bf16.gmra.mrb[0].mxu0 %v5401
  %v6290 = vpop.f32.mrb[0].mxu0
  %v6291 = vadd.f32 %v6250, %v6290
  %v6292 = vpop.f32.mrb[0].mxu0
  %v6293 = vadd.f32 %v6252, %v6292
  %v6294 = vpop.f32.mrb[0].mxu0
  %v6295 = vpop.f32.mrb[0].mxu0
  %6296 = vdwg.mxu0
  %6297 = vmatprep.subr.bf16.mxu0 %v6013
  %6298 = vmatpush1.bf16.msra.mxu0 %v6012
  %6299 = vmatprep.subr.bf16.mxu0 %v6015
  %6300 = vmatpush1.bf16.msra.mxu0 %v6014
  %6301 = vmatprep.subr.bf16.mxu0 %v6017
  %6302 = vmatpush1.bf16.msra.mxu0 %v6016
  %6303 = vmatprep.subr.bf16.mxu0 %v6019
  %6304 = vmatpush1.bf16.msra.mxu0 %v6018
  %6305 = vmatprep.subr.bf16.mxu0 %v6021
  %6306 = vmatpush1.bf16.msra.mxu0 %v6020
  %6307 = vmatprep.subr.bf16.mxu0 %v6023
  %6308 = vmatpush1.bf16.msra.mxu0 %v6022
  %6309 = vmatprep.subr.bf16.mxu0 %v6025
  %6310 = vmatpush1.bf16.msra.mxu0 %v6024
  %6311 = vmatprep.subr.bf16.mxu0 %v6027
  %6312 = vmatpush1.bf16.msra.mxu0 %v6026
  %6313 = vmatprep.subr.bf16.mxu0 %v6029
  %6314 = vmatpush1.bf16.msra.mxu0 %v6028
  %6315 = vmatprep.subr.bf16.mxu0 %v6031
  %6316 = vmatpush1.bf16.msra.mxu0 %v6030
  %6317 = vmatprep.subr.bf16.mxu0 %v6033
  %6318 = vmatpush1.bf16.msra.mxu0 %v6032
  %6319 = vmatprep.subr.bf16.mxu0 %v6035
  %6320 = vmatpush1.bf16.msra.mxu0 %v6034
  %6321 = vmatprep.subr.bf16.mxu0 %v6037
  %6322 = vmatpush1.bf16.msra.mxu0 %v6036
  %6323 = vmatprep.subr.bf16.mxu0 %v6039
  %6324 = vmatpush1.bf16.msra.mxu0 %v6038
  %6325 = vmatprep.subr.bf16.mxu0 %v6041
  %6326 = vmatpush1.bf16.msra.mxu0 %v6040
  %6327 = vmatprep.subr.bf16.mxu0 %v6043
  %6328 = vmatpush1.bf16.msra.mxu0 %v6042
  %6329 = vmatprep.mubr.bf16.mxu0 %v5404
  %6330 = vmatmul.mubr.bf16.gmra.mrb[0].mxu0 %v5403
  %v6331 = vpop.f32.mrb[0].mxu0
  %v6332 = vadd.f32 %v6291, %v6331
  %v6333 = vpop.f32.mrb[0].mxu0
  %v6334 = vadd.f32 %v6293, %v6333
  %v6335 = vpop.f32.mrb[0].mxu0
  %v6336 = vpop.f32.mrb[0].mxu0
  %6337 = vdwg.mxu0
  %6338 = vmatprep.subr.bf16.mxu0 %v6045
  %6339 = vmatpush1.bf16.msra.mxu0 %v6044
  %6340 = vmatprep.subr.bf16.mxu0 %v6047
  %6341 = vmatpush1.bf16.msra.mxu0 %v6046
  %6342 = vmatprep.subr.bf16.mxu0 %v6049
  %6343 = vmatpush1.bf16.msra.mxu0 %v6048
  %6344 = vmatprep.subr.bf16.mxu0 %v6051
  %6345 = vmatpush1.bf16.msra.mxu0 %v6050
  %6346 = vmatprep.subr.bf16.mxu0 %v6053
  %6347 = vmatpush1.bf16.msra.mxu0 %v6052
  %6348 = vmatprep.subr.bf16.mxu0 %v6055
  %6349 = vmatpush1.bf16.msra.mxu0 %v6054
  %6350 = vmatprep.subr.bf16.mxu0 %v6057
  %6351 = vmatpush1.bf16.msra.mxu0 %v6056
  %6352 = vmatprep.subr.bf16.mxu0 %v6059
  %6353 = vmatpush1.bf16.msra.mxu0 %v6058
  %6354 = vmatprep.subr.bf16.mxu0 %v6061
  %6355 = vmatpush1.bf16.msra.mxu0 %v6060
  %6356 = vmatprep.subr.bf16.mxu0 %v6063
  %6357 = vmatpush1.bf16.msra.mxu0 %v6062
  %6358 = vmatprep.subr.bf16.mxu0 %v6065
  %6359 = vmatpush1.bf16.msra.mxu0 %v6064
  %6360 = vmatprep.subr.bf16.mxu0 %v6067
  %6361 = vmatpush1.bf16.msra.mxu0 %v6066
  %6362 = vmatprep.subr.bf16.mxu0 %v6069
  %6363 = vmatpush1.bf16.msra.mxu0 %v6068
  %6364 = vmatprep.subr.bf16.mxu0 %v6071
  %6365 = vmatpush1.bf16.msra.mxu0 %v6070
  %6366 = vmatprep.subr.bf16.mxu0 %v6073
  %6367 = vmatpush1.bf16.msra.mxu0 %v6072
  %6368 = vmatprep.subr.bf16.mxu0 %v6075
  %6369 = vmatpush1.bf16.msra.mxu0 %v6074
  %6370 = vmatprep.mubr.bf16.mxu0 %v5406
  %6371 = vmatmul.mubr.bf16.gmra.mrb[0].mxu0 %v5405
  %v6372 = vpop.f32.mrb[0].mxu0
  %v6373 = vadd.f32 %v6332, %v6372
  %v6374 = vpop.f32.mrb[0].mxu0
  %v6375 = vadd.f32 %v6334, %v6374
  %v6376 = vpop.f32.mrb[0].mxu0
  %v6377 = vpop.f32.mrb[0].mxu0
  %6378 = vdwg.mxu0
  %6379 = vmatprep.subr.bf16.mxu0 %v6077
  %6380 = vmatpush1.bf16.msra.mxu0 %v6076
  %6381 = vmatprep.subr.bf16.mxu0 %v6079
  %6382 = vmatpush1.bf16.msra.mxu0 %v6078
  %6383 = vmatprep.subr.bf16.mxu0 0
  %6384 = vmatpush1.bf16.msra.mxu0 0
  %6385 = vmatprep.subr.bf16.mxu0 0
  %6386 = vmatpush1.bf16.msra.mxu0 0
  %6387 = vmatprep.subr.bf16.mxu0 0
  %6388 = vmatpush1.bf16.msra.mxu0 0
  %6389 = vmatprep.subr.bf16.mxu0 0
  %6390 = vmatpush1.bf16.msra.mxu0 0
  %6391 = vmatprep.subr.bf16.mxu0 0
  %6392 = vmatpush1.bf16.msra.mxu0 0
  %6393 = vmatprep.subr.bf16.mxu0 0
  %6394 = vmatpush1.bf16.msra.mxu0 0
  %6395 = vmatprep.subr.bf16.mxu0 0
  %6396 = vmatpush1.bf16.msra.mxu0 0
  %6397 = vmatprep.subr.bf16.mxu0 0
  %6398 = vmatpush1.bf16.msra.mxu0 0
  %6399 = vmatprep.subr.bf16.mxu0 0
  %6400 = vmatpush1.bf16.msra.mxu0 0
  %6401 = vmatprep.subr.bf16.mxu0 0
  %6402 = vmatpush1.bf16.msra.mxu0 0
  %6403 = vmatprep.subr.bf16.mxu0 0
  %6404 = vmatpush1.bf16.msra.mxu0 0
  %6405 = vmatprep.subr.bf16.mxu0 0
  %6406 = vmatpush1.bf16.msra.mxu0 0
  %6407 = vmatprep.subr.bf16.mxu0 0
  %6408 = vmatpush1.bf16.msra.mxu0 0
  %6409 = vmatprep.subr.bf16.mxu0 0
  %6410 = vmatpush1.bf16.msra.mxu0 0
  %6411 = vmatprep.mubr.bf16.mxu0 0
  %6412 = vmatmul.mubr.bf16.gmra.mrb[0].mxu0 %v6213
  %v6413 = vpop.f32.mrb[0].mxu0
  %v6414 = vadd.f32 %v6373, %v6413
  %v6415 = vpop.f32.mrb[0].mxu0
  %v6416 = vadd.f32 %v6375, %v6415
  %v6417 = vpop.f32.mrb[0].mxu0
  %v6418 = vpop.f32.mrb[0].mxu0
  %6419 = vdwg.mxu0
  %v6420 = vtanh.pop %v6414
  %v6421 = vtanh.pop %v6416
  %6422 = vst [vmem:[%s16] sm:$0xff] %v6420
  %6423 = vst [vmem:[%s16 + $0x8] sm:$0xff] %v6421
  // Predicated region
  $region66: #{forward.1} parent=0 // pred_check
    _
  $region67: #{forward.1} parent=0 // pred_check_branch
    %6425 = sbr.rel (0) target = $region69
  $region68: #{forward.1} parent=0 // pred_region
    _
  $region69: #{forward.1} parent=0 // pred_fallthru
    _
  // Predicated region
  $region70: #{forward.1} parent=0 // pred_check
    _
  $region71: #{forward.1} parent=0 // pred_check_branch
    %6427 = sbr.rel (0) target = $region73
  $region72: #{forward.1} parent=0 // pred_region
    _
  $region73: #{forward.1} parent=0 // pred_fallthru
    _

</llo_original>
